<compile_context>
chip_gen: v5e
topology: v5e:2x2
jax: 0.10.0
libtpu: 0.0.40
codegen_flags: <defaults>
</compile_context>

<pallas_src>
import functools

import jax
import jax.numpy as jnp
from jax.experimental import pallas as pl
from jax.experimental.pallas import tpu as pltpu

_VMEM_LIMIT = 32 * 1024 * 1024   # >= default on v6e/v7x, raises v5e's 16 MiB


def _round_up(x, m):
    return (x + m - 1) // m * m


# ----------------------------------------------------------------------------
# Pallas kernels
# ----------------------------------------------------------------------------
def _gemm_bias_act_kernel(p_ref, w_ref, b_ref, o_ref, *, activation, slope):
    """One M-tile: bf16 GEMM (f32 acc) + bias + activation (non-BN layers)."""
    x = jnp.dot(p_ref[...], w_ref[...], preferred_element_type=jnp.float32)
    x = x + b_ref[...]                                   # (1, Cp) broadcast
    if activation == "leaky_relu":
        x = jnp.where(x >= 0.0, x, slope * x)
    elif activation == "sigmoid":
        x = 1.0 / (1.0 + jnp.exp(-x))
    o_ref[...] = x.astype(o_ref.dtype)


def _gemm_stats_kernel(p_ref, w_ref, y_ref, s1_ref, s2_ref):
    """One M-tile: bf16 GEMM (f32 acc) + per-channel sum / sum-of-squares.

    s1/s2 use a constant output block index over the M grid axis, so they stay
    VMEM-resident accumulators across the whole grid (axis is "arbitrary").
    Zero-padded rows contribute nothing (no bias is added here).
    """
    @pl.when(pl.program_id(0) == 0)
    def _():
        s1_ref[...] = jnp.zeros_like(s1_ref)
        s2_ref[...] = jnp.zeros_like(s2_ref)

    y = jnp.dot(p_ref[...], w_ref[...], preferred_element_type=jnp.float32)
    y_ref[...] = y
    s1_ref[...] += jnp.sum(y, axis=0, keepdims=True)
    s2_ref[...] += jnp.sum(y * y, axis=0, keepdims=True)


def _bn_leaky_kernel(y_ref, sc_ref, sh_ref, o_ref, *, slope):
    """One M-tile: folded BatchNorm (y*scale + shift) fused with LeakyReLU."""
    x = y_ref[...] * sc_ref[...] + sh_ref[...]
    o_ref[...] = jnp.where(x >= 0.0, x, slope * x).astype(o_ref.dtype)


# ----------------------------------------------------------------------------
# im2col (data rearrangement only, NHWC, bf16 downstream)
# ----------------------------------------------------------------------------
def _im2col_nhwc(x, kh, kw, stride, pad):
    """NHWC input -> (N*OH*OW, KH*KW*C) patch matrix, tap-major / channel-minor."""
    N, H, W, C = x.shape
    OH = (H + 2 * pad - kh) // stride + 1
    OW = (W + 2 * pad - kw) // stride + 1
    xp = jnp.pad(x, ((0, 0), (pad, pad), (pad, pad), (0, 0)))
    taps = []
    for i in range(kh):
        for j in range(kw):
            taps.append(xp[:, i:i + stride * (OH - 1) + 1:stride,
                           j:j + stride * (OW - 1) + 1:stride, :])
    patches = jnp.concatenate(taps, axis=-1)             # (N, OH, OW, KH*KW*C)
    return patches.reshape(N * OH * OW, kh * kw * C), OH, OW


# ----------------------------------------------------------------------------
# One conv layer = im2col + tiled/pipelined fused Pallas GEMM kernel(s)
# ----------------------------------------------------------------------------
def fused_conv_layer(x_nhwc, w, b, gamma, beta, *, stride, pad, use_bn,
                     activation, out_dtype=jnp.bfloat16, tm=256,
                     eps=1e-5, slope=0.2):
    N = x_nhwc.shape[0]
    C_out, C_in, KH, KW = w.shape
    assert x_nhwc.shape[-1] == C_in

    patches, OH, OW = _im2col_nhwc(x_nhwc, KH, KW, stride, pad)
    M, K = patches.shape

    Cp = _round_up(C_out, 128)                  # lane-dense GEMM output
    tm = min(tm, _round_up(M, 16))              # bf16-friendly sublane multiple
    Mp = _round_up(M, tm)
    grid = (Mp // tm,)

    # bf16 GEMM operands (f32 accumulation stays inside the kernel).
    patches = jnp.pad(patches, ((0, Mp - M), (0, 0))).astype(jnp.bfloat16)
    w2 = jnp.pad(w.transpose(2, 3, 1, 0).reshape(KH * KW * C_in, C_out),
                 ((0, 0), (0, Cp - C_out))).astype(jnp.bfloat16)

    p_spec = pl.BlockSpec((tm, K), lambda i: (i, 0))       # pipelined over M
    w_spec = pl.BlockSpec((K, Cp), lambda i: (0, 0))       # resident weight
    vec_spec = pl.BlockSpec((1, Cp), lambda i: (0, 0))     # per-channel vectors
    row_spec = pl.BlockSpec((tm, Cp), lambda i: (i, 0))

    if not use_bn:
        b2 = jnp.pad(b, (0, Cp - C_out)).astype(jnp.float32).reshape(1, Cp)
        out = pl.pallas_call(
            functools.partial(_gemm_bias_act_kernel,
                              activation=activation, slope=slope),
            out_shape=jax.ShapeDtypeStruct((Mp, Cp), out_dtype),
            grid_spec=pltpu.PrefetchScalarGridSpec(
                num_scalar_prefetch=0, grid=grid,
                in_specs=[p_spec, w_spec, vec_spec],
                out_specs=row_spec),
            compiler_params=pltpu.CompilerParams(
                dimension_semantics=("parallel",),
                vmem_limit_bytes=_VMEM_LIMIT),
        )(patches, w2, b2)
    else:
        # Pass 1: GEMM + accumulated per-channel sum / sum-of-squares.
        # Conv bias is skipped: training-mode BN removes it (mean subtraction).
        y, s1, s2 = pl.pallas_call(
            _gemm_stats_kernel,
            out_shape=(jax.ShapeDtypeStruct((Mp, Cp), jnp.float32),
                       jax.ShapeDtypeStruct((1, Cp), jnp.float32),
                       jax.ShapeDtypeStruct((1, Cp), jnp.float32)),
            grid_spec=pltpu.PrefetchScalarGridSpec(
                num_scalar_prefetch=0, grid=grid,
                in_specs=[p_spec, w_spec],
                out_specs=(row_spec, vec_spec, vec_spec)),
            compiler_params=pltpu.CompilerParams(
                dimension_semantics=("arbitrary",),   # resident accumulators
                vmem_limit_bytes=_VMEM_LIMIT),
        )(patches, w2)

        # Fold batch stats (true M rows; padded rows contribute 0) + gamma/beta
        # into a single per-channel FMA: y * scale + shift.
        inv_m = 1.0 / float(M)
        mean = s1[0] * inv_m
        var = s2[0] * inv_m - mean * mean               # biased, BN train mode
        gamma_p = jnp.pad(gamma, (0, Cp - C_out))
        beta_p = jnp.pad(beta, (0, Cp - C_out))
        g_rstd = gamma_p * jax.lax.rsqrt(var + eps)
        scale = g_rstd.reshape(1, Cp)
        shift = (beta_p - mean * g_rstd).reshape(1, Cp)

        # Pass 2: normalize + LeakyReLU, fused and pipelined over M.
        out = pl.pallas_call(
            functools.partial(_bn_leaky_kernel, slope=slope),
            out_shape=jax.ShapeDtypeStruct((Mp, Cp), out_dtype),
            grid_spec=pltpu.PrefetchScalarGridSpec(
                num_scalar_prefetch=0, grid=grid,
                in_specs=[row_spec, vec_spec, vec_spec],
                out_specs=row_spec),
            compiler_params=pltpu.CompilerParams(
                dimension_semantics=("parallel",),
                vmem_limit_bytes=_VMEM_LIMIT),
        )(y, scale, shift)

    # Drop row/channel padding; stay NHWC for the next layer.
    return out[:M, :C_out].reshape(N, OH, OW, C_out)


# ----------------------------------------------------------------------------
# Parameters (mirrors Discriminator(d) + weight_init(0.0, 0.02))
# ----------------------------------------------------------------------------
def init_discriminator_params(key, d):
    def conv(k, c_out, c_in, ksz):
        w = 0.02 * jax.random.normal(k, (c_out, c_in, ksz, ksz), jnp.float32)
        return w, jnp.zeros((c_out,), jnp.float32)

    k1, k2, k3, k4, k5 = jax.random.split(key, 5)
    p = {}
    p["w1"], p["b1"] = conv(k1, d, 1, 5)
    p["w2"], p["b2"] = conv(k2, 2 * d, d, 5)
    p["w3"], p["b3"] = conv(k3, 4 * d, 2 * d, 5)
    p["w4"], p["b4"] = conv(k4, 8 * d, 4 * d, 5)
    p["w5"], p["b5"] = conv(k5, 1, 8 * d, 3)
    for i, c in ((2, 2 * d), (3, 4 * d), (4, 8 * d)):
        p[f"g{i}"] = jnp.ones((c,), jnp.float32)       # BatchNorm2d gamma
        p[f"bt{i}"] = jnp.zeros((c,), jnp.float32)     # BatchNorm2d beta
    return p


# ----------------------------------------------------------------------------
# Forward pass (matches Discriminator.forward)
# ----------------------------------------------------------------------------
def discriminator_forward(params, x_nchw, *, tm=256):
    # NCHW -> NHWC once at the model boundary; NHWC between layers.
    x = jnp.transpose(x_nchw, (0, 2, 3, 1)).astype(jnp.float32)
    x = fused_conv_layer(x, params["w1"], params["b1"], None, None,
                         stride=2, pad=1, use_bn=False,
                         activation="leaky_relu", out_dtype=jnp.bfloat16, tm=tm)
    x = fused_conv_layer(x, params["w2"], params["b2"], params["g2"], params["bt2"],
                         stride=2, pad=1, use_bn=True,
                         activation="leaky_relu", out_dtype=jnp.bfloat16, tm=tm)
    x = fused_conv_layer(x, params["w3"], params["b3"], params["g3"], params["bt3"],
                         stride=2, pad=1, use_bn=True,
                         activation="leaky_relu", out_dtype=jnp.bfloat16, tm=tm)
    x = fused_conv_layer(x, params["w4"], params["b4"], params["g4"], params["bt4"],
                         stride=2, pad=1, use_bn=True,
                         activation="leaky_relu", out_dtype=jnp.bfloat16, tm=tm)
    x = fused_conv_layer(x, params["w5"], params["b5"], None, None,
                         stride=1, pad=0, use_bn=False,
                         activation="sigmoid", out_dtype=jnp.float32, tm=tm)
    return jnp.transpose(x, (0, 3, 1, 2))              # back to NCHW (N,1,1,1)


if __name__ == "__main__":
    key = jax.random.PRNGKey(0)
    pkey, xkey = jax.random.split(key)

    d = 16                                   # module default is 128; small test
    params = init_discriminator_params(pkey, d)

    # DCGAN discriminator takes 1-channel 64x64 images -> (N, 1, 1, 1) scores.
    x = jax.random.normal(xkey, (2, 1, 64, 64), jnp.float32)

    fwd = jax.jit(discriminator_forward)
    out = jax.block_until_ready(fwd(params, x))

    assert out.shape == (2, 1, 1, 1), out.shape
    assert bool(jnp.all(jnp.isfinite(out)))
    assert bool(jnp.all((out >= 0.0) & (out <= 1.0)))
    print("KERNEL_OK")
</pallas_src>

<mosaic_0001>
module attributes {stable_mosaic.version = 11 : i64} {
  func.func @_gemm_bias_act_kernel(%arg0: i32, %arg1: memref<256x25xbf16, #tpu.memory_space<vmem>>, %arg2: memref<25x128xbf16, #tpu.memory_space<vmem>>, %arg3: memref<1x128xf32, #tpu.memory_space<vmem>>, %arg4: memref<256x128xbf16, #tpu.memory_space<vmem>>) attributes {dimension_semantics = [#tpu.dimension_semantics<parallel>], iteration_bounds = array<i64: 8>, scalar_prefetch = 0 : i64, scratch_operands = 0 : i64, tpu.core_type = #tpu.core_type<tc>, window_params = [{transform_indices = @transform_0, window_bounds = array<i64: 256, 25>}, {pipeline_mode = #tpu.pipeline_mode<synchronous>, transform_indices = @transform_1, window_bounds = array<i64: 25, 128>}, {pipeline_mode = #tpu.pipeline_mode<synchronous>, transform_indices = @transform_2, window_bounds = array<i64: 1, 128>}, {transform_indices = @transform_3, window_bounds = array<i64: 256, 128>}]} {
    %c0 = arith.constant 0 : index
    %c0_0 = arith.constant 0 : index
    %0 = vector.load %arg1[%c0, %c0_0] : memref<256x25xbf16, #tpu.memory_space<vmem>>, vector<256x25xbf16>
    %c0_1 = arith.constant 0 : index
    %c0_2 = arith.constant 0 : index
    %1 = vector.load %arg2[%c0_1, %c0_2] : memref<25x128xbf16, #tpu.memory_space<vmem>>, vector<25x128xbf16>
    %cst = arith.constant dense<0.000000e+00> : vector<256x128xf32>
    %2 = tpu.matmul %0, %1, %cst {dimension_numbers = #tpu.dot_dimension_numbers<[1], [0], [0], [1], [0, 0, 1, 1], [], []>} : vector<256x25xbf16>, vector<25x128xbf16>, vector<256x128xf32> -> vector<256x128xf32>
    %c0_3 = arith.constant 0 : index
    %c0_4 = arith.constant 0 : index
    %3 = vector.load %arg3[%c0_3, %c0_4] : memref<1x128xf32, #tpu.memory_space<vmem>>, vector<1x128xf32>
    %4 = vector.broadcast %3 : vector<1x128xf32> to vector<256x128xf32>
    %5 = arith.addf %2, %4 : vector<256x128xf32>
    %cst_5 = arith.constant 0.000000e+00 : f32
    %6 = vector.broadcast %cst_5 : f32 to vector<256x128xf32>
    %7 = arith.cmpf oge, %5, %6 : vector<256x128xf32>
    %cst_6 = arith.constant 2.000000e-01 : f32
    %8 = vector.broadcast %cst_6 : f32 to vector<256x128xf32>
    %9 = arith.mulf %8, %5 : vector<256x128xf32>
    %10 = arith.select %7, %5, %9 : vector<256x128xi1>, vector<256x128xf32>
    %11 = arith.truncf %10 : vector<256x128xf32> to vector<256x128xbf16>
    %c0_7 = arith.constant 0 : index
    %c0_8 = arith.constant 0 : index
    %12 = vector.load %arg4[%c0_7, %c0_8] : memref<256x128xbf16, #tpu.memory_space<vmem>>, vector<256x128xbf16>
    tpu.vector_store %arg4[%c0_7, %c0_8], %11 {strides = array<i32>} : memref<256x128xbf16, #tpu.memory_space<vmem>>, vector<256x128xbf16>,
    return
  }
  func.func @transform_0(%arg0: i32) -> (i32, i32) {
    %c0_i32 = arith.constant 0 : i32
    %c0_i32_0 = arith.constant 0 : i32
    return %arg0, %c0_i32 : i32, i32
  }
  func.func @transform_1(%arg0: i32) -> (i32, i32) {
    %c0_i32 = arith.constant 0 : i32
    %c0_i32_0 = arith.constant 0 : i32
    %c0_i32_1 = arith.constant 0 : i32
    return %c0_i32, %c0_i32_0 : i32, i32
  }
  func.func @transform_2(%arg0: i32) -> (i32, i32) {
    %c0_i32 = arith.constant 0 : i32
    %c0_i32_0 = arith.constant 0 : i32
    %c0_i32_1 = arith.constant 0 : i32
    return %c0_i32, %c0_i32_0 : i32, i32
  }
  func.func @transform_3(%arg0: i32) -> (i32, i32) {
    %c0_i32 = arith.constant 0 : i32
    %c0_i32_0 = arith.constant 0 : i32
    return %arg0, %c0_i32 : i32, i32
  }
}

module attributes {stable_mosaic.version = 11 : i64} {
  func.func @_gemm_stats_kernel(%arg0: i32, %arg1: memref<256x400xbf16, #tpu.memory_space<vmem>>, %arg2: memref<400x128xbf16, #tpu.memory_space<vmem>>, %arg3: memref<256x128xf32, #tpu.memory_space<vmem>>, %arg4: memref<1x128xf32, #tpu.memory_space<vmem>>, %arg5: memref<1x128xf32, #tpu.memory_space<vmem>>) attributes {dimension_semantics = [#tpu.dimension_semantics<arbitrary>], iteration_bounds = array<i64: 2>, scalar_prefetch = 0 : i64, scratch_operands = 0 : i64, tpu.core_type = #tpu.core_type<tc>, window_params = [{transform_indices = @transform_0, window_bounds = array<i64: 256, 400>}, {pipeline_mode = #tpu.pipeline_mode<synchronous>, transform_indices = @transform_1, window_bounds = array<i64: 400, 128>}, {transform_indices = @transform_2, window_bounds = array<i64: 256, 128>}, {pipeline_mode = #tpu.pipeline_mode<synchronous>, transform_indices = @transform_3, window_bounds = array<i64: 1, 128>}, {pipeline_mode = #tpu.pipeline_mode<synchronous>, transform_indices = @transform_4, window_bounds = array<i64: 1, 128>}]} {
    %c0_i32 = arith.constant 0 : i32
    %0 = arith.cmpi eq, %arg0, %c0_i32 : i32
    %1 = arith.extui %0 : i1 to i32
    %c0_i32_0 = arith.constant 0 : i32
    %2 = arith.cmpi ne, %1, %c0_i32_0 : i32
    scf.if %2 {
      %cst_16 = arith.constant 0.000000e+00 : f32
      %18 = vector.broadcast %cst_16 : f32 to vector<1x128xf32>
      %c0_17 = arith.constant 0 : index
      %c0_18 = arith.constant 0 : index
      %19 = vector.load %arg4[%c0_17, %c0_18] : memref<1x128xf32, #tpu.memory_space<vmem>>, vector<1x128xf32>
      tpu.vector_store %arg4[%c0_17, %c0_18], %18 {strides = array<i32>} : memref<1x128xf32, #tpu.memory_space<vmem>>, vector<1x128xf32>,
      %cst_19 = arith.constant 0.000000e+00 : f32
      %20 = vector.broadcast %cst_19 : f32 to vector<1x128xf32>
      %c0_20 = arith.constant 0 : index
      %c0_21 = arith.constant 0 : index
      %21 = vector.load %arg5[%c0_20, %c0_21] : memref<1x128xf32, #tpu.memory_space<vmem>>, vector<1x128xf32>
      tpu.vector_store %arg5[%c0_20, %c0_21], %20 {strides = array<i32>} : memref<1x128xf32, #tpu.memory_space<vmem>>, vector<1x128xf32>,
    } else {
    }
    %c0 = arith.constant 0 : index
    %c0_1 = arith.constant 0 : index
    %3 = vector.load %arg1[%c0, %c0_1] : memref<256x400xbf16, #tpu.memory_space<vmem>>, vector<256x400xbf16>
    %c0_2 = arith.constant 0 : index
    %c0_3 = arith.constant 0 : index
    %4 = vector.load %arg2[%c0_2, %c0_3] : memref<400x128xbf16, #tpu.memory_space<vmem>>, vector<400x128xbf16>
    %cst = arith.constant dense<0.000000e+00> : vector<256x128xf32>
    %5 = tpu.matmul %3, %4, %cst {dimension_numbers = #tpu.dot_dimension_numbers<[1], [0], [0], [1], [0, 0, 1, 1], [], []>} : vector<256x400xbf16>, vector<400x128xbf16>, vector<256x128xf32> -> vector<256x128xf32>
    %c0_4 = arith.constant 0 : index
    %c0_5 = arith.constant 0 : index
    %6 = vector.load %arg3[%c0_4, %c0_5] : memref<256x128xf32, #tpu.memory_space<vmem>>, vector<256x128xf32>
    tpu.vector_store %arg3[%c0_4, %c0_5], %5 {strides = array<i32>} : memref<256x128xf32, #tpu.memory_space<vmem>>, vector<256x128xf32>,
    %c0_6 = arith.constant 0 : index
    %c0_7 = arith.constant 0 : index
    %7 = vector.load %arg4[%c0_6, %c0_7] : memref<1x128xf32, #tpu.memory_space<vmem>>, vector<1x128xf32>
    %cst_8 = arith.constant dense<0.000000e+00> : vector<128xf32>
    %8 = vector.multi_reduction <add>, %5, %cst_8 [0] : vector<256x128xf32> to vector<128xf32>
    %9 = vector.shape_cast %8 : vector<128xf32> to vector<1x128xf32>
    %10 = arith.addf %7, %9 : vector<1x128xf32>
    %c0_9 = arith.constant 0 : index
    %c0_10 = arith.constant 0 : index
    %11 = vector.load %arg4[%c0_9, %c0_10] : memref<1x128xf32, #tpu.memory_space<vmem>>, vector<1x128xf32>
    tpu.vector_store %arg4[%c0_9, %c0_10], %10 {strides = array<i32>} : memref<1x128xf32, #tpu.memory_space<vmem>>, vector<1x128xf32>,
    %c0_11 = arith.constant 0 : index
    %c0_12 = arith.constant 0 : index
    %12 = vector.load %arg5[%c0_11, %c0_12] : memref<1x128xf32, #tpu.memory_space<vmem>>, vector<1x128xf32>
    %13 = arith.mulf %5, %5 : vector<256x128xf32>
    %cst_13 = arith.constant dense<0.000000e+00> : vector<128xf32>
    %14 = vector.multi_reduction <add>, %13, %cst_13 [0] : vector<256x128xf32> to vector<128xf32>
    %15 = vector.shape_cast %14 : vector<128xf32> to vector<1x128xf32>
    %16 = arith.addf %12, %15 : vector<1x128xf32>
    %c0_14 = arith.constant 0 : index
    %c0_15 = arith.constant 0 : index
    %17 = vector.load %arg5[%c0_14, %c0_15] : memref<1x128xf32, #tpu.memory_space<vmem>>, vector<1x128xf32>
    tpu.vector_store %arg5[%c0_14, %c0_15], %16 {strides = array<i32>} : memref<1x128xf32, #tpu.memory_space<vmem>>, vector<1x128xf32>,
    return
  }
  func.func @transform_0(%arg0: i32) -> (i32, i32) {
    %c0_i32 = arith.constant 0 : i32
    %c0_i32_0 = arith.constant 0 : i32
    return %arg0, %c0_i32 : i32, i32
  }
  func.func @transform_1(%arg0: i32) -> (i32, i32) {
    %c0_i32 = arith.constant 0 : i32
    %c0_i32_0 = arith.constant 0 : i32
    %c0_i32_1 = arith.constant 0 : i32
    return %c0_i32, %c0_i32_0 : i32, i32
  }
  func.func @transform_2(%arg0: i32) -> (i32, i32) {
    %c0_i32 = arith.constant 0 : i32
    %c0_i32_0 = arith.constant 0 : i32
    return %arg0, %c0_i32 : i32, i32
  }
  func.func @transform_3(%arg0: i32) -> (i32, i32) {
    %c0_i32 = arith.constant 0 : i32
    %c0_i32_0 = arith.constant 0 : i32
    %c0_i32_1 = arith.constant 0 : i32
    return %c0_i32, %c0_i32_0 : i32, i32
  }
  func.func @transform_4(%arg0: i32) -> (i32, i32) {
    %c0_i32 = arith.constant 0 : i32
    %c0_i32_0 = arith.constant 0 : i32
    %c0_i32_1 = arith.constant 0 : i32
    return %c0_i32, %c0_i32_0 : i32, i32
  }
}

module attributes {stable_mosaic.version = 11 : i64} {
  func.func @_bn_leaky_kernel(%arg0: i32, %arg1: memref<256x128xf32, #tpu.memory_space<vmem>>, %arg2: memref<1x128xf32, #tpu.memory_space<vmem>>, %arg3: memref<1x128xf32, #tpu.memory_space<vmem>>, %arg4: memref<256x128xbf16, #tpu.memory_space<vmem>>) attributes {dimension_semantics = [#tpu.dimension_semantics<parallel>], iteration_bounds = array<i64: 2>, scalar_prefetch = 0 : i64, scratch_operands = 0 : i64, tpu.core_type = #tpu.core_type<tc>, window_params = [{transform_indices = @transform_0, window_bounds = array<i64: 256, 128>}, {pipeline_mode = #tpu.pipeline_mode<synchronous>, transform_indices = @transform_1, window_bounds = array<i64: 1, 128>}, {pipeline_mode = #tpu.pipeline_mode<synchronous>, transform_indices = @transform_2, window_bounds = array<i64: 1, 128>}, {transform_indices = @transform_3, window_bounds = array<i64: 256, 128>}]} {
    %c0 = arith.constant 0 : index
    %c0_0 = arith.constant 0 : index
    %0 = vector.load %arg1[%c0, %c0_0] : memref<256x128xf32, #tpu.memory_space<vmem>>, vector<256x128xf32>
    %c0_1 = arith.constant 0 : index
    %c0_2 = arith.constant 0 : index
    %1 = vector.load %arg2[%c0_1, %c0_2] : memref<1x128xf32, #tpu.memory_space<vmem>>, vector<1x128xf32>
    %2 = vector.broadcast %1 : vector<1x128xf32> to vector<256x128xf32>
    %3 = arith.mulf %0, %2 : vector<256x128xf32>
    %c0_3 = arith.constant 0 : index
    %c0_4 = arith.constant 0 : index
    %4 = vector.load %arg3[%c0_3, %c0_4] : memref<1x128xf32, #tpu.memory_space<vmem>>, vector<1x128xf32>
    %5 = vector.broadcast %4 : vector<1x128xf32> to vector<256x128xf32>
    %6 = arith.addf %3, %5 : vector<256x128xf32>
    %cst = arith.constant 0.000000e+00 : f32
    %7 = vector.broadcast %cst : f32 to vector<256x128xf32>
    %8 = arith.cmpf oge, %6, %7 : vector<256x128xf32>
    %cst_5 = arith.constant 2.000000e-01 : f32
    %9 = vector.broadcast %cst_5 : f32 to vector<256x128xf32>
    %10 = arith.mulf %9, %6 : vector<256x128xf32>
    %11 = arith.select %8, %6, %10 : vector<256x128xi1>, vector<256x128xf32>
    %12 = arith.truncf %11 : vector<256x128xf32> to vector<256x128xbf16>
    %c0_6 = arith.constant 0 : index
    %c0_7 = arith.constant 0 : index
    %13 = vector.load %arg4[%c0_6, %c0_7] : memref<256x128xbf16, #tpu.memory_space<vmem>>, vector<256x128xbf16>
    tpu.vector_store %arg4[%c0_6, %c0_7], %12 {strides = array<i32>} : memref<256x128xbf16, #tpu.memory_space<vmem>>, vector<256x128xbf16>,
    return
  }
  func.func @transform_0(%arg0: i32) -> (i32, i32) {
    %c0_i32 = arith.constant 0 : i32
    %c0_i32_0 = arith.constant 0 : i32
    return %arg0, %c0_i32 : i32, i32
  }
  func.func @transform_1(%arg0: i32) -> (i32, i32) {
    %c0_i32 = arith.constant 0 : i32
    %c0_i32_0 = arith.constant 0 : i32
    %c0_i32_1 = arith.constant 0 : i32
    return %c0_i32, %c0_i32_0 : i32, i32
  }
  func.func @transform_2(%arg0: i32) -> (i32, i32) {
    %c0_i32 = arith.constant 0 : i32
    %c0_i32_0 = arith.constant 0 : i32
    %c0_i32_1 = arith.constant 0 : i32
    return %c0_i32, %c0_i32_0 : i32, i32
  }
  func.func @transform_3(%arg0: i32) -> (i32, i32) {
    %c0_i32 = arith.constant 0 : i32
    %c0_i32_0 = arith.constant 0 : i32
    return %arg0, %c0_i32 : i32, i32
  }
}

module attributes {stable_mosaic.version = 11 : i64} {
  func.func @_gemm_stats_kernel(%arg0: i32, %arg1: memref<112x800xbf16, #tpu.memory_space<vmem>>, %arg2: memref<800x128xbf16, #tpu.memory_space<vmem>>, %arg3: memref<112x128xf32, #tpu.memory_space<vmem>>, %arg4: memref<1x128xf32, #tpu.memory_space<vmem>>, %arg5: memref<1x128xf32, #tpu.memory_space<vmem>>) attributes {dimension_semantics = [#tpu.dimension_semantics<arbitrary>], iteration_bounds = array<i64: 1>, scalar_prefetch = 0 : i64, scratch_operands = 0 : i64, tpu.core_type = #tpu.core_type<tc>, window_params = [{transform_indices = @transform_0, window_bounds = array<i64: 112, 800>}, {pipeline_mode = #tpu.pipeline_mode<synchronous>, transform_indices = @transform_1, window_bounds = array<i64: 800, 128>}, {transform_indices = @transform_2, window_bounds = array<i64: 112, 128>}, {pipeline_mode = #tpu.pipeline_mode<synchronous>, transform_indices = @transform_3, window_bounds = array<i64: 1, 128>}, {pipeline_mode = #tpu.pipeline_mode<synchronous>, transform_indices = @transform_4, window_bounds = array<i64: 1, 128>}]} {
    %c0_i32 = arith.constant 0 : i32
    %0 = arith.cmpi eq, %arg0, %c0_i32 : i32
    %1 = arith.extui %0 : i1 to i32
    %c0_i32_0 = arith.constant 0 : i32
    %2 = arith.cmpi ne, %1, %c0_i32_0 : i32
    scf.if %2 {
      %cst_16 = arith.constant 0.000000e+00 : f32
      %18 = vector.broadcast %cst_16 : f32 to vector<1x128xf32>
      %c0_17 = arith.constant 0 : index
      %c0_18 = arith.constant 0 : index
      %19 = vector.load %arg4[%c0_17, %c0_18] : memref<1x128xf32, #tpu.memory_space<vmem>>, vector<1x128xf32>
      tpu.vector_store %arg4[%c0_17, %c0_18], %18 {strides = array<i32>} : memref<1x128xf32, #tpu.memory_space<vmem>>, vector<1x128xf32>,
      %cst_19 = arith.constant 0.000000e+00 : f32
      %20 = vector.broadcast %cst_19 : f32 to vector<1x128xf32>
      %c0_20 = arith.constant 0 : index
      %c0_21 = arith.constant 0 : index
      %21 = vector.load %arg5[%c0_20, %c0_21] : memref<1x128xf32, #tpu.memory_space<vmem>>, vector<1x128xf32>
      tpu.vector_store %arg5[%c0_20, %c0_21], %20 {strides = array<i32>} : memref<1x128xf32, #tpu.memory_space<vmem>>, vector<1x128xf32>,
    } else {
    }
    %c0 = arith.constant 0 : index
    %c0_1 = arith.constant 0 : index
    %3 = vector.load %arg1[%c0, %c0_1] : memref<112x800xbf16, #tpu.memory_space<vmem>>, vector<112x800xbf16>
    %c0_2 = arith.constant 0 : index
    %c0_3 = arith.constant 0 : index
    %4 = vector.load %arg2[%c0_2, %c0_3] : memref<800x128xbf16, #tpu.memory_space<vmem>>, vector<800x128xbf16>
    %cst = arith.constant dense<0.000000e+00> : vector<112x128xf32>
    %5 = tpu.matmul %3, %4, %cst {dimension_numbers = #tpu.dot_dimension_numbers<[1], [0], [0], [1], [0, 0, 1, 1], [], []>} : vector<112x800xbf16>, vector<800x128xbf16>, vector<112x128xf32> -> vector<112x128xf32>
    %c0_4 = arith.constant 0 : index
    %c0_5 = arith.constant 0 : index
    %6 = vector.load %arg3[%c0_4, %c0_5] : memref<112x128xf32, #tpu.memory_space<vmem>>, vector<112x128xf32>
    tpu.vector_store %arg3[%c0_4, %c0_5], %5 {strides = array<i32>} : memref<112x128xf32, #tpu.memory_space<vmem>>, vector<112x128xf32>,
    %c0_6 = arith.constant 0 : index
    %c0_7 = arith.constant 0 : index
    %7 = vector.load %arg4[%c0_6, %c0_7] : memref<1x128xf32, #tpu.memory_space<vmem>>, vector<1x128xf32>
    %cst_8 = arith.constant dense<0.000000e+00> : vector<128xf32>
    %8 = vector.multi_reduction <add>, %5, %cst_8 [0] : vector<112x128xf32> to vector<128xf32>
    %9 = vector.shape_cast %8 : vector<128xf32> to vector<1x128xf32>
    %10 = arith.addf %7, %9 : vector<1x128xf32>
    %c0_9 = arith.constant 0 : index
    %c0_10 = arith.constant 0 : index
    %11 = vector.load %arg4[%c0_9, %c0_10] : memref<1x128xf32, #tpu.memory_space<vmem>>, vector<1x128xf32>
    tpu.vector_store %arg4[%c0_9, %c0_10], %10 {strides = array<i32>} : memref<1x128xf32, #tpu.memory_space<vmem>>, vector<1x128xf32>,
    %c0_11 = arith.constant 0 : index
    %c0_12 = arith.constant 0 : index
    %12 = vector.load %arg5[%c0_11, %c0_12] : memref<1x128xf32, #tpu.memory_space<vmem>>, vector<1x128xf32>
    %13 = arith.mulf %5, %5 : vector<112x128xf32>
    %cst_13 = arith.constant dense<0.000000e+00> : vector<128xf32>
    %14 = vector.multi_reduction <add>, %13, %cst_13 [0] : vector<112x128xf32> to vector<128xf32>
    %15 = vector.shape_cast %14 : vector<128xf32> to vector<1x128xf32>
    %16 = arith.addf %12, %15 : vector<1x128xf32>
    %c0_14 = arith.constant 0 : index
    %c0_15 = arith.constant 0 : index
    %17 = vector.load %arg5[%c0_14, %c0_15] : memref<1x128xf32, #tpu.memory_space<vmem>>, vector<1x128xf32>
    tpu.vector_store %arg5[%c0_14, %c0_15], %16 {strides = array<i32>} : memref<1x128xf32, #tpu.memory_space<vmem>>, vector<1x128xf32>,
    return
  }
  func.func @transform_0(%arg0: i32) -> (i32, i32) {
    %c0_i32 = arith.constant 0 : i32
    %c0_i32_0 = arith.constant 0 : i32
    return %arg0, %c0_i32 : i32, i32
  }
  func.func @transform_1(%arg0: i32) -> (i32, i32) {
    %c0_i32 = arith.constant 0 : i32
    %c0_i32_0 = arith.constant 0 : i32
    %c0_i32_1 = arith.constant 0 : i32
    return %c0_i32, %c0_i32_0 : i32, i32
  }
  func.func @transform_2(%arg0: i32) -> (i32, i32) {
    %c0_i32 = arith.constant 0 : i32
    %c0_i32_0 = arith.constant 0 : i32
    return %arg0, %c0_i32 : i32, i32
  }
  func.func @transform_3(%arg0: i32) -> (i32, i32) {
    %c0_i32 = arith.constant 0 : i32
    %c0_i32_0 = arith.constant 0 : i32
    %c0_i32_1 = arith.constant 0 : i32
    return %c0_i32, %c0_i32_0 : i32, i32
  }
  func.func @transform_4(%arg0: i32) -> (i32, i32) {
    %c0_i32 = arith.constant 0 : i32
    %c0_i32_0 = arith.constant 0 : i32
    %c0_i32_1 = arith.constant 0 : i32
    return %c0_i32, %c0_i32_0 : i32, i32
  }
}

module attributes {stable_mosaic.version = 11 : i64} {
  func.func @_bn_leaky_kernel(%arg0: i32, %arg1: memref<112x128xf32, #tpu.memory_space<vmem>>, %arg2: memref<1x128xf32, #tpu.memory_space<vmem>>, %arg3: memref<1x128xf32, #tpu.memory_space<vmem>>, %arg4: memref<112x128xbf16, #tpu.memory_space<vmem>>) attributes {dimension_semantics = [#tpu.dimension_semantics<parallel>], iteration_bounds = array<i64: 1>, scalar_prefetch = 0 : i64, scratch_operands = 0 : i64, tpu.core_type = #tpu.core_type<tc>, window_params = [{transform_indices = @transform_0, window_bounds = array<i64: 112, 128>}, {pipeline_mode = #tpu.pipeline_mode<synchronous>, transform_indices = @transform_1, window_bounds = array<i64: 1, 128>}, {pipeline_mode = #tpu.pipeline_mode<synchronous>, transform_indices = @transform_2, window_bounds = array<i64: 1, 128>}, {transform_indices = @transform_3, window_bounds = array<i64: 112, 128>}]} {
    %c0 = arith.constant 0 : index
    %c0_0 = arith.constant 0 : index
    %0 = vector.load %arg1[%c0, %c0_0] : memref<112x128xf32, #tpu.memory_space<vmem>>, vector<112x128xf32>
    %c0_1 = arith.constant 0 : index
    %c0_2 = arith.constant 0 : index
    %1 = vector.load %arg2[%c0_1, %c0_2] : memref<1x128xf32, #tpu.memory_space<vmem>>, vector<1x128xf32>
    %2 = vector.broadcast %1 : vector<1x128xf32> to vector<112x128xf32>
    %3 = arith.mulf %0, %2 : vector<112x128xf32>
    %c0_3 = arith.constant 0 : index
    %c0_4 = arith.constant 0 : index
    %4 = vector.load %arg3[%c0_3, %c0_4] : memref<1x128xf32, #tpu.memory_space<vmem>>, vector<1x128xf32>
    %5 = vector.broadcast %4 : vector<1x128xf32> to vector<112x128xf32>
    %6 = arith.addf %3, %5 : vector<112x128xf32>
    %cst = arith.constant 0.000000e+00 : f32
    %7 = vector.broadcast %cst : f32 to vector<112x128xf32>
    %8 = arith.cmpf oge, %6, %7 : vector<112x128xf32>
    %cst_5 = arith.constant 2.000000e-01 : f32
    %9 = vector.broadcast %cst_5 : f32 to vector<112x128xf32>
    %10 = arith.mulf %9, %6 : vector<112x128xf32>
    %11 = arith.select %8, %6, %10 : vector<112x128xi1>, vector<112x128xf32>
    %12 = arith.truncf %11 : vector<112x128xf32> to vector<112x128xbf16>
    %c0_6 = arith.constant 0 : index
    %c0_7 = arith.constant 0 : index
    %13 = vector.load %arg4[%c0_6, %c0_7] : memref<112x128xbf16, #tpu.memory_space<vmem>>, vector<112x128xbf16>
    tpu.vector_store %arg4[%c0_6, %c0_7], %12 {strides = array<i32>} : memref<112x128xbf16, #tpu.memory_space<vmem>>, vector<112x128xbf16>,
    return
  }
  func.func @transform_0(%arg0: i32) -> (i32, i32) {
    %c0_i32 = arith.constant 0 : i32
    %c0_i32_0 = arith.constant 0 : i32
    return %arg0, %c0_i32 : i32, i32
  }
  func.func @transform_1(%arg0: i32) -> (i32, i32) {
    %c0_i32 = arith.constant 0 : i32
    %c0_i32_0 = arith.constant 0 : i32
    %c0_i32_1 = arith.constant 0 : i32
    return %c0_i32, %c0_i32_0 : i32, i32
  }
  func.func @transform_2(%arg0: i32) -> (i32, i32) {
    %c0_i32 = arith.constant 0 : i32
    %c0_i32_0 = arith.constant 0 : i32
    %c0_i32_1 = arith.constant 0 : i32
    return %c0_i32, %c0_i32_0 : i32, i32
  }
  func.func @transform_3(%arg0: i32) -> (i32, i32) {
    %c0_i32 = arith.constant 0 : i32
    %c0_i32_0 = arith.constant 0 : i32
    return %arg0, %c0_i32 : i32, i32
  }
}

module attributes {stable_mosaic.version = 11 : i64} {
  func.func @_gemm_stats_kernel(%arg0: i32, %arg1: memref<32x1600xbf16, #tpu.memory_space<vmem>>, %arg2: memref<1600x128xbf16, #tpu.memory_space<vmem>>, %arg3: memref<32x128xf32, #tpu.memory_space<vmem>>, %arg4: memref<1x128xf32, #tpu.memory_space<vmem>>, %arg5: memref<1x128xf32, #tpu.memory_space<vmem>>) attributes {dimension_semantics = [#tpu.dimension_semantics<arbitrary>], iteration_bounds = array<i64: 1>, scalar_prefetch = 0 : i64, scratch_operands = 0 : i64, tpu.core_type = #tpu.core_type<tc>, window_params = [{transform_indices = @transform_0, window_bounds = array<i64: 32, 1600>}, {pipeline_mode = #tpu.pipeline_mode<synchronous>, transform_indices = @transform_1, window_bounds = array<i64: 1600, 128>}, {transform_indices = @transform_2, window_bounds = array<i64: 32, 128>}, {pipeline_mode = #tpu.pipeline_mode<synchronous>, transform_indices = @transform_3, window_bounds = array<i64: 1, 128>}, {pipeline_mode = #tpu.pipeline_mode<synchronous>, transform_indices = @transform_4, window_bounds = array<i64: 1, 128>}]} {
    %c0_i32 = arith.constant 0 : i32
    %0 = arith.cmpi eq, %arg0, %c0_i32 : i32
    %1 = arith.extui %0 : i1 to i32
    %c0_i32_0 = arith.constant 0 : i32
    %2 = arith.cmpi ne, %1, %c0_i32_0 : i32
    scf.if %2 {
      %cst_16 = arith.constant 0.000000e+00 : f32
      %18 = vector.broadcast %cst_16 : f32 to vector<1x128xf32>
      %c0_17 = arith.constant 0 : index
      %c0_18 = arith.constant 0 : index
      %19 = vector.load %arg4[%c0_17, %c0_18] : memref<1x128xf32, #tpu.memory_space<vmem>>, vector<1x128xf32>
      tpu.vector_store %arg4[%c0_17, %c0_18], %18 {strides = array<i32>} : memref<1x128xf32, #tpu.memory_space<vmem>>, vector<1x128xf32>,
      %cst_19 = arith.constant 0.000000e+00 : f32
      %20 = vector.broadcast %cst_19 : f32 to vector<1x128xf32>
      %c0_20 = arith.constant 0 : index
      %c0_21 = arith.constant 0 : index
      %21 = vector.load %arg5[%c0_20, %c0_21] : memref<1x128xf32, #tpu.memory_space<vmem>>, vector<1x128xf32>
      tpu.vector_store %arg5[%c0_20, %c0_21], %20 {strides = array<i32>} : memref<1x128xf32, #tpu.memory_space<vmem>>, vector<1x128xf32>,
    } else {
    }
    %c0 = arith.constant 0 : index
    %c0_1 = arith.constant 0 : index
    %3 = vector.load %arg1[%c0, %c0_1] : memref<32x1600xbf16, #tpu.memory_space<vmem>>, vector<32x1600xbf16>
    %c0_2 = arith.constant 0 : index
    %c0_3 = arith.constant 0 : index
    %4 = vector.load %arg2[%c0_2, %c0_3] : memref<1600x128xbf16, #tpu.memory_space<vmem>>, vector<1600x128xbf16>
    %cst = arith.constant dense<0.000000e+00> : vector<32x128xf32>
    %5 = tpu.matmul %3, %4, %cst {dimension_numbers = #tpu.dot_dimension_numbers<[1], [0], [0], [1], [0, 0, 1, 1], [], []>} : vector<32x1600xbf16>, vector<1600x128xbf16>, vector<32x128xf32> -> vector<32x128xf32>
    %c0_4 = arith.constant 0 : index
    %c0_5 = arith.constant 0 : index
    %6 = vector.load %arg3[%c0_4, %c0_5] : memref<32x128xf32, #tpu.memory_space<vmem>>, vector<32x128xf32>
    tpu.vector_store %arg3[%c0_4, %c0_5], %5 {strides = array<i32>} : memref<32x128xf32, #tpu.memory_space<vmem>>, vector<32x128xf32>,
    %c0_6 = arith.constant 0 : index
    %c0_7 = arith.constant 0 : index
    %7 = vector.load %arg4[%c0_6, %c0_7] : memref<1x128xf32, #tpu.memory_space<vmem>>, vector<1x128xf32>
    %cst_8 = arith.constant dense<0.000000e+00> : vector<128xf32>
    %8 = vector.multi_reduction <add>, %5, %cst_8 [0] : vector<32x128xf32> to vector<128xf32>
    %9 = vector.shape_cast %8 : vector<128xf32> to vector<1x128xf32>
    %10 = arith.addf %7, %9 : vector<1x128xf32>
    %c0_9 = arith.constant 0 : index
    %c0_10 = arith.constant 0 : index
    %11 = vector.load %arg4[%c0_9, %c0_10] : memref<1x128xf32, #tpu.memory_space<vmem>>, vector<1x128xf32>
    tpu.vector_store %arg4[%c0_9, %c0_10], %10 {strides = array<i32>} : memref<1x128xf32, #tpu.memory_space<vmem>>, vector<1x128xf32>,
    %c0_11 = arith.constant 0 : index
    %c0_12 = arith.constant 0 : index
    %12 = vector.load %arg5[%c0_11, %c0_12] : memref<1x128xf32, #tpu.memory_space<vmem>>, vector<1x128xf32>
    %13 = arith.mulf %5, %5 : vector<32x128xf32>
    %cst_13 = arith.constant dense<0.000000e+00> : vector<128xf32>
    %14 = vector.multi_reduction <add>, %13, %cst_13 [0] : vector<32x128xf32> to vector<128xf32>
    %15 = vector.shape_cast %14 : vector<128xf32> to vector<1x128xf32>
    %16 = arith.addf %12, %15 : vector<1x128xf32>
    %c0_14 = arith.constant 0 : index
    %c0_15 = arith.constant 0 : index
    %17 = vector.load %arg5[%c0_14, %c0_15] : memref<1x128xf32, #tpu.memory_space<vmem>>, vector<1x128xf32>
    tpu.vector_store %arg5[%c0_14, %c0_15], %16 {strides = array<i32>} : memref<1x128xf32, #tpu.memory_space<vmem>>, vector<1x128xf32>,
    return
  }
  func.func @transform_0(%arg0: i32) -> (i32, i32) {
    %c0_i32 = arith.constant 0 : i32
    %c0_i32_0 = arith.constant 0 : i32
    return %arg0, %c0_i32 : i32, i32
  }
  func.func @transform_1(%arg0: i32) -> (i32, i32) {
    %c0_i32 = arith.constant 0 : i32
    %c0_i32_0 = arith.constant 0 : i32
    %c0_i32_1 = arith.constant 0 : i32
    return %c0_i32, %c0_i32_0 : i32, i32
  }
  func.func @transform_2(%arg0: i32) -> (i32, i32) {
    %c0_i32 = arith.constant 0 : i32
    %c0_i32_0 = arith.constant 0 : i32
    return %arg0, %c0_i32 : i32, i32
  }
  func.func @transform_3(%arg0: i32) -> (i32, i32) {
    %c0_i32 = arith.constant 0 : i32
    %c0_i32_0 = arith.constant 0 : i32
    %c0_i32_1 = arith.constant 0 : i32
    return %c0_i32, %c0_i32_0 : i32, i32
  }
  func.func @transform_4(%arg0: i32) -> (i32, i32) {
    %c0_i32 = arith.constant 0 : i32
    %c0_i32_0 = arith.constant 0 : i32
    %c0_i32_1 = arith.constant 0 : i32
    return %c0_i32, %c0_i32_0 : i32, i32
  }
}

module attributes {stable_mosaic.version = 11 : i64} {
  func.func @_bn_leaky_kernel(%arg0: i32, %arg1: memref<32x128xf32, #tpu.memory_space<vmem>>, %arg2: memref<1x128xf32, #tpu.memory_space<vmem>>, %arg3: memref<1x128xf32, #tpu.memory_space<vmem>>, %arg4: memref<32x128xbf16, #tpu.memory_space<vmem>>) attributes {dimension_semantics = [#tpu.dimension_semantics<parallel>], iteration_bounds = array<i64: 1>, scalar_prefetch = 0 : i64, scratch_operands = 0 : i64, tpu.core_type = #tpu.core_type<tc>, window_params = [{transform_indices = @transform_0, window_bounds = array<i64: 32, 128>}, {pipeline_mode = #tpu.pipeline_mode<synchronous>, transform_indices = @transform_1, window_bounds = array<i64: 1, 128>}, {pipeline_mode = #tpu.pipeline_mode<synchronous>, transform_indices = @transform_2, window_bounds = array<i64: 1, 128>}, {transform_indices = @transform_3, window_bounds = array<i64: 32, 128>}]} {
    %c0 = arith.constant 0 : index
    %c0_0 = arith.constant 0 : index
    %0 = vector.load %arg1[%c0, %c0_0] : memref<32x128xf32, #tpu.memory_space<vmem>>, vector<32x128xf32>
    %c0_1 = arith.constant 0 : index
    %c0_2 = arith.constant 0 : index
    %1 = vector.load %arg2[%c0_1, %c0_2] : memref<1x128xf32, #tpu.memory_space<vmem>>, vector<1x128xf32>
    %2 = vector.broadcast %1 : vector<1x128xf32> to vector<32x128xf32>
    %3 = arith.mulf %0, %2 : vector<32x128xf32>
    %c0_3 = arith.constant 0 : index
    %c0_4 = arith.constant 0 : index
    %4 = vector.load %arg3[%c0_3, %c0_4] : memref<1x128xf32, #tpu.memory_space<vmem>>, vector<1x128xf32>
    %5 = vector.broadcast %4 : vector<1x128xf32> to vector<32x128xf32>
    %6 = arith.addf %3, %5 : vector<32x128xf32>
    %cst = arith.constant 0.000000e+00 : f32
    %7 = vector.broadcast %cst : f32 to vector<32x128xf32>
    %8 = arith.cmpf oge, %6, %7 : vector<32x128xf32>
    %cst_5 = arith.constant 2.000000e-01 : f32
    %9 = vector.broadcast %cst_5 : f32 to vector<32x128xf32>
    %10 = arith.mulf %9, %6 : vector<32x128xf32>
    %11 = arith.select %8, %6, %10 : vector<32x128xi1>, vector<32x128xf32>
    %12 = arith.truncf %11 : vector<32x128xf32> to vector<32x128xbf16>
    %c0_6 = arith.constant 0 : index
    %c0_7 = arith.constant 0 : index
    %13 = vector.load %arg4[%c0_6, %c0_7] : memref<32x128xbf16, #tpu.memory_space<vmem>>, vector<32x128xbf16>
    tpu.vector_store %arg4[%c0_6, %c0_7], %12 {strides = array<i32>} : memref<32x128xbf16, #tpu.memory_space<vmem>>, vector<32x128xbf16>,
    return
  }
  func.func @transform_0(%arg0: i32) -> (i32, i32) {
    %c0_i32 = arith.constant 0 : i32
    %c0_i32_0 = arith.constant 0 : i32
    return %arg0, %c0_i32 : i32, i32
  }
  func.func @transform_1(%arg0: i32) -> (i32, i32) {
    %c0_i32 = arith.constant 0 : i32
    %c0_i32_0 = arith.constant 0 : i32
    %c0_i32_1 = arith.constant 0 : i32
    return %c0_i32, %c0_i32_0 : i32, i32
  }
  func.func @transform_2(%arg0: i32) -> (i32, i32) {
    %c0_i32 = arith.constant 0 : i32
    %c0_i32_0 = arith.constant 0 : i32
    %c0_i32_1 = arith.constant 0 : i32
    return %c0_i32, %c0_i32_0 : i32, i32
  }
  func.func @transform_3(%arg0: i32) -> (i32, i32) {
    %c0_i32 = arith.constant 0 : i32
    %c0_i32_0 = arith.constant 0 : i32
    return %arg0, %c0_i32 : i32, i32
  }
}

module attributes {stable_mosaic.version = 11 : i64} {
  func.func @_gemm_bias_act_kernel(%arg0: i32, %arg1: memref<16x1152xbf16, #tpu.memory_space<vmem>>, %arg2: memref<1152x128xbf16, #tpu.memory_space<vmem>>, %arg3: memref<1x128xf32, #tpu.memory_space<vmem>>, %arg4: memref<16x128xf32, #tpu.memory_space<vmem>>) attributes {dimension_semantics = [#tpu.dimension_semantics<parallel>], iteration_bounds = array<i64: 1>, scalar_prefetch = 0 : i64, scratch_operands = 0 : i64, tpu.core_type = #tpu.core_type<tc>, window_params = [{transform_indices = @transform_0, window_bounds = array<i64: 16, 1152>}, {pipeline_mode = #tpu.pipeline_mode<synchronous>, transform_indices = @transform_1, window_bounds = array<i64: 1152, 128>}, {pipeline_mode = #tpu.pipeline_mode<synchronous>, transform_indices = @transform_2, window_bounds = array<i64: 1, 128>}, {transform_indices = @transform_3, window_bounds = array<i64: 16, 128>}]} {
    %c0 = arith.constant 0 : index
    %c0_0 = arith.constant 0 : index
    %0 = vector.load %arg1[%c0, %c0_0] : memref<16x1152xbf16, #tpu.memory_space<vmem>>, vector<16x1152xbf16>
    %c0_1 = arith.constant 0 : index
    %c0_2 = arith.constant 0 : index
    %1 = vector.load %arg2[%c0_1, %c0_2] : memref<1152x128xbf16, #tpu.memory_space<vmem>>, vector<1152x128xbf16>
    %cst = arith.constant dense<0.000000e+00> : vector<16x128xf32>
    %2 = tpu.matmul %0, %1, %cst {dimension_numbers = #tpu.dot_dimension_numbers<[1], [0], [0], [1], [0, 0, 1, 1], [], []>} : vector<16x1152xbf16>, vector<1152x128xbf16>, vector<16x128xf32> -> vector<16x128xf32>
    %c0_3 = arith.constant 0 : index
    %c0_4 = arith.constant 0 : index
    %3 = vector.load %arg3[%c0_3, %c0_4] : memref<1x128xf32, #tpu.memory_space<vmem>>, vector<1x128xf32>
    %4 = vector.broadcast %3 : vector<1x128xf32> to vector<16x128xf32>
    %5 = arith.addf %2, %4 : vector<16x128xf32>
    %cst_5 = arith.constant 0.000000e+00 : f32
    %6 = vector.broadcast %cst_5 : f32 to vector<16x128xf32>
    %7 = arith.subf %6, %5 : vector<16x128xf32>
    %8 = math.exp %7 : vector<16x128xf32>
    %cst_6 = arith.constant 1.000000e+00 : f32
    %9 = vector.broadcast %cst_6 : f32 to vector<16x128xf32>
    %10 = arith.addf %9, %8 : vector<16x128xf32>
    %cst_7 = arith.constant 1.000000e+00 : f32
    %11 = vector.broadcast %cst_7 : f32 to vector<16x128xf32>
    %12 = arith.divf %11, %10 : vector<16x128xf32>
    %c0_8 = arith.constant 0 : index
    %c0_9 = arith.constant 0 : index
    %13 = vector.load %arg4[%c0_8, %c0_9] : memref<16x128xf32, #tpu.memory_space<vmem>>, vector<16x128xf32>
    tpu.vector_store %arg4[%c0_8, %c0_9], %12 {strides = array<i32>} : memref<16x128xf32, #tpu.memory_space<vmem>>, vector<16x128xf32>,
    return
  }
  func.func @transform_0(%arg0: i32) -> (i32, i32) {
    %c0_i32 = arith.constant 0 : i32
    %c0_i32_0 = arith.constant 0 : i32
    return %arg0, %c0_i32 : i32, i32
  }
  func.func @transform_1(%arg0: i32) -> (i32, i32) {
    %c0_i32 = arith.constant 0 : i32
    %c0_i32_0 = arith.constant 0 : i32
    %c0_i32_1 = arith.constant 0 : i32
    return %c0_i32, %c0_i32_0 : i32, i32
  }
  func.func @transform_2(%arg0: i32) -> (i32, i32) {
    %c0_i32 = arith.constant 0 : i32
    %c0_i32_0 = arith.constant 0 : i32
    %c0_i32_1 = arith.constant 0 : i32
    return %c0_i32, %c0_i32_0 : i32, i32
  }
  func.func @transform_3(%arg0: i32) -> (i32, i32) {
    %c0_i32 = arith.constant 0 : i32
    %c0_i32_0 = arith.constant 0 : i32
    return %arg0, %c0_i32 : i32, i32
  }
}

</mosaic_0001>

<llo_original>
// kernel: discriminator_forward.8
$region0: #{discriminator_forward.8}
  #allocation0 [shape = 'u32[]', space=smem, size = 0x4, offset = 0x4, fixed_abs, tag = 'smem constant byte address 0x4 - core index']
  #allocation1 [shape = 'u32[72,128]{1,0:T(1,128)}', space=vmem, size = 0x9000, scoped, tag = 'internal scratch']
  %s0 = inlined_call_operand.vmem [shape: bf16[2048,25], index: 0, kind: input, shape index: {}]
  %s1 = inlined_call_operand.vmem [shape: bf16[25,128], index: 1, kind: input, shape index: {}]
  %s2 = inlined_call_operand.vmem [shape: f32[1,128], index: 2, kind: input, shape index: {}]
  %s3 = inlined_call_operand.vmem [shape: bf16[2048,128], index: 3, kind: output, shape index: {}]
  %s4 = sld [smem:[#allocation0]]
  $region45: #{discriminator_forward.8} parent=0
    _
  %s6 = ssub.s32 1, %s4
  %s7 = scalar_select 0, %s6, %s4
  loop: start=0, step=1, limit=10
  $region2: #{discriminator_forward.8} parent=0 // loop_pre_header
    _
  $region3: #{discriminator_forward.8} parent=0 // loop_header
    %s9 = sphi 0, %s13
    %p10 = scmp.ge.s32.totalorder %s9, 10
    %s19 = sphi 0, %s21
    %s22 = sphi 0, %s19
    %s23 = sphi 0, %s22
    %s39 = sphi 0, %s23
    %s43 = sphi 0, %s43
    %s45 = sphi 0, %s43
    %s46 = sphi 0, %s45
    %s60 = sphi 0, %s46
    %s64 = sphi 0, %s64
    %s66 = sphi 0, %s64
    %s67 = sphi 0, %s66
    %s81 = sphi 0, %s67
    %s87 = sphi 0, %s89
    %s90 = sphi 0, %s87
    %s91 = sphi 0, %s90
    %s107 = sphi 0, %s91
  $region4: #{discriminator_forward.8} parent=0 // loop_header_branch
    %12 = sbr.rel (%p10) target = $region8
  $region5: #{discriminator_forward.8} parent=0 // loop_body
    %s14 = ssub.s32 %s9, 1
    %s15 = ssub.s32 %s9, 2
    %s16 = sadd.s32 %s9, 1
    %s17 = ssub.s32 %s9, %s16
    %p18 = scmp.eq.s32.totalorder %s17, 0
    %s20 = sadd.s32 %s19, 1
    %s21 = scalar_select %p18, %s19, %s20
    %p24 = pneg %p18
    %p25 = scmp.eq.s32.totalorder %s9, 7
    %p26 = por %p24, %p25
    %p27 = scmp.ne.s32.totalorder %s19, %s22
    %p28 = scmp.eq.s32.totalorder %s9, 0
    %p29 = por %p27, %p28
    %p30 = scmp.ne.s32.totalorder %s19, %s22
    %p31 = scmp.eq.s32.totalorder %s14, 7
    %p32 = por %p30, %p31
    %p33 = scmp.ne.s32.totalorder %s22, %s23
    %p34 = scmp.eq.s32.totalorder %s14, 0
    %p35 = por %p33, %p34
    %p36 = scmp.ne.s32.totalorder %s22, %s23
    %p37 = scmp.eq.s32.totalorder %s15, 7
    %p38 = por %p36, %p37
    %p40 = scmp.ne.s32.totalorder %s23, %s39
    %p41 = scmp.eq.s32.totalorder %s15, 0
    %p42 = por %p40, %p41
    %s44 = sadd.s32 %s43, 1
    %p47 = scmp.eq.s32.totalorder %s9, 7
    %p48 = scmp.ne.s32.totalorder %s43, %s45
    %p49 = scmp.eq.s32.totalorder %s9, 0
    %p50 = por %p48, %p49
    %p51 = scmp.ne.s32.totalorder %s43, %s45
    %p52 = scmp.eq.s32.totalorder %s14, 7
    %p53 = por %p51, %p52
    %p54 = scmp.ne.s32.totalorder %s45, %s46
    %p55 = scmp.eq.s32.totalorder %s14, 0
    %p56 = por %p54, %p55
    %p57 = scmp.ne.s32.totalorder %s45, %s46
    %p58 = scmp.eq.s32.totalorder %s15, 7
    %p59 = por %p57, %p58
    %p61 = scmp.ne.s32.totalorder %s46, %s60
    %p62 = scmp.eq.s32.totalorder %s15, 0
    %p63 = por %p61, %p62
    %s65 = sadd.s32 %s64, 1
    %p68 = scmp.eq.s32.totalorder %s9, 7
    %p69 = scmp.ne.s32.totalorder %s64, %s66
    %p70 = scmp.eq.s32.totalorder %s9, 0
    %p71 = por %p69, %p70
    %p72 = scmp.ne.s32.totalorder %s64, %s66
    %p73 = scmp.eq.s32.totalorder %s14, 7
    %p74 = por %p72, %p73
    %p75 = scmp.ne.s32.totalorder %s66, %s67
    %p76 = scmp.eq.s32.totalorder %s14, 0
    %p77 = por %p75, %p76
    %p78 = scmp.ne.s32.totalorder %s66, %s67
    %p79 = scmp.eq.s32.totalorder %s15, 7
    %p80 = por %p78, %p79
    %p82 = scmp.ne.s32.totalorder %s67, %s81
    %p83 = scmp.eq.s32.totalorder %s15, 0
    %p84 = por %p82, %p83
    %s85 = ssub.s32 %s9, %s16
    %p86 = scmp.eq.s32.totalorder %s85, 0
    %s88 = sadd.s32 %s87, 1
    %s89 = scalar_select %p86, %s87, %s88
    %p92 = pneg %p86
    %p93 = scmp.eq.s32.totalorder %s9, 7
    %p94 = por %p92, %p93
    %p95 = scmp.ne.s32.totalorder %s87, %s90
    %p96 = scmp.eq.s32.totalorder %s9, 0
    %p97 = por %p95, %p96
    %p98 = scmp.ne.s32.totalorder %s87, %s90
    %p99 = scmp.eq.s32.totalorder %s14, 7
    %p100 = por %p98, %p99
    %p101 = scmp.ne.s32.totalorder %s90, %s91
    %p102 = scmp.eq.s32.totalorder %s14, 0
    %p103 = por %p101, %p102
    %p104 = scmp.ne.s32.totalorder %s90, %s91
    %p105 = scmp.eq.s32.totalorder %s15, 7
    %p106 = por %p104, %p105
    %p108 = scmp.ne.s32.totalorder %s91, %s107
    %p109 = scmp.eq.s32.totalorder %s15, 0
    %p110 = por %p108, %p109
    %p111 = scmp.le.s32.totalorder 1, %s9
    %p112 = scmp.lt.s32.totalorder %s9, 9
    %p113 = pnand %p111, %p112
    %p114 = pneg %p113
    // Predicated region
    $region9: #{discriminator_forward.8} parent=5 // pred_check
      _
    $region10: #{discriminator_forward.8} parent=5 // pred_check_branch
      %116 = sbr.rel (%p113) target = $region12
    $region11: #{discriminator_forward.8} parent=5 // pred_region
      %s117 = ssub.s32 %s9, 1
      // Predicated region
      $region13: #{discriminator_forward.8} parent=11 // pred_check
        %p118 = pneg %p56
      $region14: #{discriminator_forward.8} parent=11 // pred_check_branch
        %120 = sbr.rel (%p118) target = $region16
      $region15: #{discriminator_forward.8} parent=11 // pred_region
        _
      $region16: #{discriminator_forward.8} parent=11 // pred_fallthru
        _
      // Predicated region
      $region17: #{discriminator_forward.8} parent=11 // pred_check
        %p121 = pneg %p77
      $region18: #{discriminator_forward.8} parent=11 // pred_check_branch
        %123 = sbr.rel (%p121) target = $region20
      $region19: #{discriminator_forward.8} parent=11 // pred_region
        _
      $region20: #{discriminator_forward.8} parent=11 // pred_fallthru
        _
    $region12: #{discriminator_forward.8} parent=5 // pred_fallthru
      _
    %p124 = scmp.lt.s32.totalorder %s9, 8
    // Predicated region
    $region21: #{discriminator_forward.8} parent=5 // pred_check
      %p125 = pneg %p124
    $region22: #{discriminator_forward.8} parent=5 // pred_check_branch
      %127 = sbr.rel (%p125) target = $region24
    $region23: #{discriminator_forward.8} parent=5 // pred_region
      // Predicated region
      $region25: #{discriminator_forward.8} parent=23 // pred_check
        %p128 = pneg %p29
      $region26: #{discriminator_forward.8} parent=23 // pred_check_branch
        %130 = sbr.rel (%p128) target = $region28
      $region27: #{discriminator_forward.8} parent=23 // pred_region
        %s131 = smul.u32 32, %s9
        %p132 = scmp.lt.s32.totalorder %s131, 255
        %s133 = scalar_select %p132, %s131, 255
        %s134 = smul.addr %s133, 4
        %s135 = scalar_lea.vmem %s0, %s134
        %s136 = smul.u32 32, %s9
      $region28: #{discriminator_forward.8} parent=23 // pred_fallthru
        _
    $region24: #{discriminator_forward.8} parent=5 // pred_fallthru
      _
    %p137 = scmp.le.s32.totalorder 1, %s9
    %p138 = scmp.lt.s32.totalorder %s9, 9
    %p139 = pnand %p137, %p138
    %p140 = pneg %p139
    // Predicated region
    $region29: #{discriminator_forward.8} parent=5 // pred_check
      _
    $region30: #{discriminator_forward.8} parent=5 // pred_check_branch
      %142 = sbr.rel (%p139) target = $region32
    $region31: #{discriminator_forward.8} parent=5 // pred_region
      %s143 = ssub.s32 %s9, 1
      %s144 = smul.u32 32, %s14
      %p145 = scmp.lt.s32.totalorder %s144, 255
      %s146 = scalar_select %p145, %s144, 255
      %s147 = smul.addr %s146, 4
      %s148 = scalar_lea.vmem %s0, %s147
      %p149 = pneg %p35
      %p150 = pneg %p32
      %p151 = pneg %p56
      %p152 = pneg %p53
      %p153 = pneg %p77
      %p154 = pneg %p74
      %p155 = pneg %p103
      %p156 = pneg %p100
      %s157 = smul.u32 32, %s14
      %p158 = scmp.lt.s32.totalorder %s157, 255
      %s159 = scalar_select %p158, %s157, 255
      %s160 = smul.addr %s159, 4
      %s161 = scalar_lea.vmem %s3, %s160
      %s162 = smul.u32 32, %s14
      %p163 = scmp.lt.s32.totalorder %s162, 255
      %s164 = scalar_select %p163, %s162, 255
      %s165 = smul.addr %s164, 4
      %s166 = scalar_lea.vmem %s0, %s165
      %s167 = smul.u32 32, %s14
      %s168 = smul.u32 32, %s14
      %p169 = scmp.lt.s32.totalorder %s168, 255
      %s170 = scalar_select %p169, %s168, 255
      %s171 = smul.addr %s170, 4
      %s172 = scalar_lea.vmem %s3, %s171
      %s173 = smul.u32 32, %s14
      %v175 = vld [vmem:[%s166] sm:$0xf]
      %v176 = vld [vmem:[%s166 + $0x4] sm:$0xf]
      %v177 = vld [vmem:[%s166 + $0x8] sm:$0xf]
      %v178 = vld [vmem:[%s166 + $0xc] sm:$0xf]
      %v179 = vld [vmem:[%s166 + $0x10] sm:$0xf]
      %v180 = vld [vmem:[%s166 + $0x14] sm:$0xf]
      %v181 = vld [vmem:[%s166 + $0x18] sm:$0xf]
      %v182 = vld [vmem:[%s166 + $0x1c] sm:$0xf]
      %v183 = vld [vmem:[%s166 + $0x20] sm:$0xf]
      %v184 = vld [vmem:[%s166 + $0x24] sm:$0xf]
      %v185 = vld [vmem:[%s166 + $0x28] sm:$0xf]
      %v186 = vld [vmem:[%s166 + $0x2c] sm:$0xf]
      %v187 = vld [vmem:[%s166 + $0x30] sm:$0xf]
      %v188 = vld [vmem:[%s166 + $0x34] sm:$0xf]
      %v189 = vld [vmem:[%s166 + $0x38] sm:$0xf]
      %v190 = vld [vmem:[%s166 + $0x3c] sm:$0xf]
      %v191 = vld [vmem:[%s166 + $0x40] sm:$0xf]
      %v192 = vld [vmem:[%s166 + $0x44] sm:$0xf]
      %v193 = vld [vmem:[%s166 + $0x48] sm:$0xf]
      %v194 = vld [vmem:[%s166 + $0x4c] sm:$0xf]
      %v195 = vld [vmem:[%s166 + $0x50] sm:$0xf]
      %v196 = vld [vmem:[%s166 + $0x54] sm:$0xf]
      %v197 = vld [vmem:[%s166 + $0x58] sm:$0xf]
      %v198 = vld [vmem:[%s166 + $0x5c] sm:$0xf]
      %v199 = vld [vmem:[%s166 + $0x60] sm:$0xf]
      %v200 = vld [vmem:[%s166 + $0x64] sm:$0xf]
      %v201 = vld [vmem:[%s166 + $0x68] sm:$0xf]
      %v202 = vld [vmem:[%s166 + $0x6c] sm:$0xf]
      %v203 = vld [vmem:[%s166 + $0x70] sm:$0xf]
      %v204 = vld [vmem:[%s166 + $0x74] sm:$0xf]
      %v205 = vld [vmem:[%s166 + $0x78] sm:$0xf]
      %v206 = vld [vmem:[%s166 + $0x7c] sm:$0xf]
      %v207 = vld [vmem:[%s1] sm:$0xf]
      %v208 = vld [vmem:[%s1 + $0x4] sm:$0xf]
      %v209 = vld [vmem:[%s1 + $0x8] sm:$0xf]
      %v210 = vld [vmem:[%s1 + $0xc] sm:$0x1]
      %v211 = vld [vmem:[%s2] sm:$0x1]
      %v213 = vperm.slane %v211, 0
      %v247 = vunpack.c.l.b16 %v175
      %v248 = vunpack.c.l.b16 %v176
      %v249 = vunpack.c.l.b16 %v177
      %v250 = vunpack.c.l.b16 %v178
      %v251 = vunpack.c.l.b16 %v179
      %v252 = vunpack.c.l.b16 %v180
      %v253 = vunpack.c.l.b16 %v181
      %v254 = vunpack.c.l.b16 %v182
      %v255 = vunpack.c.l.b16 %v183
      %v256 = vunpack.c.l.b16 %v184
      %v257 = vunpack.c.l.b16 %v185
      %v258 = vunpack.c.l.b16 %v186
      %v259 = vunpack.c.l.b16 %v187
      %v260 = vunpack.c.l.b16 %v188
      %v261 = vunpack.c.l.b16 %v189
      %v262 = vunpack.c.l.b16 %v190
      %v263 = vunpack.c.l.b16 %v191
      %v264 = vunpack.c.l.b16 %v192
      %v265 = vunpack.c.l.b16 %v193
      %v266 = vunpack.c.l.b16 %v194
      %v267 = vunpack.c.l.b16 %v195
      %v268 = vunpack.c.l.b16 %v196
      %v269 = vunpack.c.l.b16 %v197
      %v270 = vunpack.c.l.b16 %v198
      %v271 = vunpack.c.l.b16 %v199
      %v272 = vunpack.c.l.b16 %v200
      %v273 = vunpack.c.l.b16 %v201
      %v274 = vunpack.c.l.b16 %v202
      %v275 = vunpack.c.l.b16 %v203
      %v276 = vunpack.c.l.b16 %v204
      %v277 = vunpack.c.l.b16 %v205
      %v278 = vunpack.c.l.b16 %v206
      %v279 = vpack.c.b16 %v248, %v247
      %v280 = vpack.c.b16 %v250, %v249
      %v281 = vpack.c.b16 %v252, %v251
      %v282 = vpack.c.b16 %v254, %v253
      %v283 = vpack.c.b16 %v256, %v255
      %v284 = vpack.c.b16 %v258, %v257
      %v285 = vpack.c.b16 %v260, %v259
      %v286 = vpack.c.b16 %v262, %v261
      %v287 = vpack.c.b16 %v264, %v263
      %v288 = vpack.c.b16 %v266, %v265
      %v289 = vpack.c.b16 %v268, %v267
      %v290 = vpack.c.b16 %v270, %v269
      %v291 = vpack.c.b16 %v272, %v271
      %v292 = vpack.c.b16 %v274, %v273
      %v293 = vpack.c.b16 %v276, %v275
      %v294 = vpack.c.b16 %v278, %v277
      %v299 = vunpack.c.l.b16 %v207
      %v300 = vunpack.c.l.b16 %v208
      %v301 = vunpack.c.l.b16 %v209
      %v302 = vunpack.c.l.b16 %v210
      %v303 = vpack.c.b16 %v300, %v299
      %v304 = vpack.c.b16 %v302, %v301
      %vm306 = vcmask 203776
      %v308 = vsel %vm306, %v279, 0
      %v311 = vsel %vm306, %v280, 0
      %v314 = vsel %vm306, %v281, 0
      %v317 = vsel %vm306, %v282, 0
      %v320 = vsel %vm306, %v283, 0
      %v323 = vsel %vm306, %v284, 0
      %v326 = vsel %vm306, %v285, 0
      %v329 = vsel %vm306, %v286, 0
      %v332 = vsel %vm306, %v287, 0
      %v335 = vsel %vm306, %v288, 0
      %v338 = vsel %vm306, %v289, 0
      %v341 = vsel %vm306, %v290, 0
      %v344 = vsel %vm306, %v291, 0
      %v347 = vsel %vm306, %v292, 0
      %v350 = vsel %vm306, %v293, 0
      %v353 = vsel %vm306, %v294, 0
      %vm355 = vcmask 1043456
      %vm356 = vcmask 1044480
      %v357 = vsel %vm355, 4294967295, 65535
      %v358 = vsel %vm356, %v357, 0
      %v360 = vand.u32 %v304, %v358
      %362 = vmatpush.bf16.msra.mxu0 0
      %363 = vmatpush.bf16.msra.mxu0 0
      %364 = vmatpush.bf16.msra.mxu0 0
      %365 = vmatpush.bf16.msra.mxu0 0
      %366 = vmatpush.bf16.msra.mxu0 0
      %367 = vmatpush.bf16.msra.mxu0 0
      %368 = vmatpush.bf16.msra.mxu0 %v360
      %369 = vmatpush.bf16.msra.mxu0 %v303
      %370 = vmatmul.bf16.gmra.mxu0 %v308
      %v371 = vpop.f32.mrf.mxu0
      %v372 = vadd.f32 %v213, %v371
      %v373 = vpop.f32.mrf.mxu0
      %v374 = vadd.f32 %v213, %v373
      %375 = vmatmul.bf16.gmra.mxu0 %v311
      %v376 = vpop.f32.mrf.mxu0
      %v377 = vadd.f32 %v213, %v376
      %v378 = vpop.f32.mrf.mxu0
      %v379 = vadd.f32 %v213, %v378
      %380 = vmatmul.bf16.gmra.mxu0 %v314
      %v381 = vpop.f32.mrf.mxu0
      %v382 = vadd.f32 %v213, %v381
      %v383 = vpop.f32.mrf.mxu0
      %v384 = vadd.f32 %v213, %v383
      %385 = vmatmul.bf16.gmra.mxu0 %v317
      %v386 = vpop.f32.mrf.mxu0
      %v387 = vadd.f32 %v213, %v386
      %v388 = vpop.f32.mrf.mxu0
      %v389 = vadd.f32 %v213, %v388
      %390 = vmatmul.bf16.gmra.mxu0 %v320
      %v391 = vpop.f32.mrf.mxu0
      %v392 = vadd.f32 %v213, %v391
      %v393 = vpop.f32.mrf.mxu0
      %v394 = vadd.f32 %v213, %v393
      %395 = vmatmul.bf16.gmra.mxu0 %v323
      %v396 = vpop.f32.mrf.mxu0
      %v397 = vadd.f32 %v213, %v396
      %v398 = vpop.f32.mrf.mxu0
      %v399 = vadd.f32 %v213, %v398
      %400 = vmatmul.bf16.gmra.mxu0 %v326
      %v401 = vpop.f32.mrf.mxu0
      %v402 = vadd.f32 %v213, %v401
      %v403 = vpop.f32.mrf.mxu0
      %v404 = vadd.f32 %v213, %v403
      %405 = vmatmul.bf16.gmra.mxu0 %v329
      %v406 = vpop.f32.mrf.mxu0
      %v407 = vadd.f32 %v213, %v406
      %v408 = vpop.f32.mrf.mxu0
      %v409 = vadd.f32 %v213, %v408
      %410 = vmatmul.bf16.gmra.mxu0 %v332
      %v411 = vpop.f32.mrf.mxu0
      %v412 = vadd.f32 %v213, %v411
      %v413 = vpop.f32.mrf.mxu0
      %v414 = vadd.f32 %v213, %v413
      %415 = vmatmul.bf16.gmra.mxu0 %v335
      %v416 = vpop.f32.mrf.mxu0
      %v417 = vadd.f32 %v213, %v416
      %v418 = vpop.f32.mrf.mxu0
      %v419 = vadd.f32 %v213, %v418
      %420 = vmatmul.bf16.gmra.mxu0 %v338
      %v421 = vpop.f32.mrf.mxu0
      %v422 = vadd.f32 %v213, %v421
      %v423 = vpop.f32.mrf.mxu0
      %v424 = vadd.f32 %v213, %v423
      %425 = vmatmul.bf16.gmra.mxu0 %v341
      %v426 = vpop.f32.mrf.mxu0
      %v427 = vadd.f32 %v213, %v426
      %v428 = vpop.f32.mrf.mxu0
      %v429 = vadd.f32 %v213, %v428
      %430 = vmatmul.bf16.gmra.mxu0 %v344
      %v431 = vpop.f32.mrf.mxu0
      %v432 = vadd.f32 %v213, %v431
      %v433 = vpop.f32.mrf.mxu0
      %v434 = vadd.f32 %v213, %v433
      %435 = vmatmul.bf16.gmra.mxu0 %v347
      %v436 = vpop.f32.mrf.mxu0
      %v437 = vadd.f32 %v213, %v436
      %v438 = vpop.f32.mrf.mxu0
      %v439 = vadd.f32 %v213, %v438
      %440 = vmatmul.bf16.gmra.mxu0 %v350
      %v441 = vpop.f32.mrf.mxu0
      %v442 = vadd.f32 %v213, %v441
      %v443 = vpop.f32.mrf.mxu0
      %v444 = vadd.f32 %v213, %v443
      %445 = vmatmul.bf16.gmra.mxu0 %v353
      %v446 = vpop.f32.mrf.mxu0
      %v447 = vadd.f32 %v213, %v446
      %v448 = vpop.f32.mrf.mxu0
      %v449 = vadd.f32 %v213, %v448
      %450 = vdwg.mxu0
      %vm451 = vcmp.ge.f32.partialorder %v372, 0.0
      %vm452 = vcmp.ge.f32.partialorder %v374, 0.0
      %vm453 = vcmp.ge.f32.partialorder %v377, 0.0
      %vm454 = vcmp.ge.f32.partialorder %v379, 0.0
      %vm455 = vcmp.ge.f32.partialorder %v382, 0.0
      %vm456 = vcmp.ge.f32.partialorder %v384, 0.0
      %vm457 = vcmp.ge.f32.partialorder %v387, 0.0
      %vm458 = vcmp.ge.f32.partialorder %v389, 0.0
      %vm459 = vcmp.ge.f32.partialorder %v392, 0.0
      %vm460 = vcmp.ge.f32.partialorder %v394, 0.0
      %vm461 = vcmp.ge.f32.partialorder %v397, 0.0
      %vm462 = vcmp.ge.f32.partialorder %v399, 0.0
      %vm463 = vcmp.ge.f32.partialorder %v402, 0.0
      %vm464 = vcmp.ge.f32.partialorder %v404, 0.0
      %vm465 = vcmp.ge.f32.partialorder %v407, 0.0
      %vm466 = vcmp.ge.f32.partialorder %v409, 0.0
      %vm467 = vcmp.ge.f32.partialorder %v412, 0.0
      %vm468 = vcmp.ge.f32.partialorder %v414, 0.0
      %vm469 = vcmp.ge.f32.partialorder %v417, 0.0
      %vm470 = vcmp.ge.f32.partialorder %v419, 0.0
      %vm471 = vcmp.ge.f32.partialorder %v422, 0.0
      %vm472 = vcmp.ge.f32.partialorder %v424, 0.0
      %vm473 = vcmp.ge.f32.partialorder %v427, 0.0
      %vm474 = vcmp.ge.f32.partialorder %v429, 0.0
      %vm475 = vcmp.ge.f32.partialorder %v432, 0.0
      %vm476 = vcmp.ge.f32.partialorder %v434, 0.0
      %vm477 = vcmp.ge.f32.partialorder %v437, 0.0
      %vm478 = vcmp.ge.f32.partialorder %v439, 0.0
      %vm479 = vcmp.ge.f32.partialorder %v442, 0.0
      %vm480 = vcmp.ge.f32.partialorder %v444, 0.0
      %vm481 = vcmp.ge.f32.partialorder %v447, 0.0
      %vm482 = vcmp.ge.f32.partialorder %v449, 0.0
      %v483 = vmul.f32 %v372, 0.2
      %v484 = vmul.f32 %v374, 0.2
      %v485 = vmul.f32 %v377, 0.2
      %v486 = vmul.f32 %v379, 0.2
      %v487 = vmul.f32 %v382, 0.2
      %v488 = vmul.f32 %v384, 0.2
      %v489 = vmul.f32 %v387, 0.2
      %v490 = vmul.f32 %v389, 0.2
      %v491 = vmul.f32 %v392, 0.2
      %v492 = vmul.f32 %v394, 0.2
      %v493 = vmul.f32 %v397, 0.2
      %v494 = vmul.f32 %v399, 0.2
      %v495 = vmul.f32 %v402, 0.2
      %v496 = vmul.f32 %v404, 0.2
      %v497 = vmul.f32 %v407, 0.2
      %v498 = vmul.f32 %v409, 0.2
      %v499 = vmul.f32 %v412, 0.2
      %v500 = vmul.f32 %v414, 0.2
      %v501 = vmul.f32 %v417, 0.2
      %v502 = vmul.f32 %v419, 0.2
      %v503 = vmul.f32 %v422, 0.2
      %v504 = vmul.f32 %v424, 0.2
      %v505 = vmul.f32 %v427, 0.2
      %v506 = vmul.f32 %v429, 0.2
      %v507 = vmul.f32 %v432, 0.2
      %v508 = vmul.f32 %v434, 0.2
      %v509 = vmul.f32 %v437, 0.2
      %v510 = vmul.f32 %v439, 0.2
      %v511 = vmul.f32 %v442, 0.2
      %v512 = vmul.f32 %v444, 0.2
      %v513 = vmul.f32 %v447, 0.2
      %v514 = vmul.f32 %v449, 0.2
      %v515 = vsel %vm451, %v372, %v483
      %v516 = vsel %vm452, %v374, %v484
      %v517 = vsel %vm453, %v377, %v485
      %v518 = vsel %vm454, %v379, %v486
      %v519 = vsel %vm455, %v382, %v487
      %v520 = vsel %vm456, %v384, %v488
      %v521 = vsel %vm457, %v387, %v489
      %v522 = vsel %vm458, %v389, %v490
      %v523 = vsel %vm459, %v392, %v491
      %v524 = vsel %vm460, %v394, %v492
      %v525 = vsel %vm461, %v397, %v493
      %v526 = vsel %vm462, %v399, %v494
      %v527 = vsel %vm463, %v402, %v495
      %v528 = vsel %vm464, %v404, %v496
      %v529 = vsel %vm465, %v407, %v497
      %v530 = vsel %vm466, %v409, %v498
      %v531 = vsel %vm467, %v412, %v499
      %v532 = vsel %vm468, %v414, %v500
      %v533 = vsel %vm469, %v417, %v501
      %v534 = vsel %vm470, %v419, %v502
      %v535 = vsel %vm471, %v422, %v503
      %v536 = vsel %vm472, %v424, %v504
      %v537 = vsel %vm473, %v427, %v505
      %v538 = vsel %vm474, %v429, %v506
      %v539 = vsel %vm475, %v432, %v507
      %v540 = vsel %vm476, %v434, %v508
      %v541 = vsel %vm477, %v437, %v509
      %v542 = vsel %vm478, %v439, %v510
      %v543 = vsel %vm479, %v442, %v511
      %v544 = vsel %vm480, %v444, %v512
      %v545 = vsel %vm481, %v447, %v513
      %v546 = vsel %vm482, %v449, %v514
      %v547 = vpack.c.bf16 %v515, %v515
      %v548 = vpack.c.bf16 %v516, %v516
      %v549 = vpack.c.bf16 %v517, %v517
      %v550 = vpack.c.bf16 %v518, %v518
      %v551 = vpack.c.bf16 %v519, %v519
      %v552 = vpack.c.bf16 %v520, %v520
      %v553 = vpack.c.bf16 %v521, %v521
      %v554 = vpack.c.bf16 %v522, %v522
      %v555 = vpack.c.bf16 %v523, %v523
      %v556 = vpack.c.bf16 %v524, %v524
      %v557 = vpack.c.bf16 %v525, %v525
      %v558 = vpack.c.bf16 %v526, %v526
      %v559 = vpack.c.bf16 %v527, %v527
      %v560 = vpack.c.bf16 %v528, %v528
      %v561 = vpack.c.bf16 %v529, %v529
      %v562 = vpack.c.bf16 %v530, %v530
      %v563 = vpack.c.bf16 %v531, %v531
      %v564 = vpack.c.bf16 %v532, %v532
      %v565 = vpack.c.bf16 %v533, %v533
      %v566 = vpack.c.bf16 %v534, %v534
      %v567 = vpack.c.bf16 %v535, %v535
      %v568 = vpack.c.bf16 %v536, %v536
      %v569 = vpack.c.bf16 %v537, %v537
      %v570 = vpack.c.bf16 %v538, %v538
      %v571 = vpack.c.bf16 %v539, %v539
      %v572 = vpack.c.bf16 %v540, %v540
      %v573 = vpack.c.bf16 %v541, %v541
      %v574 = vpack.c.bf16 %v542, %v542
      %v575 = vpack.c.bf16 %v543, %v543
      %v576 = vpack.c.bf16 %v544, %v544
      %v577 = vpack.c.bf16 %v545, %v545
      %v578 = vpack.c.bf16 %v546, %v546
      %579 = vst [vmem:[%s172] sm:$0xf] %v547
      %580 = vst [vmem:[%s172 + $0x4] sm:$0xf] %v548
      %581 = vst [vmem:[%s172 + $0x8] sm:$0xf] %v549
      %582 = vst [vmem:[%s172 + $0xc] sm:$0xf] %v550
      %583 = vst [vmem:[%s172 + $0x10] sm:$0xf] %v551
      %584 = vst [vmem:[%s172 + $0x14] sm:$0xf] %v552
      %585 = vst [vmem:[%s172 + $0x18] sm:$0xf] %v553
      %586 = vst [vmem:[%s172 + $0x1c] sm:$0xf] %v554
      %587 = vst [vmem:[%s172 + $0x20] sm:$0xf] %v555
      %588 = vst [vmem:[%s172 + $0x24] sm:$0xf] %v556
      %589 = vst [vmem:[%s172 + $0x28] sm:$0xf] %v557
      %590 = vst [vmem:[%s172 + $0x2c] sm:$0xf] %v558
      %591 = vst [vmem:[%s172 + $0x30] sm:$0xf] %v559
      %592 = vst [vmem:[%s172 + $0x34] sm:$0xf] %v560
      %593 = vst [vmem:[%s172 + $0x38] sm:$0xf] %v561
      %594 = vst [vmem:[%s172 + $0x3c] sm:$0xf] %v562
      %595 = vst [vmem:[%s172 + $0x40] sm:$0xf] %v563
      %596 = vst [vmem:[%s172 + $0x44] sm:$0xf] %v564
      %597 = vst [vmem:[%s172 + $0x48] sm:$0xf] %v565
      %598 = vst [vmem:[%s172 + $0x4c] sm:$0xf] %v566
      %599 = vst [vmem:[%s172 + $0x50] sm:$0xf] %v567
      %600 = vst [vmem:[%s172 + $0x54] sm:$0xf] %v568
      %601 = vst [vmem:[%s172 + $0x58] sm:$0xf] %v569
      %602 = vst [vmem:[%s172 + $0x5c] sm:$0xf] %v570
      %603 = vst [vmem:[%s172 + $0x60] sm:$0xf] %v571
      %604 = vst [vmem:[%s172 + $0x64] sm:$0xf] %v572
      %605 = vst [vmem:[%s172 + $0x68] sm:$0xf] %v573
      %606 = vst [vmem:[%s172 + $0x6c] sm:$0xf] %v574
      %607 = vst [vmem:[%s172 + $0x70] sm:$0xf] %v575
      %608 = vst [vmem:[%s172 + $0x74] sm:$0xf] %v576
      %609 = vst [vmem:[%s172 + $0x78] sm:$0xf] %v577
      %610 = vst [vmem:[%s172 + $0x7c] sm:$0xf] %v578
      %s611 = smul.u32 32, %s14
      %p612 = scmp.lt.s32.totalorder %s611, 255
      %s613 = scalar_select %p612, %s611, 255
      %s614 = smul.addr %s613, 4
      %s615 = scalar_lea.vmem %s3, %s614
      // Predicated region
      $region33: #{discriminator_forward.8} parent=31 // pred_check
        %p616 = pneg %p100
      $region34: #{discriminator_forward.8} parent=31 // pred_check_branch
        %618 = sbr.rel (%p616) target = $region36
      $region35: #{discriminator_forward.8} parent=31 // pred_region
        %s619 = smul.u32 32, %s14
      $region36: #{discriminator_forward.8} parent=31 // pred_fallthru
        _
    $region32: #{discriminator_forward.8} parent=5 // pred_fallthru
      _
    %p620 = scmp.le.s32.totalorder 2, %s9
    // Predicated region
    $region37: #{discriminator_forward.8} parent=5 // pred_check
      %p621 = pneg %p620
    $region38: #{discriminator_forward.8} parent=5 // pred_check_branch
      %623 = sbr.rel (%p621) target = $region40
    $region39: #{discriminator_forward.8} parent=5 // pred_region
      %s624 = ssub.s32 %s9, 2
      // Predicated region
      $region41: #{discriminator_forward.8} parent=39 // pred_check
        %p625 = pneg %p106
      $region42: #{discriminator_forward.8} parent=39 // pred_check_branch
        %627 = sbr.rel (%p625) target = $region44
      $region43: #{discriminator_forward.8} parent=39 // pred_region
        %s628 = smul.u32 32, %s15
        %p629 = scmp.lt.s32.totalorder %s628, 255
        %s630 = scalar_select %p629, %s628, 255
        %s631 = smul.addr %s630, 4
        %s632 = scalar_lea.vmem %s3, %s631
      $region44: #{discriminator_forward.8} parent=39 // pred_fallthru
        _
    $region40: #{discriminator_forward.8} parent=5 // pred_fallthru
      _
  $region6: #{discriminator_forward.8} parent=0 // loop_footer
    %s13 = sadd.s32 1, %s9
  $region7: #{discriminator_forward.8} parent=0 // loop_footer_branch
    %8 = sbr.rel target = $region3
  $region8: #{discriminator_forward.8} parent=0 // loop_exit
    _

// kernel: discriminator_forward.10
$region0: #{discriminator_forward.10}
  #allocation0 [shape = 'u32[]', space=smem, size = 0x4, offset = 0x4, fixed_abs, tag = 'smem constant byte address 0x4 - core index']
  #allocation1 [shape = 'u32[72,128]{1,0:T(1,128)}', space=vmem, size = 0x9000, scoped, tag = 'internal scratch']
  %s0 = inlined_call_operand.vmem [shape: f32[512,128], index: 0, kind: input, shape index: {}]
  %s1 = inlined_call_operand.vmem [shape: f32[1,128], index: 1, kind: input, shape index: {}]
  %s2 = inlined_call_operand.vmem [shape: f32[1,128], index: 2, kind: input, shape index: {}]
  %s3 = inlined_call_operand.vmem [shape: bf16[512,128], index: 3, kind: output, shape index: {}]
  %s4 = sld [smem:[#allocation0]]
  $region45: #{discriminator_forward.10} parent=0
    _
  %s6 = ssub.s32 1, %s4
  %s7 = scalar_select 0, %s6, %s4
  loop: start=0, step=1, limit=4
  $region2: #{discriminator_forward.10} parent=0 // loop_pre_header
    _
  $region3: #{discriminator_forward.10} parent=0 // loop_header
    %s9 = sphi 0, %s13
    %p10 = scmp.ge.s32.totalorder %s9, 4
    %s19 = sphi 0, %s21
    %s22 = sphi 0, %s19
    %s23 = sphi 0, %s22
    %s39 = sphi 0, %s23
    %s43 = sphi 0, %s43
    %s45 = sphi 0, %s43
    %s46 = sphi 0, %s45
    %s60 = sphi 0, %s46
    %s64 = sphi 0, %s64
    %s66 = sphi 0, %s64
    %s67 = sphi 0, %s66
    %s81 = sphi 0, %s67
    %s87 = sphi 0, %s89
    %s90 = sphi 0, %s87
    %s91 = sphi 0, %s90
    %s107 = sphi 0, %s91
  $region4: #{discriminator_forward.10} parent=0 // loop_header_branch
    %12 = sbr.rel (%p10) target = $region8
  $region5: #{discriminator_forward.10} parent=0 // loop_body
    %s14 = ssub.s32 %s9, 1
    %s15 = ssub.s32 %s9, 2
    %s16 = sadd.s32 %s9, 1
    %s17 = ssub.s32 %s9, %s16
    %p18 = scmp.eq.s32.totalorder %s17, 0
    %s20 = sadd.s32 %s19, 1
    %s21 = scalar_select %p18, %s19, %s20
    %p24 = pneg %p18
    %p25 = scmp.eq.s32.totalorder %s9, 1
    %p26 = por %p24, %p25
    %p27 = scmp.ne.s32.totalorder %s19, %s22
    %p28 = scmp.eq.s32.totalorder %s9, 0
    %p29 = por %p27, %p28
    %p30 = scmp.ne.s32.totalorder %s19, %s22
    %p31 = scmp.eq.s32.totalorder %s14, 1
    %p32 = por %p30, %p31
    %p33 = scmp.ne.s32.totalorder %s22, %s23
    %p34 = scmp.eq.s32.totalorder %s14, 0
    %p35 = por %p33, %p34
    %p36 = scmp.ne.s32.totalorder %s22, %s23
    %p37 = scmp.eq.s32.totalorder %s15, 1
    %p38 = por %p36, %p37
    %p40 = scmp.ne.s32.totalorder %s23, %s39
    %p41 = scmp.eq.s32.totalorder %s15, 0
    %p42 = por %p40, %p41
    %s44 = sadd.s32 %s43, 1
    %p47 = scmp.eq.s32.totalorder %s9, 1
    %p48 = scmp.ne.s32.totalorder %s43, %s45
    %p49 = scmp.eq.s32.totalorder %s9, 0
    %p50 = por %p48, %p49
    %p51 = scmp.ne.s32.totalorder %s43, %s45
    %p52 = scmp.eq.s32.totalorder %s14, 1
    %p53 = por %p51, %p52
    %p54 = scmp.ne.s32.totalorder %s45, %s46
    %p55 = scmp.eq.s32.totalorder %s14, 0
    %p56 = por %p54, %p55
    %p57 = scmp.ne.s32.totalorder %s45, %s46
    %p58 = scmp.eq.s32.totalorder %s15, 1
    %p59 = por %p57, %p58
    %p61 = scmp.ne.s32.totalorder %s46, %s60
    %p62 = scmp.eq.s32.totalorder %s15, 0
    %p63 = por %p61, %p62
    %s65 = sadd.s32 %s64, 1
    %p68 = scmp.eq.s32.totalorder %s9, 1
    %p69 = scmp.ne.s32.totalorder %s64, %s66
    %p70 = scmp.eq.s32.totalorder %s9, 0
    %p71 = por %p69, %p70
    %p72 = scmp.ne.s32.totalorder %s64, %s66
    %p73 = scmp.eq.s32.totalorder %s14, 1
    %p74 = por %p72, %p73
    %p75 = scmp.ne.s32.totalorder %s66, %s67
    %p76 = scmp.eq.s32.totalorder %s14, 0
    %p77 = por %p75, %p76
    %p78 = scmp.ne.s32.totalorder %s66, %s67
    %p79 = scmp.eq.s32.totalorder %s15, 1
    %p80 = por %p78, %p79
    %p82 = scmp.ne.s32.totalorder %s67, %s81
    %p83 = scmp.eq.s32.totalorder %s15, 0
    %p84 = por %p82, %p83
    %s85 = ssub.s32 %s9, %s16
    %p86 = scmp.eq.s32.totalorder %s85, 0
    %s88 = sadd.s32 %s87, 1
    %s89 = scalar_select %p86, %s87, %s88
    %p92 = pneg %p86
    %p93 = scmp.eq.s32.totalorder %s9, 1
    %p94 = por %p92, %p93
    %p95 = scmp.ne.s32.totalorder %s87, %s90
    %p96 = scmp.eq.s32.totalorder %s9, 0
    %p97 = por %p95, %p96
    %p98 = scmp.ne.s32.totalorder %s87, %s90
    %p99 = scmp.eq.s32.totalorder %s14, 1
    %p100 = por %p98, %p99
    %p101 = scmp.ne.s32.totalorder %s90, %s91
    %p102 = scmp.eq.s32.totalorder %s14, 0
    %p103 = por %p101, %p102
    %p104 = scmp.ne.s32.totalorder %s90, %s91
    %p105 = scmp.eq.s32.totalorder %s15, 1
    %p106 = por %p104, %p105
    %p108 = scmp.ne.s32.totalorder %s91, %s107
    %p109 = scmp.eq.s32.totalorder %s15, 0
    %p110 = por %p108, %p109
    %p111 = scmp.le.s32.totalorder 1, %s9
    %p112 = scmp.lt.s32.totalorder %s9, 3
    %p113 = pnand %p111, %p112
    %p114 = pneg %p113
    // Predicated region
    $region9: #{discriminator_forward.10} parent=5 // pred_check
      _
    $region10: #{discriminator_forward.10} parent=5 // pred_check_branch
      %116 = sbr.rel (%p113) target = $region12
    $region11: #{discriminator_forward.10} parent=5 // pred_region
      %s117 = ssub.s32 %s9, 1
      // Predicated region
      $region13: #{discriminator_forward.10} parent=11 // pred_check
        %p118 = pneg %p56
      $region14: #{discriminator_forward.10} parent=11 // pred_check_branch
        %120 = sbr.rel (%p118) target = $region16
      $region15: #{discriminator_forward.10} parent=11 // pred_region
        _
      $region16: #{discriminator_forward.10} parent=11 // pred_fallthru
        _
      // Predicated region
      $region17: #{discriminator_forward.10} parent=11 // pred_check
        %p121 = pneg %p77
      $region18: #{discriminator_forward.10} parent=11 // pred_check_branch
        %123 = sbr.rel (%p121) target = $region20
      $region19: #{discriminator_forward.10} parent=11 // pred_region
        _
      $region20: #{discriminator_forward.10} parent=11 // pred_fallthru
        _
    $region12: #{discriminator_forward.10} parent=5 // pred_fallthru
      _
    %p124 = scmp.lt.s32.totalorder %s9, 2
    // Predicated region
    $region21: #{discriminator_forward.10} parent=5 // pred_check
      %p125 = pneg %p124
    $region22: #{discriminator_forward.10} parent=5 // pred_check_branch
      %127 = sbr.rel (%p125) target = $region24
    $region23: #{discriminator_forward.10} parent=5 // pred_region
      // Predicated region
      $region25: #{discriminator_forward.10} parent=23 // pred_check
        %p128 = pneg %p29
      $region26: #{discriminator_forward.10} parent=23 // pred_check_branch
        %130 = sbr.rel (%p128) target = $region28
      $region27: #{discriminator_forward.10} parent=23 // pred_region
        %s131 = smul.u32 32, %s9
        %p132 = scmp.lt.s32.totalorder %s131, 63
        %s133 = scalar_select %p132, %s131, 63
        %s134 = smul.addr %s133, 8
        %s135 = scalar_lea.vmem %s0, %s134
        %s136 = smul.u32 32, %s9
      $region28: #{discriminator_forward.10} parent=23 // pred_fallthru
        _
    $region24: #{discriminator_forward.10} parent=5 // pred_fallthru
      _
    %p137 = scmp.le.s32.totalorder 1, %s9
    %p138 = scmp.lt.s32.totalorder %s9, 3
    %p139 = pnand %p137, %p138
    %p140 = pneg %p139
    // Predicated region
    $region29: #{discriminator_forward.10} parent=5 // pred_check
      _
    $region30: #{discriminator_forward.10} parent=5 // pred_check_branch
      %142 = sbr.rel (%p139) target = $region32
    $region31: #{discriminator_forward.10} parent=5 // pred_region
      %s143 = ssub.s32 %s9, 1
      %s144 = smul.u32 32, %s14
      %p145 = scmp.lt.s32.totalorder %s144, 63
      %s146 = scalar_select %p145, %s144, 63
      %s147 = smul.addr %s146, 8
      %s148 = scalar_lea.vmem %s0, %s147
      %p149 = pneg %p35
      %p150 = pneg %p32
      %p151 = pneg %p56
      %p152 = pneg %p53
      %p153 = pneg %p77
      %p154 = pneg %p74
      %p155 = pneg %p103
      %p156 = pneg %p100
      %s157 = smul.u32 32, %s14
      %p158 = scmp.lt.s32.totalorder %s157, 63
      %s159 = scalar_select %p158, %s157, 63
      %s160 = smul.addr %s159, 4
      %s161 = scalar_lea.vmem %s3, %s160
      %s162 = smul.u32 32, %s14
      %p163 = scmp.lt.s32.totalorder %s162, 63
      %s164 = scalar_select %p163, %s162, 63
      %s165 = smul.addr %s164, 8
      %s166 = scalar_lea.vmem %s0, %s165
      %s167 = smul.u32 32, %s14
      %s168 = smul.u32 32, %s14
      %p169 = scmp.lt.s32.totalorder %s168, 63
      %s170 = scalar_select %p169, %s168, 63
      %s171 = smul.addr %s170, 4
      %s172 = scalar_lea.vmem %s3, %s171
      %s173 = smul.u32 32, %s14
      %v174 = vld [vmem:[%s166] sm:$0xff]
      %v175 = vld [vmem:[%s166 + $0x8] sm:$0xff]
      %v176 = vld [vmem:[%s166 + $0x10] sm:$0xff]
      %v177 = vld [vmem:[%s166 + $0x18] sm:$0xff]
      %v178 = vld [vmem:[%s166 + $0x20] sm:$0xff]
      %v179 = vld [vmem:[%s166 + $0x28] sm:$0xff]
      %v180 = vld [vmem:[%s166 + $0x30] sm:$0xff]
      %v181 = vld [vmem:[%s166 + $0x38] sm:$0xff]
      %v182 = vld [vmem:[%s166 + $0x40] sm:$0xff]
      %v183 = vld [vmem:[%s166 + $0x48] sm:$0xff]
      %v184 = vld [vmem:[%s166 + $0x50] sm:$0xff]
      %v185 = vld [vmem:[%s166 + $0x58] sm:$0xff]
      %v186 = vld [vmem:[%s166 + $0x60] sm:$0xff]
      %v187 = vld [vmem:[%s166 + $0x68] sm:$0xff]
      %v188 = vld [vmem:[%s166 + $0x70] sm:$0xff]
      %v189 = vld [vmem:[%s166 + $0x78] sm:$0xff]
      %v190 = vld [vmem:[%s166 + $0x80] sm:$0xff]
      %v191 = vld [vmem:[%s166 + $0x88] sm:$0xff]
      %v192 = vld [vmem:[%s166 + $0x90] sm:$0xff]
      %v193 = vld [vmem:[%s166 + $0x98] sm:$0xff]
      %v194 = vld [vmem:[%s166 + $0xa0] sm:$0xff]
      %v195 = vld [vmem:[%s166 + $0xa8] sm:$0xff]
      %v196 = vld [vmem:[%s166 + $0xb0] sm:$0xff]
      %v197 = vld [vmem:[%s166 + $0xb8] sm:$0xff]
      %v198 = vld [vmem:[%s166 + $0xc0] sm:$0xff]
      %v199 = vld [vmem:[%s166 + $0xc8] sm:$0xff]
      %v200 = vld [vmem:[%s166 + $0xd0] sm:$0xff]
      %v201 = vld [vmem:[%s166 + $0xd8] sm:$0xff]
      %v202 = vld [vmem:[%s166 + $0xe0] sm:$0xff]
      %v203 = vld [vmem:[%s166 + $0xe8] sm:$0xff]
      %v204 = vld [vmem:[%s166 + $0xf0] sm:$0xff]
      %v205 = vld [vmem:[%s166 + $0xf8] sm:$0xff]
      %v206 = vld [vmem:[%s1] sm:$0x1]
      %v208 = vperm.slane %v206, 0
      %v210 = vmul.f32 %v174, %v208
      %v211 = vmul.f32 %v175, %v208
      %v212 = vmul.f32 %v176, %v208
      %v213 = vmul.f32 %v177, %v208
      %v214 = vmul.f32 %v178, %v208
      %v215 = vmul.f32 %v179, %v208
      %v216 = vmul.f32 %v180, %v208
      %v217 = vmul.f32 %v181, %v208
      %v218 = vmul.f32 %v182, %v208
      %v219 = vmul.f32 %v183, %v208
      %v220 = vmul.f32 %v184, %v208
      %v221 = vmul.f32 %v185, %v208
      %v222 = vmul.f32 %v186, %v208
      %v223 = vmul.f32 %v187, %v208
      %v224 = vmul.f32 %v188, %v208
      %v225 = vmul.f32 %v189, %v208
      %v226 = vmul.f32 %v190, %v208
      %v227 = vmul.f32 %v191, %v208
      %v228 = vmul.f32 %v192, %v208
      %v229 = vmul.f32 %v193, %v208
      %v230 = vmul.f32 %v194, %v208
      %v231 = vmul.f32 %v195, %v208
      %v232 = vmul.f32 %v196, %v208
      %v233 = vmul.f32 %v197, %v208
      %v234 = vmul.f32 %v198, %v208
      %v235 = vmul.f32 %v199, %v208
      %v236 = vmul.f32 %v200, %v208
      %v237 = vmul.f32 %v201, %v208
      %v238 = vmul.f32 %v202, %v208
      %v239 = vmul.f32 %v203, %v208
      %v240 = vmul.f32 %v204, %v208
      %v241 = vmul.f32 %v205, %v208
      %v242 = vld [vmem:[%s2] sm:$0x1]
      %v244 = vperm.slane %v242, 0
      %v246 = vadd.f32 %v210, %v244
      %v247 = vadd.f32 %v211, %v244
      %v248 = vadd.f32 %v212, %v244
      %v249 = vadd.f32 %v213, %v244
      %v250 = vadd.f32 %v214, %v244
      %v251 = vadd.f32 %v215, %v244
      %v252 = vadd.f32 %v216, %v244
      %v253 = vadd.f32 %v217, %v244
      %v254 = vadd.f32 %v218, %v244
      %v255 = vadd.f32 %v219, %v244
      %v256 = vadd.f32 %v220, %v244
      %v257 = vadd.f32 %v221, %v244
      %v258 = vadd.f32 %v222, %v244
      %v259 = vadd.f32 %v223, %v244
      %v260 = vadd.f32 %v224, %v244
      %v261 = vadd.f32 %v225, %v244
      %v262 = vadd.f32 %v226, %v244
      %v263 = vadd.f32 %v227, %v244
      %v264 = vadd.f32 %v228, %v244
      %v265 = vadd.f32 %v229, %v244
      %v266 = vadd.f32 %v230, %v244
      %v267 = vadd.f32 %v231, %v244
      %v268 = vadd.f32 %v232, %v244
      %v269 = vadd.f32 %v233, %v244
      %v270 = vadd.f32 %v234, %v244
      %v271 = vadd.f32 %v235, %v244
      %v272 = vadd.f32 %v236, %v244
      %v273 = vadd.f32 %v237, %v244
      %v274 = vadd.f32 %v238, %v244
      %v275 = vadd.f32 %v239, %v244
      %v276 = vadd.f32 %v240, %v244
      %v277 = vadd.f32 %v241, %v244
      %vm278 = vcmp.ge.f32.partialorder %v246, 0.0
      %vm279 = vcmp.ge.f32.partialorder %v247, 0.0
      %vm280 = vcmp.ge.f32.partialorder %v248, 0.0
      %vm281 = vcmp.ge.f32.partialorder %v249, 0.0
      %vm282 = vcmp.ge.f32.partialorder %v250, 0.0
      %vm283 = vcmp.ge.f32.partialorder %v251, 0.0
      %vm284 = vcmp.ge.f32.partialorder %v252, 0.0
      %vm285 = vcmp.ge.f32.partialorder %v253, 0.0
      %vm286 = vcmp.ge.f32.partialorder %v254, 0.0
      %vm287 = vcmp.ge.f32.partialorder %v255, 0.0
      %vm288 = vcmp.ge.f32.partialorder %v256, 0.0
      %vm289 = vcmp.ge.f32.partialorder %v257, 0.0
      %vm290 = vcmp.ge.f32.partialorder %v258, 0.0
      %vm291 = vcmp.ge.f32.partialorder %v259, 0.0
      %vm292 = vcmp.ge.f32.partialorder %v260, 0.0
      %vm293 = vcmp.ge.f32.partialorder %v261, 0.0
      %vm294 = vcmp.ge.f32.partialorder %v262, 0.0
      %vm295 = vcmp.ge.f32.partialorder %v263, 0.0
      %vm296 = vcmp.ge.f32.partialorder %v264, 0.0
      %vm297 = vcmp.ge.f32.partialorder %v265, 0.0
      %vm298 = vcmp.ge.f32.partialorder %v266, 0.0
      %vm299 = vcmp.ge.f32.partialorder %v267, 0.0
      %vm300 = vcmp.ge.f32.partialorder %v268, 0.0
      %vm301 = vcmp.ge.f32.partialorder %v269, 0.0
      %vm302 = vcmp.ge.f32.partialorder %v270, 0.0
      %vm303 = vcmp.ge.f32.partialorder %v271, 0.0
      %vm304 = vcmp.ge.f32.partialorder %v272, 0.0
      %vm305 = vcmp.ge.f32.partialorder %v273, 0.0
      %vm306 = vcmp.ge.f32.partialorder %v274, 0.0
      %vm307 = vcmp.ge.f32.partialorder %v275, 0.0
      %vm308 = vcmp.ge.f32.partialorder %v276, 0.0
      %vm309 = vcmp.ge.f32.partialorder %v277, 0.0
      %v310 = vmul.f32 %v246, 0.2
      %v311 = vmul.f32 %v247, 0.2
      %v312 = vmul.f32 %v248, 0.2
      %v313 = vmul.f32 %v249, 0.2
      %v314 = vmul.f32 %v250, 0.2
      %v315 = vmul.f32 %v251, 0.2
      %v316 = vmul.f32 %v252, 0.2
      %v317 = vmul.f32 %v253, 0.2
      %v318 = vmul.f32 %v254, 0.2
      %v319 = vmul.f32 %v255, 0.2
      %v320 = vmul.f32 %v256, 0.2
      %v321 = vmul.f32 %v257, 0.2
      %v322 = vmul.f32 %v258, 0.2
      %v323 = vmul.f32 %v259, 0.2
      %v324 = vmul.f32 %v260, 0.2
      %v325 = vmul.f32 %v261, 0.2
      %v326 = vmul.f32 %v262, 0.2
      %v327 = vmul.f32 %v263, 0.2
      %v328 = vmul.f32 %v264, 0.2
      %v329 = vmul.f32 %v265, 0.2
      %v330 = vmul.f32 %v266, 0.2
      %v331 = vmul.f32 %v267, 0.2
      %v332 = vmul.f32 %v268, 0.2
      %v333 = vmul.f32 %v269, 0.2
      %v334 = vmul.f32 %v270, 0.2
      %v335 = vmul.f32 %v271, 0.2
      %v336 = vmul.f32 %v272, 0.2
      %v337 = vmul.f32 %v273, 0.2
      %v338 = vmul.f32 %v274, 0.2
      %v339 = vmul.f32 %v275, 0.2
      %v340 = vmul.f32 %v276, 0.2
      %v341 = vmul.f32 %v277, 0.2
      %v342 = vsel %vm278, %v246, %v310
      %v343 = vsel %vm279, %v247, %v311
      %v344 = vsel %vm280, %v248, %v312
      %v345 = vsel %vm281, %v249, %v313
      %v346 = vsel %vm282, %v250, %v314
      %v347 = vsel %vm283, %v251, %v315
      %v348 = vsel %vm284, %v252, %v316
      %v349 = vsel %vm285, %v253, %v317
      %v350 = vsel %vm286, %v254, %v318
      %v351 = vsel %vm287, %v255, %v319
      %v352 = vsel %vm288, %v256, %v320
      %v353 = vsel %vm289, %v257, %v321
      %v354 = vsel %vm290, %v258, %v322
      %v355 = vsel %vm291, %v259, %v323
      %v356 = vsel %vm292, %v260, %v324
      %v357 = vsel %vm293, %v261, %v325
      %v358 = vsel %vm294, %v262, %v326
      %v359 = vsel %vm295, %v263, %v327
      %v360 = vsel %vm296, %v264, %v328
      %v361 = vsel %vm297, %v265, %v329
      %v362 = vsel %vm298, %v266, %v330
      %v363 = vsel %vm299, %v267, %v331
      %v364 = vsel %vm300, %v268, %v332
      %v365 = vsel %vm301, %v269, %v333
      %v366 = vsel %vm302, %v270, %v334
      %v367 = vsel %vm303, %v271, %v335
      %v368 = vsel %vm304, %v272, %v336
      %v369 = vsel %vm305, %v273, %v337
      %v370 = vsel %vm306, %v274, %v338
      %v371 = vsel %vm307, %v275, %v339
      %v372 = vsel %vm308, %v276, %v340
      %v373 = vsel %vm309, %v277, %v341
      %v374 = vpack.c.bf16 %v342, %v342
      %v375 = vpack.c.bf16 %v343, %v343
      %v376 = vpack.c.bf16 %v344, %v344
      %v377 = vpack.c.bf16 %v345, %v345
      %v378 = vpack.c.bf16 %v346, %v346
      %v379 = vpack.c.bf16 %v347, %v347
      %v380 = vpack.c.bf16 %v348, %v348
      %v381 = vpack.c.bf16 %v349, %v349
      %v382 = vpack.c.bf16 %v350, %v350
      %v383 = vpack.c.bf16 %v351, %v351
      %v384 = vpack.c.bf16 %v352, %v352
      %v385 = vpack.c.bf16 %v353, %v353
      %v386 = vpack.c.bf16 %v354, %v354
      %v387 = vpack.c.bf16 %v355, %v355
      %v388 = vpack.c.bf16 %v356, %v356
      %v389 = vpack.c.bf16 %v357, %v357
      %v390 = vpack.c.bf16 %v358, %v358
      %v391 = vpack.c.bf16 %v359, %v359
      %v392 = vpack.c.bf16 %v360, %v360
      %v393 = vpack.c.bf16 %v361, %v361
      %v394 = vpack.c.bf16 %v362, %v362
      %v395 = vpack.c.bf16 %v363, %v363
      %v396 = vpack.c.bf16 %v364, %v364
      %v397 = vpack.c.bf16 %v365, %v365
      %v398 = vpack.c.bf16 %v366, %v366
      %v399 = vpack.c.bf16 %v367, %v367
      %v400 = vpack.c.bf16 %v368, %v368
      %v401 = vpack.c.bf16 %v369, %v369
      %v402 = vpack.c.bf16 %v370, %v370
      %v403 = vpack.c.bf16 %v371, %v371
      %v404 = vpack.c.bf16 %v372, %v372
      %v405 = vpack.c.bf16 %v373, %v373
      %406 = vst [vmem:[%s172] sm:$0xf] %v374
      %407 = vst [vmem:[%s172 + $0x4] sm:$0xf] %v375
      %408 = vst [vmem:[%s172 + $0x8] sm:$0xf] %v376
      %409 = vst [vmem:[%s172 + $0xc] sm:$0xf] %v377
      %410 = vst [vmem:[%s172 + $0x10] sm:$0xf] %v378
      %411 = vst [vmem:[%s172 + $0x14] sm:$0xf] %v379
      %412 = vst [vmem:[%s172 + $0x18] sm:$0xf] %v380
      %413 = vst [vmem:[%s172 + $0x1c] sm:$0xf] %v381
      %414 = vst [vmem:[%s172 + $0x20] sm:$0xf] %v382
      %415 = vst [vmem:[%s172 + $0x24] sm:$0xf] %v383
      %416 = vst [vmem:[%s172 + $0x28] sm:$0xf] %v384
      %417 = vst [vmem:[%s172 + $0x2c] sm:$0xf] %v385
      %418 = vst [vmem:[%s172 + $0x30] sm:$0xf] %v386
      %419 = vst [vmem:[%s172 + $0x34] sm:$0xf] %v387
      %420 = vst [vmem:[%s172 + $0x38] sm:$0xf] %v388
      %421 = vst [vmem:[%s172 + $0x3c] sm:$0xf] %v389
      %422 = vst [vmem:[%s172 + $0x40] sm:$0xf] %v390
      %423 = vst [vmem:[%s172 + $0x44] sm:$0xf] %v391
      %424 = vst [vmem:[%s172 + $0x48] sm:$0xf] %v392
      %425 = vst [vmem:[%s172 + $0x4c] sm:$0xf] %v393
      %426 = vst [vmem:[%s172 + $0x50] sm:$0xf] %v394
      %427 = vst [vmem:[%s172 + $0x54] sm:$0xf] %v395
      %428 = vst [vmem:[%s172 + $0x58] sm:$0xf] %v396
      %429 = vst [vmem:[%s172 + $0x5c] sm:$0xf] %v397
      %430 = vst [vmem:[%s172 + $0x60] sm:$0xf] %v398
      %431 = vst [vmem:[%s172 + $0x64] sm:$0xf] %v399
      %432 = vst [vmem:[%s172 + $0x68] sm:$0xf] %v400
      %433 = vst [vmem:[%s172 + $0x6c] sm:$0xf] %v401
      %434 = vst [vmem:[%s172 + $0x70] sm:$0xf] %v402
      %435 = vst [vmem:[%s172 + $0x74] sm:$0xf] %v403
      %436 = vst [vmem:[%s172 + $0x78] sm:$0xf] %v404
      %437 = vst [vmem:[%s172 + $0x7c] sm:$0xf] %v405
      %s438 = smul.u32 32, %s14
      %p439 = scmp.lt.s32.totalorder %s438, 63
      %s440 = scalar_select %p439, %s438, 63
      %s441 = smul.addr %s440, 4
      %s442 = scalar_lea.vmem %s3, %s441
      // Predicated region
      $region33: #{discriminator_forward.10} parent=31 // pred_check
        %p443 = pneg %p100
      $region34: #{discriminator_forward.10} parent=31 // pred_check_branch
        %445 = sbr.rel (%p443) target = $region36
      $region35: #{discriminator_forward.10} parent=31 // pred_region
        %s446 = smul.u32 32, %s14
      $region36: #{discriminator_forward.10} parent=31 // pred_fallthru
        _
    $region32: #{discriminator_forward.10} parent=5 // pred_fallthru
      _
    %p447 = scmp.le.s32.totalorder 2, %s9
    // Predicated region
    $region37: #{discriminator_forward.10} parent=5 // pred_check
      %p448 = pneg %p447
    $region38: #{discriminator_forward.10} parent=5 // pred_check_branch
      %450 = sbr.rel (%p448) target = $region40
    $region39: #{discriminator_forward.10} parent=5 // pred_region
      %s451 = ssub.s32 %s9, 2
      // Predicated region
      $region41: #{discriminator_forward.10} parent=39 // pred_check
        %p452 = pneg %p106
      $region42: #{discriminator_forward.10} parent=39 // pred_check_branch
        %454 = sbr.rel (%p452) target = $region44
      $region43: #{discriminator_forward.10} parent=39 // pred_region
        %s455 = smul.u32 32, %s15
        %p456 = scmp.lt.s32.totalorder %s455, 63
        %s457 = scalar_select %p456, %s455, 63
        %s458 = smul.addr %s457, 4
        %s459 = scalar_lea.vmem %s3, %s458
      $region44: #{discriminator_forward.10} parent=39 // pred_fallthru
        _
    $region40: #{discriminator_forward.10} parent=5 // pred_fallthru
      _
  $region6: #{discriminator_forward.10} parent=0 // loop_footer
    %s13 = sadd.s32 1, %s9
  $region7: #{discriminator_forward.10} parent=0 // loop_footer_branch
    %8 = sbr.rel target = $region3
  $region8: #{discriminator_forward.10} parent=0 // loop_exit
    _

// kernel: discriminator_forward.9
$region0: #{discriminator_forward.9}
  #allocation0 [shape = 'u32[]', space=smem, size = 0x4, offset = 0x4, fixed_abs, tag = 'smem constant byte address 0x4 - core index']
  #allocation1 [shape = 'u32[72,128]{1,0:T(1,128)}', space=vmem, size = 0x9000, scoped, tag = 'internal scratch']
  %s0 = inlined_call_operand.vmem [shape: bf16[512,400], index: 0, kind: input, shape index: {}]
  %s1 = inlined_call_operand.vmem [shape: bf16[400,128], index: 1, kind: input, shape index: {}]
  %s2 = inlined_call_operand.vmem [shape: f32[512,128], index: 2, kind: output, shape index: {0}]
  %s3 = inlined_call_operand.vmem [shape: f32[1,128], index: 3, kind: output, shape index: {1}]
  %s4 = inlined_call_operand.vmem [shape: f32[1,128], index: 4, kind: output, shape index: {2}]
  %5 = xla_tuple %s2, %s3, %s4
  %s6 = sld [smem:[#allocation0]]
  $region61: #{discriminator_forward.9} parent=0
    _
  %s8 = ssub.s32 1, %s6
  %s9 = scalar_select 0, %s8, %s6
  loop: start=0, step=1, limit=4
  $region2: #{discriminator_forward.9} parent=0 // loop_pre_header
    _
  $region3: #{discriminator_forward.9} parent=0 // loop_header
    %s11 = sphi 0, %s15
    %p12 = scmp.ge.s32.totalorder %s11, 4
    %s21 = sphi 0, %s23
    %s24 = sphi 0, %s21
    %s25 = sphi 0, %s24
    %s41 = sphi 0, %s25
    %s45 = sphi 0, %s45
    %s47 = sphi 0, %s45
    %s48 = sphi 0, %s47
    %s62 = sphi 0, %s48
    %s68 = sphi 0, %s70
    %s71 = sphi 0, %s68
    %s72 = sphi 0, %s71
    %s88 = sphi 0, %s72
    %s92 = sphi 0, %s92
    %s94 = sphi 0, %s92
    %s95 = sphi 0, %s94
    %s109 = sphi 0, %s95
    %s113 = sphi 0, %s113
    %s115 = sphi 0, %s113
    %s116 = sphi 0, %s115
    %s130 = sphi 0, %s116
  $region4: #{discriminator_forward.9} parent=0 // loop_header_branch
    %14 = sbr.rel (%p12) target = $region8
  $region5: #{discriminator_forward.9} parent=0 // loop_body
    %s16 = ssub.s32 %s11, 1
    %s17 = ssub.s32 %s11, 2
    %s18 = sadd.s32 %s11, 1
    %s19 = ssub.s32 %s11, %s18
    %p20 = scmp.eq.s32.totalorder %s19, 0
    %s22 = sadd.s32 %s21, 1
    %s23 = scalar_select %p20, %s21, %s22
    %p26 = pneg %p20
    %p27 = scmp.eq.s32.totalorder %s11, 1
    %p28 = por %p26, %p27
    %p29 = scmp.ne.s32.totalorder %s21, %s24
    %p30 = scmp.eq.s32.totalorder %s11, 0
    %p31 = por %p29, %p30
    %p32 = scmp.ne.s32.totalorder %s21, %s24
    %p33 = scmp.eq.s32.totalorder %s16, 1
    %p34 = por %p32, %p33
    %p35 = scmp.ne.s32.totalorder %s24, %s25
    %p36 = scmp.eq.s32.totalorder %s16, 0
    %p37 = por %p35, %p36
    %p38 = scmp.ne.s32.totalorder %s24, %s25
    %p39 = scmp.eq.s32.totalorder %s17, 1
    %p40 = por %p38, %p39
    %p42 = scmp.ne.s32.totalorder %s25, %s41
    %p43 = scmp.eq.s32.totalorder %s17, 0
    %p44 = por %p42, %p43
    %s46 = sadd.s32 %s45, 1
    %p49 = scmp.eq.s32.totalorder %s11, 1
    %p50 = scmp.ne.s32.totalorder %s45, %s47
    %p51 = scmp.eq.s32.totalorder %s11, 0
    %p52 = por %p50, %p51
    %p53 = scmp.ne.s32.totalorder %s45, %s47
    %p54 = scmp.eq.s32.totalorder %s16, 1
    %p55 = por %p53, %p54
    %p56 = scmp.ne.s32.totalorder %s47, %s48
    %p57 = scmp.eq.s32.totalorder %s16, 0
    %p58 = por %p56, %p57
    %p59 = scmp.ne.s32.totalorder %s47, %s48
    %p60 = scmp.eq.s32.totalorder %s17, 1
    %p61 = por %p59, %p60
    %p63 = scmp.ne.s32.totalorder %s48, %s62
    %p64 = scmp.eq.s32.totalorder %s17, 0
    %p65 = por %p63, %p64
    %s66 = ssub.s32 %s11, %s18
    %p67 = scmp.eq.s32.totalorder %s66, 0
    %s69 = sadd.s32 %s68, 1
    %s70 = scalar_select %p67, %s68, %s69
    %p73 = pneg %p67
    %p74 = scmp.eq.s32.totalorder %s11, 1
    %p75 = por %p73, %p74
    %p76 = scmp.ne.s32.totalorder %s68, %s71
    %p77 = scmp.eq.s32.totalorder %s11, 0
    %p78 = por %p76, %p77
    %p79 = scmp.ne.s32.totalorder %s68, %s71
    %p80 = scmp.eq.s32.totalorder %s16, 1
    %p81 = por %p79, %p80
    %p82 = scmp.ne.s32.totalorder %s71, %s72
    %p83 = scmp.eq.s32.totalorder %s16, 0
    %p84 = por %p82, %p83
    %p85 = scmp.ne.s32.totalorder %s71, %s72
    %p86 = scmp.eq.s32.totalorder %s17, 1
    %p87 = por %p85, %p86
    %p89 = scmp.ne.s32.totalorder %s72, %s88
    %p90 = scmp.eq.s32.totalorder %s17, 0
    %p91 = por %p89, %p90
    %s93 = sadd.s32 %s92, 1
    %p96 = scmp.eq.s32.totalorder %s11, 1
    %p97 = scmp.ne.s32.totalorder %s92, %s94
    %p98 = scmp.eq.s32.totalorder %s11, 0
    %p99 = por %p97, %p98
    %p100 = scmp.ne.s32.totalorder %s92, %s94
    %p101 = scmp.eq.s32.totalorder %s16, 1
    %p102 = por %p100, %p101
    %p103 = scmp.ne.s32.totalorder %s94, %s95
    %p104 = scmp.eq.s32.totalorder %s16, 0
    %p105 = por %p103, %p104
    %p106 = scmp.ne.s32.totalorder %s94, %s95
    %p107 = scmp.eq.s32.totalorder %s17, 1
    %p108 = por %p106, %p107
    %p110 = scmp.ne.s32.totalorder %s95, %s109
    %p111 = scmp.eq.s32.totalorder %s17, 0
    %p112 = por %p110, %p111
    %s114 = sadd.s32 %s113, 1
    %p117 = scmp.eq.s32.totalorder %s11, 1
    %p118 = scmp.ne.s32.totalorder %s113, %s115
    %p119 = scmp.eq.s32.totalorder %s11, 0
    %p120 = por %p118, %p119
    %p121 = scmp.ne.s32.totalorder %s113, %s115
    %p122 = scmp.eq.s32.totalorder %s16, 1
    %p123 = por %p121, %p122
    %p124 = scmp.ne.s32.totalorder %s115, %s116
    %p125 = scmp.eq.s32.totalorder %s16, 0
    %p126 = por %p124, %p125
    %p127 = scmp.ne.s32.totalorder %s115, %s116
    %p128 = scmp.eq.s32.totalorder %s17, 1
    %p129 = por %p127, %p128
    %p131 = scmp.ne.s32.totalorder %s116, %s130
    %p132 = scmp.eq.s32.totalorder %s17, 0
    %p133 = por %p131, %p132
    %p134 = scmp.le.s32.totalorder 1, %s11
    %p135 = scmp.lt.s32.totalorder %s11, 3
    %p136 = pnand %p134, %p135
    %p137 = pneg %p136
    // Predicated region
    $region9: #{discriminator_forward.9} parent=5 // pred_check
      _
    $region10: #{discriminator_forward.9} parent=5 // pred_check_branch
      %139 = sbr.rel (%p136) target = $region12
    $region11: #{discriminator_forward.9} parent=5 // pred_region
      %s140 = ssub.s32 %s11, 1
      // Predicated region
      $region13: #{discriminator_forward.9} parent=11 // pred_check
        %p141 = pneg %p58
      $region14: #{discriminator_forward.9} parent=11 // pred_check_branch
        %143 = sbr.rel (%p141) target = $region16
      $region15: #{discriminator_forward.9} parent=11 // pred_region
        _
      $region16: #{discriminator_forward.9} parent=11 // pred_fallthru
        _
    $region12: #{discriminator_forward.9} parent=5 // pred_fallthru
      _
    %p144 = scmp.lt.s32.totalorder %s11, 2
    // Predicated region
    $region17: #{discriminator_forward.9} parent=5 // pred_check
      %p145 = pneg %p144
    $region18: #{discriminator_forward.9} parent=5 // pred_check_branch
      %147 = sbr.rel (%p145) target = $region20
    $region19: #{discriminator_forward.9} parent=5 // pred_region
      // Predicated region
      $region21: #{discriminator_forward.9} parent=19 // pred_check
        %p148 = pneg %p31
      $region22: #{discriminator_forward.9} parent=19 // pred_check_branch
        %150 = sbr.rel (%p148) target = $region24
      $region23: #{discriminator_forward.9} parent=19 // pred_region
        %s151 = smul.u32 32, %s11
        %p152 = scmp.lt.s32.totalorder %s151, 63
        %s153 = scalar_select %p152, %s151, 63
        %s154 = smul.addr %s153, 4
        %s155 = smul.addr %s154, 4
        %s156 = scalar_lea.vmem %s0, %s155
        %s157 = smul.u32 32, %s11
      $region24: #{discriminator_forward.9} parent=19 // pred_fallthru
        _
    $region20: #{discriminator_forward.9} parent=5 // pred_fallthru
      _
    %p158 = scmp.le.s32.totalorder 1, %s11
    %p159 = scmp.lt.s32.totalorder %s11, 3
    %p160 = pnand %p158, %p159
    %p161 = pneg %p160
    // Predicated region
    $region25: #{discriminator_forward.9} parent=5 // pred_check
      _
    $region26: #{discriminator_forward.9} parent=5 // pred_check_branch
      %163 = sbr.rel (%p160) target = $region28
    $region27: #{discriminator_forward.9} parent=5 // pred_region
      %s164 = ssub.s32 %s11, 1
      %s165 = smul.u32 32, %s16
      %p166 = scmp.lt.s32.totalorder %s165, 63
      %s167 = scalar_select %p166, %s165, 63
      %s168 = smul.addr %s167, 4
      %s169 = smul.addr %s168, 4
      %s170 = scalar_lea.vmem %s0, %s169
      %p171 = pneg %p37
      %p172 = pneg %p34
      %p173 = pneg %p58
      %p174 = pneg %p55
      %p175 = pneg %p84
      %p176 = pneg %p81
      %s177 = smul.u32 32, %s16
      %p178 = scmp.lt.s32.totalorder %s177, 63
      %s179 = scalar_select %p178, %s177, 63
      %s180 = smul.addr %s179, 8
      %s181 = scalar_lea.vmem %s2, %s180
      %p182 = pneg %p105
      %p183 = pneg %p102
      %p184 = pneg %p126
      %p185 = pneg %p123
      %s186 = smul.u32 32, %s16
      %p187 = scmp.lt.s32.totalorder %s186, 63
      %s188 = scalar_select %p187, %s186, 63
      %s189 = smul.addr %s188, 4
      %s190 = smul.addr %s189, 4
      %s191 = scalar_lea.vmem %s0, %s190
      %s192 = smul.u32 32, %s16
      %s193 = smul.u32 32, %s16
      %p194 = scmp.lt.s32.totalorder %s193, 63
      %s195 = scalar_select %p194, %s193, 63
      %s196 = smul.addr %s195, 8
      %s197 = scalar_lea.vmem %s2, %s196
      %s198 = smul.u32 32, %s16
      %p200 = scmp.eq.s32.totalorder %s16, 0
      // Predicated region
      $region29: #{discriminator_forward.9} parent=27 // pred_check
        %p201 = pneg %p200
      $region30: #{discriminator_forward.9} parent=27 // pred_check_branch
        %203 = sbr.rel (%p201) target = $region32
      $region31: #{discriminator_forward.9} parent=27 // pred_region
        %204 = vst [vmem:[%s3] sm:$0x1] 0.0
        %205 = vst [vmem:[%s4] sm:$0x1] 0.0
      $region32: #{discriminator_forward.9} parent=27 // pred_fallthru
        _
      %v206 = vld [vmem:[%s191] sm:$0xff]
      %v207 = vld [vmem:[%s191 + $0x8] sm:$0xff]
      %v208 = vld [vmem:[%s191 + $0x10] sm:$0xff]
      %v209 = vld [vmem:[%s191 + $0x18] sm:$0xff]
      %v210 = vld [vmem:[%s191 + $0x20] sm:$0xff]
      %v211 = vld [vmem:[%s191 + $0x28] sm:$0xff]
      %v212 = vld [vmem:[%s191 + $0x30] sm:$0xff]
      %v213 = vld [vmem:[%s191 + $0x38] sm:$0xff]
      %v214 = vld [vmem:[%s191 + $0x40] sm:$0xff]
      %v215 = vld [vmem:[%s191 + $0x48] sm:$0xff]
      %v216 = vld [vmem:[%s191 + $0x50] sm:$0xff]
      %v217 = vld [vmem:[%s191 + $0x58] sm:$0xff]
      %v218 = vld [vmem:[%s191 + $0x60] sm:$0xff]
      %v219 = vld [vmem:[%s191 + $0x68] sm:$0xff]
      %v220 = vld [vmem:[%s191 + $0x70] sm:$0xff]
      %v221 = vld [vmem:[%s191 + $0x78] sm:$0xff]
      %v222 = vld [vmem:[%s191 + $0x80] sm:$0xff]
      %v223 = vld [vmem:[%s191 + $0x88] sm:$0xff]
      %v224 = vld [vmem:[%s191 + $0x90] sm:$0xff]
      %v225 = vld [vmem:[%s191 + $0x98] sm:$0xff]
      %v226 = vld [vmem:[%s191 + $0xa0] sm:$0xff]
      %v227 = vld [vmem:[%s191 + $0xa8] sm:$0xff]
      %v228 = vld [vmem:[%s191 + $0xb0] sm:$0xff]
      %v229 = vld [vmem:[%s191 + $0xb8] sm:$0xff]
      %v230 = vld [vmem:[%s191 + $0xc0] sm:$0xff]
      %v231 = vld [vmem:[%s191 + $0xc8] sm:$0xff]
      %v232 = vld [vmem:[%s191 + $0xd0] sm:$0xff]
      %v233 = vld [vmem:[%s191 + $0xd8] sm:$0xff]
      %v234 = vld [vmem:[%s191 + $0xe0] sm:$0xff]
      %v235 = vld [vmem:[%s191 + $0xe8] sm:$0xff]
      %v236 = vld [vmem:[%s191 + $0xf0] sm:$0xff]
      %v237 = vld [vmem:[%s191 + $0xf8] sm:$0xff]
      %v238 = vld [vmem:[%s191 + $0x100] sm:$0xff]
      %v239 = vld [vmem:[%s191 + $0x108] sm:$0xff]
      %v240 = vld [vmem:[%s191 + $0x110] sm:$0xff]
      %v241 = vld [vmem:[%s191 + $0x118] sm:$0xff]
      %v242 = vld [vmem:[%s191 + $0x120] sm:$0xff]
      %v243 = vld [vmem:[%s191 + $0x128] sm:$0xff]
      %v244 = vld [vmem:[%s191 + $0x130] sm:$0xff]
      %v245 = vld [vmem:[%s191 + $0x138] sm:$0xff]
      %v246 = vld [vmem:[%s191 + $0x140] sm:$0xff]
      %v247 = vld [vmem:[%s191 + $0x148] sm:$0xff]
      %v248 = vld [vmem:[%s191 + $0x150] sm:$0xff]
      %v249 = vld [vmem:[%s191 + $0x158] sm:$0xff]
      %v250 = vld [vmem:[%s191 + $0x160] sm:$0xff]
      %v251 = vld [vmem:[%s191 + $0x168] sm:$0xff]
      %v252 = vld [vmem:[%s191 + $0x170] sm:$0xff]
      %v253 = vld [vmem:[%s191 + $0x178] sm:$0xff]
      %v254 = vld [vmem:[%s191 + $0x180] sm:$0xff]
      %v255 = vld [vmem:[%s191 + $0x188] sm:$0xff]
      %v256 = vld [vmem:[%s191 + $0x190] sm:$0xff]
      %v257 = vld [vmem:[%s191 + $0x198] sm:$0xff]
      %v258 = vld [vmem:[%s191 + $0x1a0] sm:$0xff]
      %v259 = vld [vmem:[%s191 + $0x1a8] sm:$0xff]
      %v260 = vld [vmem:[%s191 + $0x1b0] sm:$0xff]
      %v261 = vld [vmem:[%s191 + $0x1b8] sm:$0xff]
      %v262 = vld [vmem:[%s191 + $0x1c0] sm:$0xff]
      %v263 = vld [vmem:[%s191 + $0x1c8] sm:$0xff]
      %v264 = vld [vmem:[%s191 + $0x1d0] sm:$0xff]
      %v265 = vld [vmem:[%s191 + $0x1d8] sm:$0xff]
      %v266 = vld [vmem:[%s191 + $0x1e0] sm:$0xff]
      %v267 = vld [vmem:[%s191 + $0x1e8] sm:$0xff]
      %v268 = vld [vmem:[%s191 + $0x1f0] sm:$0xff]
      %v269 = vld [vmem:[%s191 + $0x1f8] sm:$0xff]
      %v270 = vld [vmem:[%s1] sm:$0xf]
      %v271 = vld [vmem:[%s1 + $0x4] sm:$0xf]
      %v272 = vld [vmem:[%s1 + $0x8] sm:$0xf]
      %v273 = vld [vmem:[%s1 + $0xc] sm:$0xf]
      %v274 = vld [vmem:[%s1 + $0x10] sm:$0xf]
      %v275 = vld [vmem:[%s1 + $0x14] sm:$0xf]
      %v276 = vld [vmem:[%s1 + $0x18] sm:$0xf]
      %v277 = vld [vmem:[%s1 + $0x1c] sm:$0xf]
      %v278 = vld [vmem:[%s1 + $0x20] sm:$0xf]
      %v279 = vld [vmem:[%s1 + $0x24] sm:$0xf]
      %v280 = vld [vmem:[%s1 + $0x28] sm:$0xf]
      %v281 = vld [vmem:[%s1 + $0x2c] sm:$0xf]
      %v282 = vld [vmem:[%s1 + $0x30] sm:$0xf]
      %v283 = vld [vmem:[%s1 + $0x34] sm:$0xf]
      %v284 = vld [vmem:[%s1 + $0x38] sm:$0xf]
      %v285 = vld [vmem:[%s1 + $0x3c] sm:$0xf]
      %v286 = vld [vmem:[%s1 + $0x40] sm:$0xf]
      %v287 = vld [vmem:[%s1 + $0x44] sm:$0xf]
      %v288 = vld [vmem:[%s1 + $0x48] sm:$0xf]
      %v289 = vld [vmem:[%s1 + $0x4c] sm:$0xf]
      %v290 = vld [vmem:[%s1 + $0x50] sm:$0xf]
      %v291 = vld [vmem:[%s1 + $0x54] sm:$0xf]
      %v292 = vld [vmem:[%s1 + $0x58] sm:$0xf]
      %v293 = vld [vmem:[%s1 + $0x5c] sm:$0xf]
      %v294 = vld [vmem:[%s1 + $0x60] sm:$0xf]
      %v295 = vld [vmem:[%s1 + $0x64] sm:$0xf]
      %v296 = vld [vmem:[%s1 + $0x68] sm:$0xf]
      %v297 = vld [vmem:[%s1 + $0x6c] sm:$0xf]
      %v298 = vld [vmem:[%s1 + $0x70] sm:$0xf]
      %v299 = vld [vmem:[%s1 + $0x74] sm:$0xf]
      %v300 = vld [vmem:[%s1 + $0x78] sm:$0xf]
      %v301 = vld [vmem:[%s1 + $0x7c] sm:$0xf]
      %v302 = vld [vmem:[%s1 + $0x80] sm:$0xf]
      %v303 = vld [vmem:[%s1 + $0x84] sm:$0xf]
      %v304 = vld [vmem:[%s1 + $0x88] sm:$0xf]
      %v305 = vld [vmem:[%s1 + $0x8c] sm:$0xf]
      %v306 = vld [vmem:[%s1 + $0x90] sm:$0xf]
      %v307 = vld [vmem:[%s1 + $0x94] sm:$0xf]
      %v308 = vld [vmem:[%s1 + $0x98] sm:$0xf]
      %v309 = vld [vmem:[%s1 + $0x9c] sm:$0xf]
      %v310 = vld [vmem:[%s1 + $0xa0] sm:$0xf]
      %v311 = vld [vmem:[%s1 + $0xa4] sm:$0xf]
      %v312 = vld [vmem:[%s1 + $0xa8] sm:$0xf]
      %v313 = vld [vmem:[%s1 + $0xac] sm:$0xf]
      %v314 = vld [vmem:[%s1 + $0xb0] sm:$0xf]
      %v315 = vld [vmem:[%s1 + $0xb4] sm:$0xf]
      %v316 = vld [vmem:[%s1 + $0xb8] sm:$0xf]
      %v317 = vld [vmem:[%s1 + $0xbc] sm:$0xf]
      %v318 = vld [vmem:[%s1 + $0xc0] sm:$0xf]
      %v319 = vld [vmem:[%s1 + $0xc4] sm:$0xf]
      %v384 = vunpack.c.l.b16 %v206
      %v385 = vunpack.c.h.b16 %v206
      %v386 = vunpack.c.l.b16 %v207
      %v387 = vunpack.c.h.b16 %v207
      %v388 = vunpack.c.l.b16 %v208
      %v389 = vunpack.c.h.b16 %v208
      %v390 = vunpack.c.l.b16 %v209
      %v391 = vunpack.c.h.b16 %v209
      %v392 = vunpack.c.l.b16 %v210
      %v393 = vunpack.c.h.b16 %v210
      %v394 = vunpack.c.l.b16 %v211
      %v395 = vunpack.c.h.b16 %v211
      %v396 = vunpack.c.l.b16 %v212
      %v397 = vunpack.c.h.b16 %v212
      %v398 = vunpack.c.l.b16 %v213
      %v399 = vunpack.c.h.b16 %v213
      %v400 = vunpack.c.l.b16 %v214
      %v401 = vunpack.c.h.b16 %v214
      %v402 = vunpack.c.l.b16 %v215
      %v403 = vunpack.c.h.b16 %v215
      %v404 = vunpack.c.l.b16 %v216
      %v405 = vunpack.c.h.b16 %v216
      %v406 = vunpack.c.l.b16 %v217
      %v407 = vunpack.c.h.b16 %v217
      %v408 = vunpack.c.l.b16 %v218
      %v409 = vunpack.c.h.b16 %v218
      %v410 = vunpack.c.l.b16 %v219
      %v411 = vunpack.c.h.b16 %v219
      %v412 = vunpack.c.l.b16 %v220
      %v413 = vunpack.c.h.b16 %v220
      %v414 = vunpack.c.l.b16 %v221
      %v415 = vunpack.c.h.b16 %v221
      %v416 = vunpack.c.l.b16 %v222
      %v417 = vunpack.c.h.b16 %v222
      %v418 = vunpack.c.l.b16 %v223
      %v419 = vunpack.c.h.b16 %v223
      %v420 = vunpack.c.l.b16 %v224
      %v421 = vunpack.c.h.b16 %v224
      %v422 = vunpack.c.l.b16 %v225
      %v423 = vunpack.c.h.b16 %v225
      %v424 = vunpack.c.l.b16 %v226
      %v425 = vunpack.c.h.b16 %v226
      %v426 = vunpack.c.l.b16 %v227
      %v427 = vunpack.c.h.b16 %v227
      %v428 = vunpack.c.l.b16 %v228
      %v429 = vunpack.c.h.b16 %v228
      %v430 = vunpack.c.l.b16 %v229
      %v431 = vunpack.c.h.b16 %v229
      %v432 = vunpack.c.l.b16 %v230
      %v433 = vunpack.c.h.b16 %v230
      %v434 = vunpack.c.l.b16 %v231
      %v435 = vunpack.c.h.b16 %v231
      %v436 = vunpack.c.l.b16 %v232
      %v437 = vunpack.c.h.b16 %v232
      %v438 = vunpack.c.l.b16 %v233
      %v439 = vunpack.c.h.b16 %v233
      %v440 = vunpack.c.l.b16 %v234
      %v441 = vunpack.c.h.b16 %v234
      %v442 = vunpack.c.l.b16 %v235
      %v443 = vunpack.c.h.b16 %v235
      %v444 = vunpack.c.l.b16 %v236
      %v445 = vunpack.c.h.b16 %v236
      %v446 = vunpack.c.l.b16 %v237
      %v447 = vunpack.c.h.b16 %v237
      %v448 = vunpack.c.l.b16 %v238
      %v449 = vunpack.c.h.b16 %v238
      %v450 = vunpack.c.l.b16 %v239
      %v451 = vunpack.c.h.b16 %v239
      %v452 = vunpack.c.l.b16 %v240
      %v453 = vunpack.c.h.b16 %v240
      %v454 = vunpack.c.l.b16 %v241
      %v455 = vunpack.c.h.b16 %v241
      %v456 = vunpack.c.l.b16 %v242
      %v457 = vunpack.c.h.b16 %v242
      %v458 = vunpack.c.l.b16 %v243
      %v459 = vunpack.c.h.b16 %v243
      %v460 = vunpack.c.l.b16 %v244
      %v461 = vunpack.c.h.b16 %v244
      %v462 = vunpack.c.l.b16 %v245
      %v463 = vunpack.c.h.b16 %v245
      %v464 = vunpack.c.l.b16 %v246
      %v465 = vunpack.c.h.b16 %v246
      %v466 = vunpack.c.l.b16 %v247
      %v467 = vunpack.c.h.b16 %v247
      %v468 = vunpack.c.l.b16 %v248
      %v469 = vunpack.c.h.b16 %v248
      %v470 = vunpack.c.l.b16 %v249
      %v471 = vunpack.c.h.b16 %v249
      %v472 = vunpack.c.l.b16 %v250
      %v473 = vunpack.c.h.b16 %v250
      %v474 = vunpack.c.l.b16 %v251
      %v475 = vunpack.c.h.b16 %v251
      %v476 = vunpack.c.l.b16 %v252
      %v477 = vunpack.c.h.b16 %v252
      %v478 = vunpack.c.l.b16 %v253
      %v479 = vunpack.c.h.b16 %v253
      %v480 = vunpack.c.l.b16 %v254
      %v481 = vunpack.c.h.b16 %v254
      %v482 = vunpack.c.l.b16 %v255
      %v483 = vunpack.c.h.b16 %v255
      %v484 = vunpack.c.l.b16 %v256
      %v485 = vunpack.c.h.b16 %v256
      %v486 = vunpack.c.l.b16 %v257
      %v487 = vunpack.c.h.b16 %v257
      %v488 = vunpack.c.l.b16 %v258
      %v489 = vunpack.c.h.b16 %v258
      %v490 = vunpack.c.l.b16 %v259
      %v491 = vunpack.c.h.b16 %v259
      %v492 = vunpack.c.l.b16 %v260
      %v493 = vunpack.c.h.b16 %v260
      %v494 = vunpack.c.l.b16 %v261
      %v495 = vunpack.c.h.b16 %v261
      %v496 = vunpack.c.l.b16 %v262
      %v497 = vunpack.c.h.b16 %v262
      %v498 = vunpack.c.l.b16 %v263
      %v499 = vunpack.c.h.b16 %v263
      %v500 = vunpack.c.l.b16 %v264
      %v501 = vunpack.c.h.b16 %v264
      %v502 = vunpack.c.l.b16 %v265
      %v503 = vunpack.c.h.b16 %v265
      %v504 = vunpack.c.l.b16 %v266
      %v505 = vunpack.c.h.b16 %v266
      %v506 = vunpack.c.l.b16 %v267
      %v507 = vunpack.c.h.b16 %v267
      %v508 = vunpack.c.l.b16 %v268
      %v509 = vunpack.c.h.b16 %v268
      %v510 = vunpack.c.l.b16 %v269
      %v511 = vunpack.c.h.b16 %v269
      %v512 = vpack.c.b16 %v388, %v384
      %v513 = vpack.c.b16 %v389, %v385
      %v514 = vpack.c.b16 %v390, %v386
      %v515 = vpack.c.b16 %v391, %v387
      %v516 = vpack.c.b16 %v396, %v392
      %v517 = vpack.c.b16 %v397, %v393
      %v518 = vpack.c.b16 %v398, %v394
      %v519 = vpack.c.b16 %v399, %v395
      %v520 = vpack.c.b16 %v404, %v400
      %v521 = vpack.c.b16 %v405, %v401
      %v522 = vpack.c.b16 %v406, %v402
      %v523 = vpack.c.b16 %v407, %v403
      %v524 = vpack.c.b16 %v412, %v408
      %v525 = vpack.c.b16 %v413, %v409
      %v526 = vpack.c.b16 %v414, %v410
      %v527 = vpack.c.b16 %v415, %v411
      %v528 = vpack.c.b16 %v420, %v416
      %v529 = vpack.c.b16 %v421, %v417
      %v530 = vpack.c.b16 %v422, %v418
      %v531 = vpack.c.b16 %v423, %v419
      %v532 = vpack.c.b16 %v428, %v424
      %v533 = vpack.c.b16 %v429, %v425
      %v534 = vpack.c.b16 %v430, %v426
      %v535 = vpack.c.b16 %v431, %v427
      %v536 = vpack.c.b16 %v436, %v432
      %v537 = vpack.c.b16 %v437, %v433
      %v538 = vpack.c.b16 %v438, %v434
      %v539 = vpack.c.b16 %v439, %v435
      %v540 = vpack.c.b16 %v444, %v440
      %v541 = vpack.c.b16 %v445, %v441
      %v542 = vpack.c.b16 %v446, %v442
      %v543 = vpack.c.b16 %v447, %v443
      %v544 = vpack.c.b16 %v452, %v448
      %v545 = vpack.c.b16 %v453, %v449
      %v546 = vpack.c.b16 %v454, %v450
      %v547 = vpack.c.b16 %v455, %v451
      %v548 = vpack.c.b16 %v460, %v456
      %v549 = vpack.c.b16 %v461, %v457
      %v550 = vpack.c.b16 %v462, %v458
      %v551 = vpack.c.b16 %v463, %v459
      %v552 = vpack.c.b16 %v468, %v464
      %v553 = vpack.c.b16 %v469, %v465
      %v554 = vpack.c.b16 %v470, %v466
      %v555 = vpack.c.b16 %v471, %v467
      %v556 = vpack.c.b16 %v476, %v472
      %v557 = vpack.c.b16 %v477, %v473
      %v558 = vpack.c.b16 %v478, %v474
      %v559 = vpack.c.b16 %v479, %v475
      %v560 = vpack.c.b16 %v484, %v480
      %v561 = vpack.c.b16 %v485, %v481
      %v562 = vpack.c.b16 %v486, %v482
      %v563 = vpack.c.b16 %v487, %v483
      %v564 = vpack.c.b16 %v492, %v488
      %v565 = vpack.c.b16 %v493, %v489
      %v566 = vpack.c.b16 %v494, %v490
      %v567 = vpack.c.b16 %v495, %v491
      %v568 = vpack.c.b16 %v500, %v496
      %v569 = vpack.c.b16 %v501, %v497
      %v570 = vpack.c.b16 %v502, %v498
      %v571 = vpack.c.b16 %v503, %v499
      %v572 = vpack.c.b16 %v508, %v504
      %v573 = vpack.c.b16 %v509, %v505
      %v574 = vpack.c.b16 %v510, %v506
      %v575 = vpack.c.b16 %v511, %v507
      %v674 = vunpack.c.l.b16 %v270
      %v675 = vunpack.c.l.b16 %v271
      %v676 = vunpack.c.l.b16 %v272
      %v677 = vunpack.c.l.b16 %v273
      %v678 = vunpack.c.l.b16 %v274
      %v679 = vunpack.c.l.b16 %v275
      %v680 = vunpack.c.l.b16 %v276
      %v681 = vunpack.c.l.b16 %v277
      %v682 = vunpack.c.l.b16 %v278
      %v683 = vunpack.c.l.b16 %v279
      %v684 = vunpack.c.l.b16 %v280
      %v685 = vunpack.c.l.b16 %v281
      %v686 = vunpack.c.l.b16 %v282
      %v687 = vunpack.c.l.b16 %v283
      %v688 = vunpack.c.l.b16 %v284
      %v689 = vunpack.c.l.b16 %v285
      %v690 = vunpack.c.l.b16 %v286
      %v691 = vunpack.c.l.b16 %v287
      %v692 = vunpack.c.l.b16 %v288
      %v693 = vunpack.c.l.b16 %v289
      %v694 = vunpack.c.l.b16 %v290
      %v695 = vunpack.c.l.b16 %v291
      %v696 = vunpack.c.l.b16 %v292
      %v697 = vunpack.c.l.b16 %v293
      %v698 = vunpack.c.l.b16 %v294
      %v699 = vunpack.c.l.b16 %v295
      %v700 = vunpack.c.l.b16 %v296
      %v701 = vunpack.c.l.b16 %v297
      %v702 = vunpack.c.l.b16 %v298
      %v703 = vunpack.c.l.b16 %v299
      %v704 = vunpack.c.l.b16 %v300
      %v705 = vunpack.c.l.b16 %v301
      %v706 = vunpack.c.l.b16 %v302
      %v707 = vunpack.c.l.b16 %v303
      %v708 = vunpack.c.l.b16 %v304
      %v709 = vunpack.c.l.b16 %v305
      %v710 = vunpack.c.l.b16 %v306
      %v711 = vunpack.c.l.b16 %v307
      %v712 = vunpack.c.l.b16 %v308
      %v713 = vunpack.c.l.b16 %v309
      %v714 = vunpack.c.l.b16 %v310
      %v715 = vunpack.c.l.b16 %v311
      %v716 = vunpack.c.l.b16 %v312
      %v717 = vunpack.c.l.b16 %v313
      %v718 = vunpack.c.l.b16 %v314
      %v719 = vunpack.c.l.b16 %v315
      %v720 = vunpack.c.l.b16 %v316
      %v721 = vunpack.c.l.b16 %v317
      %v722 = vunpack.c.l.b16 %v318
      %v723 = vunpack.c.l.b16 %v319
      %v724 = vpack.c.b16 %v675, %v674
      %v725 = vpack.c.b16 %v677, %v676
      %v726 = vpack.c.b16 %v679, %v678
      %v727 = vpack.c.b16 %v681, %v680
      %v728 = vpack.c.b16 %v683, %v682
      %v729 = vpack.c.b16 %v685, %v684
      %v730 = vpack.c.b16 %v687, %v686
      %v731 = vpack.c.b16 %v689, %v688
      %v732 = vpack.c.b16 %v691, %v690
      %v733 = vpack.c.b16 %v693, %v692
      %v734 = vpack.c.b16 %v695, %v694
      %v735 = vpack.c.b16 %v697, %v696
      %v736 = vpack.c.b16 %v699, %v698
      %v737 = vpack.c.b16 %v701, %v700
      %v738 = vpack.c.b16 %v703, %v702
      %v739 = vpack.c.b16 %v705, %v704
      %v740 = vpack.c.b16 %v707, %v706
      %v741 = vpack.c.b16 %v709, %v708
      %v742 = vpack.c.b16 %v711, %v710
      %v743 = vpack.c.b16 %v713, %v712
      %v744 = vpack.c.b16 %v715, %v714
      %v745 = vpack.c.b16 %v717, %v716
      %v746 = vpack.c.b16 %v719, %v718
      %v747 = vpack.c.b16 %v721, %v720
      %v748 = vpack.c.b16 %v723, %v722
      %vm774 = vcmask 130048
      %v776 = vsel %vm774, %v515, 0
      %v779 = vsel %vm774, %v519, 0
      %v782 = vsel %vm774, %v523, 0
      %v785 = vsel %vm774, %v527, 0
      %v788 = vsel %vm774, %v531, 0
      %v791 = vsel %vm774, %v535, 0
      %v794 = vsel %vm774, %v539, 0
      %v797 = vsel %vm774, %v543, 0
      %v800 = vsel %vm774, %v547, 0
      %v803 = vsel %vm774, %v551, 0
      %v806 = vsel %vm774, %v555, 0
      %v809 = vsel %vm774, %v559, 0
      %v812 = vsel %vm774, %v563, 0
      %v815 = vsel %vm774, %v567, 0
      %v818 = vsel %vm774, %v571, 0
      %v821 = vsel %vm774, %v575, 0
      %823 = vmatpush.bf16.msra.mxu0 %v731
      %824 = vmatpush.bf16.msra.mxu0 %v730
      %825 = vmatpush.bf16.msra.mxu0 %v729
      %826 = vmatpush.bf16.msra.mxu0 %v728
      %827 = vmatpush.bf16.msra.mxu0 %v727
      %828 = vmatpush.bf16.msra.mxu0 %v726
      %829 = vmatpush.bf16.msra.mxu0 %v725
      %830 = vmatpush.bf16.msra.mxu0 %v724
      %831 = vmatmul.bf16.gmra.mxu0 %v512
      %v832 = vpop.f32.mrf.mxu0
      %v833 = vadd.f32 0.0, %v832
      %v834 = vpop.f32.mrf.mxu0
      %v835 = vadd.f32 0.0, %v834
      %836 = vmatmul.bf16.gmra.mxu0 %v516
      %v837 = vpop.f32.mrf.mxu0
      %v838 = vadd.f32 0.0, %v837
      %v839 = vpop.f32.mrf.mxu0
      %v840 = vadd.f32 0.0, %v839
      %841 = vmatmul.bf16.gmra.mxu0 %v520
      %v842 = vpop.f32.mrf.mxu0
      %v843 = vadd.f32 0.0, %v842
      %v844 = vpop.f32.mrf.mxu0
      %v845 = vadd.f32 0.0, %v844
      %846 = vmatmul.bf16.gmra.mxu0 %v524
      %v847 = vpop.f32.mrf.mxu0
      %v848 = vadd.f32 0.0, %v847
      %v849 = vpop.f32.mrf.mxu0
      %v850 = vadd.f32 0.0, %v849
      %851 = vmatmul.bf16.gmra.mxu0 %v528
      %v852 = vpop.f32.mrf.mxu0
      %v853 = vadd.f32 0.0, %v852
      %v854 = vpop.f32.mrf.mxu0
      %v855 = vadd.f32 0.0, %v854
      %856 = vmatmul.bf16.gmra.mxu0 %v532
      %v857 = vpop.f32.mrf.mxu0
      %v858 = vadd.f32 0.0, %v857
      %v859 = vpop.f32.mrf.mxu0
      %v860 = vadd.f32 0.0, %v859
      %861 = vmatmul.bf16.gmra.mxu0 %v536
      %v862 = vpop.f32.mrf.mxu0
      %v863 = vadd.f32 0.0, %v862
      %v864 = vpop.f32.mrf.mxu0
      %v865 = vadd.f32 0.0, %v864
      %866 = vmatmul.bf16.gmra.mxu0 %v540
      %v867 = vpop.f32.mrf.mxu0
      %v868 = vadd.f32 0.0, %v867
      %v869 = vpop.f32.mrf.mxu0
      %v870 = vadd.f32 0.0, %v869
      %871 = vmatmul.bf16.gmra.mxu0 %v544
      %v872 = vpop.f32.mrf.mxu0
      %v873 = vadd.f32 0.0, %v872
      %v874 = vpop.f32.mrf.mxu0
      %v875 = vadd.f32 0.0, %v874
      %876 = vmatmul.bf16.gmra.mxu0 %v548
      %v877 = vpop.f32.mrf.mxu0
      %v878 = vadd.f32 0.0, %v877
      %v879 = vpop.f32.mrf.mxu0
      %v880 = vadd.f32 0.0, %v879
      %881 = vmatmul.bf16.gmra.mxu0 %v552
      %v882 = vpop.f32.mrf.mxu0
      %v883 = vadd.f32 0.0, %v882
      %v884 = vpop.f32.mrf.mxu0
      %v885 = vadd.f32 0.0, %v884
      %886 = vmatmul.bf16.gmra.mxu0 %v556
      %v887 = vpop.f32.mrf.mxu0
      %v888 = vadd.f32 0.0, %v887
      %v889 = vpop.f32.mrf.mxu0
      %v890 = vadd.f32 0.0, %v889
      %891 = vmatmul.bf16.gmra.mxu0 %v560
      %v892 = vpop.f32.mrf.mxu0
      %v893 = vadd.f32 0.0, %v892
      %v894 = vpop.f32.mrf.mxu0
      %v895 = vadd.f32 0.0, %v894
      %896 = vmatmul.bf16.gmra.mxu0 %v564
      %v897 = vpop.f32.mrf.mxu0
      %v898 = vadd.f32 0.0, %v897
      %v899 = vpop.f32.mrf.mxu0
      %v900 = vadd.f32 0.0, %v899
      %901 = vmatmul.bf16.gmra.mxu0 %v568
      %v902 = vpop.f32.mrf.mxu0
      %v903 = vadd.f32 0.0, %v902
      %v904 = vpop.f32.mrf.mxu0
      %v905 = vadd.f32 0.0, %v904
      %906 = vmatmul.bf16.gmra.mxu0 %v572
      %v907 = vpop.f32.mrf.mxu0
      %v908 = vadd.f32 0.0, %v907
      %v909 = vpop.f32.mrf.mxu0
      %v910 = vadd.f32 0.0, %v909
      %911 = vdwg.mxu0
      %912 = vmatpush.bf16.msra.mxu0 %v739
      %913 = vmatpush.bf16.msra.mxu0 %v738
      %914 = vmatpush.bf16.msra.mxu0 %v737
      %915 = vmatpush.bf16.msra.mxu0 %v736
      %916 = vmatpush.bf16.msra.mxu0 %v735
      %917 = vmatpush.bf16.msra.mxu0 %v734
      %918 = vmatpush.bf16.msra.mxu0 %v733
      %919 = vmatpush.bf16.msra.mxu0 %v732
      %920 = vmatmul.bf16.gmra.mxu0 %v513
      %v921 = vpop.f32.mrf.mxu0
      %v922 = vadd.f32 %v833, %v921
      %v923 = vpop.f32.mrf.mxu0
      %v924 = vadd.f32 %v835, %v923
      %925 = vmatmul.bf16.gmra.mxu0 %v517
      %v926 = vpop.f32.mrf.mxu0
      %v927 = vadd.f32 %v838, %v926
      %v928 = vpop.f32.mrf.mxu0
      %v929 = vadd.f32 %v840, %v928
      %930 = vmatmul.bf16.gmra.mxu0 %v521
      %v931 = vpop.f32.mrf.mxu0
      %v932 = vadd.f32 %v843, %v931
      %v933 = vpop.f32.mrf.mxu0
      %v934 = vadd.f32 %v845, %v933
      %935 = vmatmul.bf16.gmra.mxu0 %v525
      %v936 = vpop.f32.mrf.mxu0
      %v937 = vadd.f32 %v848, %v936
      %v938 = vpop.f32.mrf.mxu0
      %v939 = vadd.f32 %v850, %v938
      %940 = vmatmul.bf16.gmra.mxu0 %v529
      %v941 = vpop.f32.mrf.mxu0
      %v942 = vadd.f32 %v853, %v941
      %v943 = vpop.f32.mrf.mxu0
      %v944 = vadd.f32 %v855, %v943
      %945 = vmatmul.bf16.gmra.mxu0 %v533
      %v946 = vpop.f32.mrf.mxu0
      %v947 = vadd.f32 %v858, %v946
      %v948 = vpop.f32.mrf.mxu0
      %v949 = vadd.f32 %v860, %v948
      %950 = vmatmul.bf16.gmra.mxu0 %v537
      %v951 = vpop.f32.mrf.mxu0
      %v952 = vadd.f32 %v863, %v951
      %v953 = vpop.f32.mrf.mxu0
      %v954 = vadd.f32 %v865, %v953
      %955 = vmatmul.bf16.gmra.mxu0 %v541
      %v956 = vpop.f32.mrf.mxu0
      %v957 = vadd.f32 %v868, %v956
      %v958 = vpop.f32.mrf.mxu0
      %v959 = vadd.f32 %v870, %v958
      %960 = vmatmul.bf16.gmra.mxu0 %v545
      %v961 = vpop.f32.mrf.mxu0
      %v962 = vadd.f32 %v873, %v961
      %v963 = vpop.f32.mrf.mxu0
      %v964 = vadd.f32 %v875, %v963
      %965 = vmatmul.bf16.gmra.mxu0 %v549
      %v966 = vpop.f32.mrf.mxu0
      %v967 = vadd.f32 %v878, %v966
      %v968 = vpop.f32.mrf.mxu0
      %v969 = vadd.f32 %v880, %v968
      %970 = vmatmul.bf16.gmra.mxu0 %v553
      %v971 = vpop.f32.mrf.mxu0
      %v972 = vadd.f32 %v883, %v971
      %v973 = vpop.f32.mrf.mxu0
      %v974 = vadd.f32 %v885, %v973
      %975 = vmatmul.bf16.gmra.mxu0 %v557
      %v976 = vpop.f32.mrf.mxu0
      %v977 = vadd.f32 %v888, %v976
      %v978 = vpop.f32.mrf.mxu0
      %v979 = vadd.f32 %v890, %v978
      %980 = vmatmul.bf16.gmra.mxu0 %v561
      %v981 = vpop.f32.mrf.mxu0
      %v982 = vadd.f32 %v893, %v981
      %v983 = vpop.f32.mrf.mxu0
      %v984 = vadd.f32 %v895, %v983
      %985 = vmatmul.bf16.gmra.mxu0 %v565
      %v986 = vpop.f32.mrf.mxu0
      %v987 = vadd.f32 %v898, %v986
      %v988 = vpop.f32.mrf.mxu0
      %v989 = vadd.f32 %v900, %v988
      %990 = vmatmul.bf16.gmra.mxu0 %v569
      %v991 = vpop.f32.mrf.mxu0
      %v992 = vadd.f32 %v903, %v991
      %v993 = vpop.f32.mrf.mxu0
      %v994 = vadd.f32 %v905, %v993
      %995 = vmatmul.bf16.gmra.mxu0 %v573
      %v996 = vpop.f32.mrf.mxu0
      %v997 = vadd.f32 %v908, %v996
      %v998 = vpop.f32.mrf.mxu0
      %v999 = vadd.f32 %v910, %v998
      %1000 = vdwg.mxu0
      %1001 = vmatpush.bf16.msra.mxu0 %v747
      %1002 = vmatpush.bf16.msra.mxu0 %v746
      %1003 = vmatpush.bf16.msra.mxu0 %v745
      %1004 = vmatpush.bf16.msra.mxu0 %v744
      %1005 = vmatpush.bf16.msra.mxu0 %v743
      %1006 = vmatpush.bf16.msra.mxu0 %v742
      %1007 = vmatpush.bf16.msra.mxu0 %v741
      %1008 = vmatpush.bf16.msra.mxu0 %v740
      %1009 = vmatmul.bf16.gmra.mxu0 %v514
      %v1010 = vpop.f32.mrf.mxu0
      %v1011 = vadd.f32 %v922, %v1010
      %v1012 = vpop.f32.mrf.mxu0
      %v1013 = vadd.f32 %v924, %v1012
      %1014 = vmatmul.bf16.gmra.mxu0 %v518
      %v1015 = vpop.f32.mrf.mxu0
      %v1016 = vadd.f32 %v927, %v1015
      %v1017 = vpop.f32.mrf.mxu0
      %v1018 = vadd.f32 %v929, %v1017
      %1019 = vmatmul.bf16.gmra.mxu0 %v522
      %v1020 = vpop.f32.mrf.mxu0
      %v1021 = vadd.f32 %v932, %v1020
      %v1022 = vpop.f32.mrf.mxu0
      %v1023 = vadd.f32 %v934, %v1022
      %1024 = vmatmul.bf16.gmra.mxu0 %v526
      %v1025 = vpop.f32.mrf.mxu0
      %v1026 = vadd.f32 %v937, %v1025
      %v1027 = vpop.f32.mrf.mxu0
      %v1028 = vadd.f32 %v939, %v1027
      %1029 = vmatmul.bf16.gmra.mxu0 %v530
      %v1030 = vpop.f32.mrf.mxu0
      %v1031 = vadd.f32 %v942, %v1030
      %v1032 = vpop.f32.mrf.mxu0
      %v1033 = vadd.f32 %v944, %v1032
      %1034 = vmatmul.bf16.gmra.mxu0 %v534
      %v1035 = vpop.f32.mrf.mxu0
      %v1036 = vadd.f32 %v947, %v1035
      %v1037 = vpop.f32.mrf.mxu0
      %v1038 = vadd.f32 %v949, %v1037
      %1039 = vmatmul.bf16.gmra.mxu0 %v538
      %v1040 = vpop.f32.mrf.mxu0
      %v1041 = vadd.f32 %v952, %v1040
      %v1042 = vpop.f32.mrf.mxu0
      %v1043 = vadd.f32 %v954, %v1042
      %1044 = vmatmul.bf16.gmra.mxu0 %v542
      %v1045 = vpop.f32.mrf.mxu0
      %v1046 = vadd.f32 %v957, %v1045
      %v1047 = vpop.f32.mrf.mxu0
      %v1048 = vadd.f32 %v959, %v1047
      %1049 = vmatmul.bf16.gmra.mxu0 %v546
      %v1050 = vpop.f32.mrf.mxu0
      %v1051 = vadd.f32 %v962, %v1050
      %v1052 = vpop.f32.mrf.mxu0
      %v1053 = vadd.f32 %v964, %v1052
      %1054 = vmatmul.bf16.gmra.mxu0 %v550
      %v1055 = vpop.f32.mrf.mxu0
      %v1056 = vadd.f32 %v967, %v1055
      %v1057 = vpop.f32.mrf.mxu0
      %v1058 = vadd.f32 %v969, %v1057
      %1059 = vmatmul.bf16.gmra.mxu0 %v554
      %v1060 = vpop.f32.mrf.mxu0
      %v1061 = vadd.f32 %v972, %v1060
      %v1062 = vpop.f32.mrf.mxu0
      %v1063 = vadd.f32 %v974, %v1062
      %1064 = vmatmul.bf16.gmra.mxu0 %v558
      %v1065 = vpop.f32.mrf.mxu0
      %v1066 = vadd.f32 %v977, %v1065
      %v1067 = vpop.f32.mrf.mxu0
      %v1068 = vadd.f32 %v979, %v1067
      %1069 = vmatmul.bf16.gmra.mxu0 %v562
      %v1070 = vpop.f32.mrf.mxu0
      %v1071 = vadd.f32 %v982, %v1070
      %v1072 = vpop.f32.mrf.mxu0
      %v1073 = vadd.f32 %v984, %v1072
      %1074 = vmatmul.bf16.gmra.mxu0 %v566
      %v1075 = vpop.f32.mrf.mxu0
      %v1076 = vadd.f32 %v987, %v1075
      %v1077 = vpop.f32.mrf.mxu0
      %v1078 = vadd.f32 %v989, %v1077
      %1079 = vmatmul.bf16.gmra.mxu0 %v570
      %v1080 = vpop.f32.mrf.mxu0
      %v1081 = vadd.f32 %v992, %v1080
      %v1082 = vpop.f32.mrf.mxu0
      %v1083 = vadd.f32 %v994, %v1082
      %1084 = vmatmul.bf16.gmra.mxu0 %v574
      %v1085 = vpop.f32.mrf.mxu0
      %v1086 = vadd.f32 %v997, %v1085
      %v1087 = vpop.f32.mrf.mxu0
      %v1088 = vadd.f32 %v999, %v1087
      %1089 = vdwg.mxu0
      %1090 = vmatpush.bf16.msra.mxu0 0
      %1091 = vmatpush.bf16.msra.mxu0 0
      %1092 = vmatpush.bf16.msra.mxu0 0
      %1093 = vmatpush.bf16.msra.mxu0 0
      %1094 = vmatpush.bf16.msra.mxu0 0
      %1095 = vmatpush.bf16.msra.mxu0 0
      %1096 = vmatpush.bf16.msra.mxu0 0
      %1097 = vmatpush.bf16.msra.mxu0 %v748
      %1098 = vmatmul.bf16.gmra.mxu0 %v776
      %v1099 = vpop.f32.mrf.mxu0
      %v1100 = vadd.f32 %v1011, %v1099
      %v1101 = vpop.f32.mrf.mxu0
      %v1102 = vadd.f32 %v1013, %v1101
      %1103 = vmatmul.bf16.gmra.mxu0 %v779
      %v1104 = vpop.f32.mrf.mxu0
      %v1105 = vadd.f32 %v1016, %v1104
      %v1106 = vpop.f32.mrf.mxu0
      %v1107 = vadd.f32 %v1018, %v1106
      %1108 = vmatmul.bf16.gmra.mxu0 %v782
      %v1109 = vpop.f32.mrf.mxu0
      %v1110 = vadd.f32 %v1021, %v1109
      %v1111 = vpop.f32.mrf.mxu0
      %v1112 = vadd.f32 %v1023, %v1111
      %1113 = vmatmul.bf16.gmra.mxu0 %v785
      %v1114 = vpop.f32.mrf.mxu0
      %v1115 = vadd.f32 %v1026, %v1114
      %v1116 = vpop.f32.mrf.mxu0
      %v1117 = vadd.f32 %v1028, %v1116
      %1118 = vmatmul.bf16.gmra.mxu0 %v788
      %v1119 = vpop.f32.mrf.mxu0
      %v1120 = vadd.f32 %v1031, %v1119
      %v1121 = vpop.f32.mrf.mxu0
      %v1122 = vadd.f32 %v1033, %v1121
      %1123 = vmatmul.bf16.gmra.mxu0 %v791
      %v1124 = vpop.f32.mrf.mxu0
      %v1125 = vadd.f32 %v1036, %v1124
      %v1126 = vpop.f32.mrf.mxu0
      %v1127 = vadd.f32 %v1038, %v1126
      %1128 = vmatmul.bf16.gmra.mxu0 %v794
      %v1129 = vpop.f32.mrf.mxu0
      %v1130 = vadd.f32 %v1041, %v1129
      %v1131 = vpop.f32.mrf.mxu0
      %v1132 = vadd.f32 %v1043, %v1131
      %1133 = vmatmul.bf16.gmra.mxu0 %v797
      %v1134 = vpop.f32.mrf.mxu0
      %v1135 = vadd.f32 %v1046, %v1134
      %v1136 = vpop.f32.mrf.mxu0
      %v1137 = vadd.f32 %v1048, %v1136
      %1138 = vmatmul.bf16.gmra.mxu0 %v800
      %v1139 = vpop.f32.mrf.mxu0
      %v1140 = vadd.f32 %v1051, %v1139
      %v1141 = vpop.f32.mrf.mxu0
      %v1142 = vadd.f32 %v1053, %v1141
      %1143 = vmatmul.bf16.gmra.mxu0 %v803
      %v1144 = vpop.f32.mrf.mxu0
      %v1145 = vadd.f32 %v1056, %v1144
      %v1146 = vpop.f32.mrf.mxu0
      %v1147 = vadd.f32 %v1058, %v1146
      %1148 = vmatmul.bf16.gmra.mxu0 %v806
      %v1149 = vpop.f32.mrf.mxu0
      %v1150 = vadd.f32 %v1061, %v1149
      %v1151 = vpop.f32.mrf.mxu0
      %v1152 = vadd.f32 %v1063, %v1151
      %1153 = vmatmul.bf16.gmra.mxu0 %v809
      %v1154 = vpop.f32.mrf.mxu0
      %v1155 = vadd.f32 %v1066, %v1154
      %v1156 = vpop.f32.mrf.mxu0
      %v1157 = vadd.f32 %v1068, %v1156
      %1158 = vmatmul.bf16.gmra.mxu0 %v812
      %v1159 = vpop.f32.mrf.mxu0
      %v1160 = vadd.f32 %v1071, %v1159
      %v1161 = vpop.f32.mrf.mxu0
      %v1162 = vadd.f32 %v1073, %v1161
      %1163 = vmatmul.bf16.gmra.mxu0 %v815
      %v1164 = vpop.f32.mrf.mxu0
      %v1165 = vadd.f32 %v1076, %v1164
      %v1166 = vpop.f32.mrf.mxu0
      %v1167 = vadd.f32 %v1078, %v1166
      %1168 = vmatmul.bf16.gmra.mxu0 %v818
      %v1169 = vpop.f32.mrf.mxu0
      %v1170 = vadd.f32 %v1081, %v1169
      %v1171 = vpop.f32.mrf.mxu0
      %v1172 = vadd.f32 %v1083, %v1171
      %1173 = vmatmul.bf16.gmra.mxu0 %v821
      %v1174 = vpop.f32.mrf.mxu0
      %v1175 = vadd.f32 %v1086, %v1174
      %v1176 = vpop.f32.mrf.mxu0
      %v1177 = vadd.f32 %v1088, %v1176
      %1178 = vdwg.mxu0
      %1179 = vst [vmem:[%s197] sm:$0xff] %v1100
      %1180 = vst [vmem:[%s197 + $0x8] sm:$0xff] %v1102
      %1181 = vst [vmem:[%s197 + $0x10] sm:$0xff] %v1105
      %1182 = vst [vmem:[%s197 + $0x18] sm:$0xff] %v1107
      %1183 = vst [vmem:[%s197 + $0x20] sm:$0xff] %v1110
      %1184 = vst [vmem:[%s197 + $0x28] sm:$0xff] %v1112
      %1185 = vst [vmem:[%s197 + $0x30] sm:$0xff] %v1115
      %1186 = vst [vmem:[%s197 + $0x38] sm:$0xff] %v1117
      %1187 = vst [vmem:[%s197 + $0x40] sm:$0xff] %v1120
      %1188 = vst [vmem:[%s197 + $0x48] sm:$0xff] %v1122
      %1189 = vst [vmem:[%s197 + $0x50] sm:$0xff] %v1125
      %1190 = vst [vmem:[%s197 + $0x58] sm:$0xff] %v1127
      %1191 = vst [vmem:[%s197 + $0x60] sm:$0xff] %v1130
      %1192 = vst [vmem:[%s197 + $0x68] sm:$0xff] %v1132
      %1193 = vst [vmem:[%s197 + $0x70] sm:$0xff] %v1135
      %1194 = vst [vmem:[%s197 + $0x78] sm:$0xff] %v1137
      %1195 = vst [vmem:[%s197 + $0x80] sm:$0xff] %v1140
      %1196 = vst [vmem:[%s197 + $0x88] sm:$0xff] %v1142
      %1197 = vst [vmem:[%s197 + $0x90] sm:$0xff] %v1145
      %1198 = vst [vmem:[%s197 + $0x98] sm:$0xff] %v1147
      %1199 = vst [vmem:[%s197 + $0xa0] sm:$0xff] %v1150
      %1200 = vst [vmem:[%s197 + $0xa8] sm:$0xff] %v1152
      %1201 = vst [vmem:[%s197 + $0xb0] sm:$0xff] %v1155
      %1202 = vst [vmem:[%s197 + $0xb8] sm:$0xff] %v1157
      %1203 = vst [vmem:[%s197 + $0xc0] sm:$0xff] %v1160
      %1204 = vst [vmem:[%s197 + $0xc8] sm:$0xff] %v1162
      %1205 = vst [vmem:[%s197 + $0xd0] sm:$0xff] %v1165
      %1206 = vst [vmem:[%s197 + $0xd8] sm:$0xff] %v1167
      %1207 = vst [vmem:[%s197 + $0xe0] sm:$0xff] %v1170
      %1208 = vst [vmem:[%s197 + $0xe8] sm:$0xff] %v1172
      %1209 = vst [vmem:[%s197 + $0xf0] sm:$0xff] %v1175
      %1210 = vst [vmem:[%s197 + $0xf8] sm:$0xff] %v1177
      %v1211 = vld [vmem:[%s3] sm:$0x1]
      %v1212 = vadd.f32 %v1100, %v1102
      %v1213 = vadd.f32 %v1212, %v1105
      %v1214 = vadd.f32 %v1213, %v1107
      %v1215 = vadd.f32 %v1214, %v1110
      %v1216 = vadd.f32 %v1215, %v1112
      %v1217 = vadd.f32 %v1216, %v1115
      %v1218 = vadd.f32 %v1217, %v1117
      %v1219 = vadd.f32 %v1218, %v1120
      %v1220 = vadd.f32 %v1219, %v1122
      %v1221 = vadd.f32 %v1220, %v1125
      %v1222 = vadd.f32 %v1221, %v1127
      %v1223 = vadd.f32 %v1222, %v1130
      %v1224 = vadd.f32 %v1223, %v1132
      %v1225 = vadd.f32 %v1224, %v1135
      %v1226 = vadd.f32 %v1225, %v1137
      %v1227 = vadd.f32 %v1226, %v1140
      %v1228 = vadd.f32 %v1227, %v1142
      %v1229 = vadd.f32 %v1228, %v1145
      %v1230 = vadd.f32 %v1229, %v1147
      %v1231 = vadd.f32 %v1230, %v1150
      %v1232 = vadd.f32 %v1231, %v1152
      %v1233 = vadd.f32 %v1232, %v1155
      %v1234 = vadd.f32 %v1233, %v1157
      %v1235 = vadd.f32 %v1234, %v1160
      %v1236 = vadd.f32 %v1235, %v1162
      %v1237 = vadd.f32 %v1236, %v1165
      %v1238 = vadd.f32 %v1237, %v1167
      %v1239 = vadd.f32 %v1238, %v1170
      %v1240 = vadd.f32 %v1239, %v1172
      %v1241 = vadd.f32 %v1240, %v1175
      %v1242 = vadd.f32 %v1241, %v1177
      %v1243 = vrot.slane %v1242, 4
      %v1244 = vadd.f32 %v1242, %v1243
      %v1245 = vrot.slane %v1244, 2
      %v1246 = vadd.f32 %v1244, %v1245
      %v1247 = vrot.slane %v1246, 1
      %v1248 = vadd.f32 %v1246, %v1247
      %v1249 = vadd.f32 %v1211, %v1248
      %1250 = vst [vmem:[%s3] sm:$0x1] %v1249
      %v1251 = vld [vmem:[%s4] sm:$0x1]
      %v1252 = vmul.f32 %v1100, %v1100
      %v1253 = vmul.f32 %v1102, %v1102
      %v1254 = vmul.f32 %v1105, %v1105
      %v1255 = vmul.f32 %v1107, %v1107
      %v1256 = vmul.f32 %v1110, %v1110
      %v1257 = vmul.f32 %v1112, %v1112
      %v1258 = vmul.f32 %v1115, %v1115
      %v1259 = vmul.f32 %v1117, %v1117
      %v1260 = vmul.f32 %v1120, %v1120
      %v1261 = vmul.f32 %v1122, %v1122
      %v1262 = vmul.f32 %v1125, %v1125
      %v1263 = vmul.f32 %v1127, %v1127
      %v1264 = vmul.f32 %v1130, %v1130
      %v1265 = vmul.f32 %v1132, %v1132
      %v1266 = vmul.f32 %v1135, %v1135
      %v1267 = vmul.f32 %v1137, %v1137
      %v1268 = vmul.f32 %v1140, %v1140
      %v1269 = vmul.f32 %v1142, %v1142
      %v1270 = vmul.f32 %v1145, %v1145
      %v1271 = vmul.f32 %v1147, %v1147
      %v1272 = vmul.f32 %v1150, %v1150
      %v1273 = vmul.f32 %v1152, %v1152
      %v1274 = vmul.f32 %v1155, %v1155
      %v1275 = vmul.f32 %v1157, %v1157
      %v1276 = vmul.f32 %v1160, %v1160
      %v1277 = vmul.f32 %v1162, %v1162
      %v1278 = vmul.f32 %v1165, %v1165
      %v1279 = vmul.f32 %v1167, %v1167
      %v1280 = vmul.f32 %v1170, %v1170
      %v1281 = vmul.f32 %v1172, %v1172
      %v1282 = vmul.f32 %v1175, %v1175
      %v1283 = vmul.f32 %v1177, %v1177
      %v1284 = vadd.f32 %v1252, %v1253
      %v1285 = vadd.f32 %v1284, %v1254
      %v1286 = vadd.f32 %v1285, %v1255
      %v1287 = vadd.f32 %v1286, %v1256
      %v1288 = vadd.f32 %v1287, %v1257
      %v1289 = vadd.f32 %v1288, %v1258
      %v1290 = vadd.f32 %v1289, %v1259
      %v1291 = vadd.f32 %v1290, %v1260
      %v1292 = vadd.f32 %v1291, %v1261
      %v1293 = vadd.f32 %v1292, %v1262
      %v1294 = vadd.f32 %v1293, %v1263
      %v1295 = vadd.f32 %v1294, %v1264
      %v1296 = vadd.f32 %v1295, %v1265
      %v1297 = vadd.f32 %v1296, %v1266
      %v1298 = vadd.f32 %v1297, %v1267
      %v1299 = vadd.f32 %v1298, %v1268
      %v1300 = vadd.f32 %v1299, %v1269
      %v1301 = vadd.f32 %v1300, %v1270
      %v1302 = vadd.f32 %v1301, %v1271
      %v1303 = vadd.f32 %v1302, %v1272
      %v1304 = vadd.f32 %v1303, %v1273
      %v1305 = vadd.f32 %v1304, %v1274
      %v1306 = vadd.f32 %v1305, %v1275
      %v1307 = vadd.f32 %v1306, %v1276
      %v1308 = vadd.f32 %v1307, %v1277
      %v1309 = vadd.f32 %v1308, %v1278
      %v1310 = vadd.f32 %v1309, %v1279
      %v1311 = vadd.f32 %v1310, %v1280
      %v1312 = vadd.f32 %v1311, %v1281
      %v1313 = vadd.f32 %v1312, %v1282
      %v1314 = vadd.f32 %v1313, %v1283
      %v1315 = vrot.slane %v1314, 4
      %v1316 = vadd.f32 %v1314, %v1315
      %v1317 = vrot.slane %v1316, 2
      %v1318 = vadd.f32 %v1316, %v1317
      %v1319 = vrot.slane %v1318, 1
      %v1320 = vadd.f32 %v1318, %v1319
      %v1321 = vadd.f32 %v1251, %v1320
      %1322 = vst [vmem:[%s4] sm:$0x1] %v1321
      %s1323 = smul.u32 32, %s16
      %p1324 = scmp.lt.s32.totalorder %s1323, 63
      %s1325 = scalar_select %p1324, %s1323, 63
      %s1326 = smul.addr %s1325, 8
      %s1327 = scalar_lea.vmem %s2, %s1326
      // Predicated region
      $region33: #{discriminator_forward.9} parent=27 // pred_check
        %p1328 = pneg %p81
      $region34: #{discriminator_forward.9} parent=27 // pred_check_branch
        %1330 = sbr.rel (%p1328) target = $region36
      $region35: #{discriminator_forward.9} parent=27 // pred_region
        %s1331 = smul.u32 32, %s16
      $region36: #{discriminator_forward.9} parent=27 // pred_fallthru
        _
      // Predicated region
      $region37: #{discriminator_forward.9} parent=27 // pred_check
        %p1332 = pneg %p102
      $region38: #{discriminator_forward.9} parent=27 // pred_check_branch
        %1334 = sbr.rel (%p1332) target = $region40
      $region39: #{discriminator_forward.9} parent=27 // pred_region
        _
      $region40: #{discriminator_forward.9} parent=27 // pred_fallthru
        _
      // Predicated region
      $region41: #{discriminator_forward.9} parent=27 // pred_check
        %p1335 = pneg %p123
      $region42: #{discriminator_forward.9} parent=27 // pred_check_branch
        %1337 = sbr.rel (%p1335) target = $region44
      $region43: #{discriminator_forward.9} parent=27 // pred_region
        _
      $region44: #{discriminator_forward.9} parent=27 // pred_fallthru
        _
      // Predicated region
      $region45: #{discriminator_forward.9} parent=27 // pred_check
        %p1338 = pneg %p102
      $region46: #{discriminator_forward.9} parent=27 // pred_check_branch
        %1340 = sbr.rel (%p1338) target = $region48
      $region47: #{discriminator_forward.9} parent=27 // pred_region
        _
      $region48: #{discriminator_forward.9} parent=27 // pred_fallthru
        _
      // Predicated region
      $region49: #{discriminator_forward.9} parent=27 // pred_check
        %p1341 = pneg %p123
      $region50: #{discriminator_forward.9} parent=27 // pred_check_branch
        %1343 = sbr.rel (%p1341) target = $region52
      $region51: #{discriminator_forward.9} parent=27 // pred_region
        _
      $region52: #{discriminator_forward.9} parent=27 // pred_fallthru
        _
    $region28: #{discriminator_forward.9} parent=5 // pred_fallthru
      _
    %p1344 = scmp.le.s32.totalorder 2, %s11
    // Predicated region
    $region53: #{discriminator_forward.9} parent=5 // pred_check
      %p1345 = pneg %p1344
    $region54: #{discriminator_forward.9} parent=5 // pred_check_branch
      %1347 = sbr.rel (%p1345) target = $region56
    $region55: #{discriminator_forward.9} parent=5 // pred_region
      %s1348 = ssub.s32 %s11, 2
      // Predicated region
      $region57: #{discriminator_forward.9} parent=55 // pred_check
        %p1349 = pneg %p87
      $region58: #{discriminator_forward.9} parent=55 // pred_check_branch
        %1351 = sbr.rel (%p1349) target = $region60
      $region59: #{discriminator_forward.9} parent=55 // pred_region
        %s1352 = smul.u32 32, %s17
        %p1353 = scmp.lt.s32.totalorder %s1352, 63
        %s1354 = scalar_select %p1353, %s1352, 63
        %s1355 = smul.addr %s1354, 8
        %s1356 = scalar_lea.vmem %s2, %s1355
      $region60: #{discriminator_forward.9} parent=55 // pred_fallthru
        _
    $region56: #{discriminator_forward.9} parent=5 // pred_fallthru
      _
  $region6: #{discriminator_forward.9} parent=0 // loop_footer
    %s15 = sadd.s32 1, %s11
  $region7: #{discriminator_forward.9} parent=0 // loop_footer_branch
    %10 = sbr.rel target = $region3
  $region8: #{discriminator_forward.9} parent=0 // loop_exit
    _

// kernel: discriminator_forward.12
$region0: #{discriminator_forward.12}
  #allocation0 [shape = 'u32[]', space=smem, size = 0x4, offset = 0x4, fixed_abs, tag = 'smem constant byte address 0x4 - core index']
  #allocation1 [shape = 'u32[72,128]{1,0:T(1,128)}', space=vmem, size = 0x9000, scoped, tag = 'internal scratch']
  %s0 = inlined_call_operand.vmem [shape: f32[112,128], index: 0, kind: input, shape index: {}]
  %s1 = inlined_call_operand.vmem [shape: f32[1,128], index: 1, kind: input, shape index: {}]
  %s2 = inlined_call_operand.vmem [shape: f32[1,128], index: 2, kind: input, shape index: {}]
  %s3 = inlined_call_operand.vmem [shape: bf16[112,128], index: 3, kind: output, shape index: {}]
  %s4 = sld [smem:[#allocation0]]
  $region22: #{discriminator_forward.12} parent=0
    _
  %s6 = ssub.s32 1, %s4
  %s7 = scalar_select 0, %s6, %s4
  // Predicated region
  $region2: #{discriminator_forward.12} parent=0 // pred_check
    _
  $region3: #{discriminator_forward.12} parent=0 // pred_check_branch
    %9 = sbr.rel (0) target = $region5
  $region4: #{discriminator_forward.12} parent=0 // pred_region
    _
  $region5: #{discriminator_forward.12} parent=0 // pred_fallthru
    _
  // Predicated region
  $region6: #{discriminator_forward.12} parent=0 // pred_check
    _
  $region7: #{discriminator_forward.12} parent=0 // pred_check_branch
    %11 = sbr.rel (0) target = $region9
  $region8: #{discriminator_forward.12} parent=0 // pred_region
    _
  $region9: #{discriminator_forward.12} parent=0 // pred_fallthru
    _
  // Predicated region
  $region10: #{discriminator_forward.12} parent=0 // pred_check
    _
  $region11: #{discriminator_forward.12} parent=0 // pred_check_branch
    %13 = sbr.rel (0) target = $region13
  $region12: #{discriminator_forward.12} parent=0 // pred_region
    _
  $region13: #{discriminator_forward.12} parent=0 // pred_fallthru
    _
  %v14 = vld [vmem:[%s0] sm:$0xff]
  %v15 = vld [vmem:[%s0 + $0x8] sm:$0xff]
  %v16 = vld [vmem:[%s0 + $0x10] sm:$0xff]
  %v17 = vld [vmem:[%s0 + $0x18] sm:$0xff]
  %v18 = vld [vmem:[%s0 + $0x20] sm:$0xff]
  %v19 = vld [vmem:[%s0 + $0x28] sm:$0xff]
  %v20 = vld [vmem:[%s0 + $0x30] sm:$0xff]
  %v21 = vld [vmem:[%s0 + $0x38] sm:$0xff]
  %v22 = vld [vmem:[%s0 + $0x40] sm:$0xff]
  %v23 = vld [vmem:[%s0 + $0x48] sm:$0xff]
  %v24 = vld [vmem:[%s0 + $0x50] sm:$0xff]
  %v25 = vld [vmem:[%s0 + $0x58] sm:$0xff]
  %v26 = vld [vmem:[%s0 + $0x60] sm:$0xff]
  %v27 = vld [vmem:[%s0 + $0x68] sm:$0xff]
  %v28 = vld [vmem:[%s1] sm:$0x1]
  %v30 = vperm.slane %v28, 0
  %v32 = vmul.f32 %v14, %v30
  %v33 = vmul.f32 %v15, %v30
  %v34 = vmul.f32 %v16, %v30
  %v35 = vmul.f32 %v17, %v30
  %v36 = vmul.f32 %v18, %v30
  %v37 = vmul.f32 %v19, %v30
  %v38 = vmul.f32 %v20, %v30
  %v39 = vmul.f32 %v21, %v30
  %v40 = vmul.f32 %v22, %v30
  %v41 = vmul.f32 %v23, %v30
  %v42 = vmul.f32 %v24, %v30
  %v43 = vmul.f32 %v25, %v30
  %v44 = vmul.f32 %v26, %v30
  %v45 = vmul.f32 %v27, %v30
  %v46 = vld [vmem:[%s2] sm:$0x1]
  %v48 = vperm.slane %v46, 0
  %v50 = vadd.f32 %v32, %v48
  %v51 = vadd.f32 %v33, %v48
  %v52 = vadd.f32 %v34, %v48
  %v53 = vadd.f32 %v35, %v48
  %v54 = vadd.f32 %v36, %v48
  %v55 = vadd.f32 %v37, %v48
  %v56 = vadd.f32 %v38, %v48
  %v57 = vadd.f32 %v39, %v48
  %v58 = vadd.f32 %v40, %v48
  %v59 = vadd.f32 %v41, %v48
  %v60 = vadd.f32 %v42, %v48
  %v61 = vadd.f32 %v43, %v48
  %v62 = vadd.f32 %v44, %v48
  %v63 = vadd.f32 %v45, %v48
  %vm64 = vcmp.ge.f32.partialorder %v50, 0.0
  %vm65 = vcmp.ge.f32.partialorder %v51, 0.0
  %vm66 = vcmp.ge.f32.partialorder %v52, 0.0
  %vm67 = vcmp.ge.f32.partialorder %v53, 0.0
  %vm68 = vcmp.ge.f32.partialorder %v54, 0.0
  %vm69 = vcmp.ge.f32.partialorder %v55, 0.0
  %vm70 = vcmp.ge.f32.partialorder %v56, 0.0
  %vm71 = vcmp.ge.f32.partialorder %v57, 0.0
  %vm72 = vcmp.ge.f32.partialorder %v58, 0.0
  %vm73 = vcmp.ge.f32.partialorder %v59, 0.0
  %vm74 = vcmp.ge.f32.partialorder %v60, 0.0
  %vm75 = vcmp.ge.f32.partialorder %v61, 0.0
  %vm76 = vcmp.ge.f32.partialorder %v62, 0.0
  %vm77 = vcmp.ge.f32.partialorder %v63, 0.0
  %v78 = vmul.f32 %v50, 0.2
  %v79 = vmul.f32 %v51, 0.2
  %v80 = vmul.f32 %v52, 0.2
  %v81 = vmul.f32 %v53, 0.2
  %v82 = vmul.f32 %v54, 0.2
  %v83 = vmul.f32 %v55, 0.2
  %v84 = vmul.f32 %v56, 0.2
  %v85 = vmul.f32 %v57, 0.2
  %v86 = vmul.f32 %v58, 0.2
  %v87 = vmul.f32 %v59, 0.2
  %v88 = vmul.f32 %v60, 0.2
  %v89 = vmul.f32 %v61, 0.2
  %v90 = vmul.f32 %v62, 0.2
  %v91 = vmul.f32 %v63, 0.2
  %v92 = vsel %vm64, %v50, %v78
  %v93 = vsel %vm65, %v51, %v79
  %v94 = vsel %vm66, %v52, %v80
  %v95 = vsel %vm67, %v53, %v81
  %v96 = vsel %vm68, %v54, %v82
  %v97 = vsel %vm69, %v55, %v83
  %v98 = vsel %vm70, %v56, %v84
  %v99 = vsel %vm71, %v57, %v85
  %v100 = vsel %vm72, %v58, %v86
  %v101 = vsel %vm73, %v59, %v87
  %v102 = vsel %vm74, %v60, %v88
  %v103 = vsel %vm75, %v61, %v89
  %v104 = vsel %vm76, %v62, %v90
  %v105 = vsel %vm77, %v63, %v91
  %v106 = vpack.c.bf16 %v92, %v92
  %v107 = vpack.c.bf16 %v93, %v93
  %v108 = vpack.c.bf16 %v94, %v94
  %v109 = vpack.c.bf16 %v95, %v95
  %v110 = vpack.c.bf16 %v96, %v96
  %v111 = vpack.c.bf16 %v97, %v97
  %v112 = vpack.c.bf16 %v98, %v98
  %v113 = vpack.c.bf16 %v99, %v99
  %v114 = vpack.c.bf16 %v100, %v100
  %v115 = vpack.c.bf16 %v101, %v101
  %v116 = vpack.c.bf16 %v102, %v102
  %v117 = vpack.c.bf16 %v103, %v103
  %v118 = vpack.c.bf16 %v104, %v104
  %v119 = vpack.c.bf16 %v105, %v105
  %120 = vst [vmem:[%s3] sm:$0xf] %v106
  %121 = vst [vmem:[%s3 + $0x4] sm:$0xf] %v107
  %122 = vst [vmem:[%s3 + $0x8] sm:$0xf] %v108
  %123 = vst [vmem:[%s3 + $0xc] sm:$0xf] %v109
  %124 = vst [vmem:[%s3 + $0x10] sm:$0xf] %v110
  %125 = vst [vmem:[%s3 + $0x14] sm:$0xf] %v111
  %126 = vst [vmem:[%s3 + $0x18] sm:$0xf] %v112
  %127 = vst [vmem:[%s3 + $0x1c] sm:$0xf] %v113
  %128 = vst [vmem:[%s3 + $0x20] sm:$0xf] %v114
  %129 = vst [vmem:[%s3 + $0x24] sm:$0xf] %v115
  %130 = vst [vmem:[%s3 + $0x28] sm:$0xf] %v116
  %131 = vst [vmem:[%s3 + $0x2c] sm:$0xf] %v117
  %132 = vst [vmem:[%s3 + $0x30] sm:$0xf] %v118
  %133 = vst [vmem:[%s3 + $0x34] sm:$0xf] %v119
  // Predicated region
  $region14: #{discriminator_forward.12} parent=0 // pred_check
    _
  $region15: #{discriminator_forward.12} parent=0 // pred_check_branch
    %135 = sbr.rel (0) target = $region17
  $region16: #{discriminator_forward.12} parent=0 // pred_region
    _
  $region17: #{discriminator_forward.12} parent=0 // pred_fallthru
    _
  // Predicated region
  $region18: #{discriminator_forward.12} parent=0 // pred_check
    _
  $region19: #{discriminator_forward.12} parent=0 // pred_check_branch
    %137 = sbr.rel (0) target = $region21
  $region20: #{discriminator_forward.12} parent=0 // pred_region
    _
  $region21: #{discriminator_forward.12} parent=0 // pred_fallthru
    _

// kernel: discriminator_forward.11
$region0: #{discriminator_forward.11}
  #allocation0 [shape = 'u32[]', space=smem, size = 0x4, offset = 0x4, fixed_abs, tag = 'smem constant byte address 0x4 - core index']
  #allocation1 [shape = 'u32[72,128]{1,0:T(1,128)}', space=vmem, size = 0x9000, scoped, tag = 'internal scratch']
  %s0 = inlined_call_operand.vmem [shape: bf16[112,800], index: 0, kind: input, shape index: {}]
  %s1 = inlined_call_operand.vmem [shape: bf16[800,128], index: 1, kind: input, shape index: {}]
  %s2 = inlined_call_operand.vmem [shape: f32[112,128], index: 2, kind: output, shape index: {0}]
  %s3 = inlined_call_operand.vmem [shape: f32[1,128], index: 3, kind: output, shape index: {1}]
  %s4 = inlined_call_operand.vmem [shape: f32[1,128], index: 4, kind: output, shape index: {2}]
  %5 = xla_tuple %s2, %s3, %s4
  %s6 = sld [smem:[#allocation0]]
  $region38: #{discriminator_forward.11} parent=0
    _
  %s8 = ssub.s32 1, %s6
  %s9 = scalar_select 0, %s8, %s6
  // Predicated region
  $region2: #{discriminator_forward.11} parent=0 // pred_check
    _
  $region3: #{discriminator_forward.11} parent=0 // pred_check_branch
    %11 = sbr.rel (0) target = $region5
  $region4: #{discriminator_forward.11} parent=0 // pred_region
    _
  $region5: #{discriminator_forward.11} parent=0 // pred_fallthru
    _
  // Predicated region
  $region6: #{discriminator_forward.11} parent=0 // pred_check
    _
  $region7: #{discriminator_forward.11} parent=0 // pred_check_branch
    %13 = sbr.rel (0) target = $region9
  $region8: #{discriminator_forward.11} parent=0 // pred_region
    _
  $region9: #{discriminator_forward.11} parent=0 // pred_fallthru
    _
  %p15 = scmp.eq.s32.totalorder 0, 0
  // Predicated region
  $region10: #{discriminator_forward.11} parent=0 // pred_check
    %p16 = pneg %p15
  $region11: #{discriminator_forward.11} parent=0 // pred_check_branch
    %18 = sbr.rel (%p16) target = $region13
  $region12: #{discriminator_forward.11} parent=0 // pred_region
    %19 = vst [vmem:[%s3] sm:$0x1] 0.0
    %20 = vst [vmem:[%s4] sm:$0x1] 0.0
  $region13: #{discriminator_forward.11} parent=0 // pred_fallthru
    _
  %v21 = vld [vmem:[%s0] sm:$0xff]
  %v22 = vld [vmem:[%s0 + $0x8] sm:$0xff]
  %v23 = vld [vmem:[%s0 + $0x10] sm:$0xff]
  %v24 = vld [vmem:[%s0 + $0x18] sm:$0xf]
  %v25 = vld [vmem:[%s0 + $0x1c] sm:$0xff]
  %v26 = vld [vmem:[%s0 + $0x24] sm:$0xff]
  %v27 = vld [vmem:[%s0 + $0x2c] sm:$0xff]
  %v28 = vld [vmem:[%s0 + $0x34] sm:$0xf]
  %v29 = vld [vmem:[%s0 + $0x38] sm:$0xff]
  %v30 = vld [vmem:[%s0 + $0x40] sm:$0xff]
  %v31 = vld [vmem:[%s0 + $0x48] sm:$0xff]
  %v32 = vld [vmem:[%s0 + $0x50] sm:$0xf]
  %v33 = vld [vmem:[%s0 + $0x54] sm:$0xff]
  %v34 = vld [vmem:[%s0 + $0x5c] sm:$0xff]
  %v35 = vld [vmem:[%s0 + $0x64] sm:$0xff]
  %v36 = vld [vmem:[%s0 + $0x6c] sm:$0xf]
  %v37 = vld [vmem:[%s0 + $0x70] sm:$0xff]
  %v38 = vld [vmem:[%s0 + $0x78] sm:$0xff]
  %v39 = vld [vmem:[%s0 + $0x80] sm:$0xff]
  %v40 = vld [vmem:[%s0 + $0x88] sm:$0xf]
  %v41 = vld [vmem:[%s0 + $0x8c] sm:$0xff]
  %v42 = vld [vmem:[%s0 + $0x94] sm:$0xff]
  %v43 = vld [vmem:[%s0 + $0x9c] sm:$0xff]
  %v44 = vld [vmem:[%s0 + $0xa4] sm:$0xf]
  %v45 = vld [vmem:[%s0 + $0xa8] sm:$0xff]
  %v46 = vld [vmem:[%s0 + $0xb0] sm:$0xff]
  %v47 = vld [vmem:[%s0 + $0xb8] sm:$0xff]
  %v48 = vld [vmem:[%s0 + $0xc0] sm:$0xf]
  %v49 = vld [vmem:[%s0 + $0xc4] sm:$0xff]
  %v50 = vld [vmem:[%s0 + $0xcc] sm:$0xff]
  %v51 = vld [vmem:[%s0 + $0xd4] sm:$0xff]
  %v52 = vld [vmem:[%s0 + $0xdc] sm:$0xf]
  %v53 = vld [vmem:[%s0 + $0xe0] sm:$0xff]
  %v54 = vld [vmem:[%s0 + $0xe8] sm:$0xff]
  %v55 = vld [vmem:[%s0 + $0xf0] sm:$0xff]
  %v56 = vld [vmem:[%s0 + $0xf8] sm:$0xf]
  %v57 = vld [vmem:[%s0 + $0xfc] sm:$0xff]
  %v58 = vld [vmem:[%s0 + $0x104] sm:$0xff]
  %v59 = vld [vmem:[%s0 + $0x10c] sm:$0xff]
  %v60 = vld [vmem:[%s0 + $0x114] sm:$0xf]
  %v61 = vld [vmem:[%s0 + $0x118] sm:$0xff]
  %v62 = vld [vmem:[%s0 + $0x120] sm:$0xff]
  %v63 = vld [vmem:[%s0 + $0x128] sm:$0xff]
  %v64 = vld [vmem:[%s0 + $0x130] sm:$0xf]
  %v65 = vld [vmem:[%s0 + $0x134] sm:$0xff]
  %v66 = vld [vmem:[%s0 + $0x13c] sm:$0xff]
  %v67 = vld [vmem:[%s0 + $0x144] sm:$0xff]
  %v68 = vld [vmem:[%s0 + $0x14c] sm:$0xf]
  %v69 = vld [vmem:[%s0 + $0x150] sm:$0xff]
  %v70 = vld [vmem:[%s0 + $0x158] sm:$0xff]
  %v71 = vld [vmem:[%s0 + $0x160] sm:$0xff]
  %v72 = vld [vmem:[%s0 + $0x168] sm:$0xf]
  %v73 = vld [vmem:[%s0 + $0x16c] sm:$0xff]
  %v74 = vld [vmem:[%s0 + $0x174] sm:$0xff]
  %v75 = vld [vmem:[%s0 + $0x17c] sm:$0xff]
  %v76 = vld [vmem:[%s0 + $0x184] sm:$0xf]
  %v77 = vld [vmem:[%s1] sm:$0xf]
  %v78 = vld [vmem:[%s1 + $0x4] sm:$0xf]
  %v79 = vld [vmem:[%s1 + $0x8] sm:$0xf]
  %v80 = vld [vmem:[%s1 + $0xc] sm:$0xf]
  %v81 = vld [vmem:[%s1 + $0x10] sm:$0xf]
  %v82 = vld [vmem:[%s1 + $0x14] sm:$0xf]
  %v83 = vld [vmem:[%s1 + $0x18] sm:$0xf]
  %v84 = vld [vmem:[%s1 + $0x1c] sm:$0xf]
  %v85 = vld [vmem:[%s1 + $0x20] sm:$0xf]
  %v86 = vld [vmem:[%s1 + $0x24] sm:$0xf]
  %v87 = vld [vmem:[%s1 + $0x28] sm:$0xf]
  %v88 = vld [vmem:[%s1 + $0x2c] sm:$0xf]
  %v89 = vld [vmem:[%s1 + $0x30] sm:$0xf]
  %v90 = vld [vmem:[%s1 + $0x34] sm:$0xf]
  %v91 = vld [vmem:[%s1 + $0x38] sm:$0xf]
  %v92 = vld [vmem:[%s1 + $0x3c] sm:$0xf]
  %v93 = vld [vmem:[%s1 + $0x40] sm:$0xf]
  %v94 = vld [vmem:[%s1 + $0x44] sm:$0xf]
  %v95 = vld [vmem:[%s1 + $0x48] sm:$0xf]
  %v96 = vld [vmem:[%s1 + $0x4c] sm:$0xf]
  %v97 = vld [vmem:[%s1 + $0x50] sm:$0xf]
  %v98 = vld [vmem:[%s1 + $0x54] sm:$0xf]
  %v99 = vld [vmem:[%s1 + $0x58] sm:$0xf]
  %v100 = vld [vmem:[%s1 + $0x5c] sm:$0xf]
  %v101 = vld [vmem:[%s1 + $0x60] sm:$0xf]
  %v102 = vld [vmem:[%s1 + $0x64] sm:$0xf]
  %v103 = vld [vmem:[%s1 + $0x68] sm:$0xf]
  %v104 = vld [vmem:[%s1 + $0x6c] sm:$0xf]
  %v105 = vld [vmem:[%s1 + $0x70] sm:$0xf]
  %v106 = vld [vmem:[%s1 + $0x74] sm:$0xf]
  %v107 = vld [vmem:[%s1 + $0x78] sm:$0xf]
  %v108 = vld [vmem:[%s1 + $0x7c] sm:$0xf]
  %v109 = vld [vmem:[%s1 + $0x80] sm:$0xf]
  %v110 = vld [vmem:[%s1 + $0x84] sm:$0xf]
  %v111 = vld [vmem:[%s1 + $0x88] sm:$0xf]
  %v112 = vld [vmem:[%s1 + $0x8c] sm:$0xf]
  %v113 = vld [vmem:[%s1 + $0x90] sm:$0xf]
  %v114 = vld [vmem:[%s1 + $0x94] sm:$0xf]
  %v115 = vld [vmem:[%s1 + $0x98] sm:$0xf]
  %v116 = vld [vmem:[%s1 + $0x9c] sm:$0xf]
  %v117 = vld [vmem:[%s1 + $0xa0] sm:$0xf]
  %v118 = vld [vmem:[%s1 + $0xa4] sm:$0xf]
  %v119 = vld [vmem:[%s1 + $0xa8] sm:$0xf]
  %v120 = vld [vmem:[%s1 + $0xac] sm:$0xf]
  %v121 = vld [vmem:[%s1 + $0xb0] sm:$0xf]
  %v122 = vld [vmem:[%s1 + $0xb4] sm:$0xf]
  %v123 = vld [vmem:[%s1 + $0xb8] sm:$0xf]
  %v124 = vld [vmem:[%s1 + $0xbc] sm:$0xf]
  %v125 = vld [vmem:[%s1 + $0xc0] sm:$0xf]
  %v126 = vld [vmem:[%s1 + $0xc4] sm:$0xf]
  %v127 = vld [vmem:[%s1 + $0xc8] sm:$0xf]
  %v128 = vld [vmem:[%s1 + $0xcc] sm:$0xf]
  %v129 = vld [vmem:[%s1 + $0xd0] sm:$0xf]
  %v130 = vld [vmem:[%s1 + $0xd4] sm:$0xf]
  %v131 = vld [vmem:[%s1 + $0xd8] sm:$0xf]
  %v132 = vld [vmem:[%s1 + $0xdc] sm:$0xf]
  %v133 = vld [vmem:[%s1 + $0xe0] sm:$0xf]
  %v134 = vld [vmem:[%s1 + $0xe4] sm:$0xf]
  %v135 = vld [vmem:[%s1 + $0xe8] sm:$0xf]
  %v136 = vld [vmem:[%s1 + $0xec] sm:$0xf]
  %v137 = vld [vmem:[%s1 + $0xf0] sm:$0xf]
  %v138 = vld [vmem:[%s1 + $0xf4] sm:$0xf]
  %v139 = vld [vmem:[%s1 + $0xf8] sm:$0xf]
  %v140 = vld [vmem:[%s1 + $0xfc] sm:$0xf]
  %v141 = vld [vmem:[%s1 + $0x100] sm:$0xf]
  %v142 = vld [vmem:[%s1 + $0x104] sm:$0xf]
  %v143 = vld [vmem:[%s1 + $0x108] sm:$0xf]
  %v144 = vld [vmem:[%s1 + $0x10c] sm:$0xf]
  %v145 = vld [vmem:[%s1 + $0x110] sm:$0xf]
  %v146 = vld [vmem:[%s1 + $0x114] sm:$0xf]
  %v147 = vld [vmem:[%s1 + $0x118] sm:$0xf]
  %v148 = vld [vmem:[%s1 + $0x11c] sm:$0xf]
  %v149 = vld [vmem:[%s1 + $0x120] sm:$0xf]
  %v150 = vld [vmem:[%s1 + $0x124] sm:$0xf]
  %v151 = vld [vmem:[%s1 + $0x128] sm:$0xf]
  %v152 = vld [vmem:[%s1 + $0x12c] sm:$0xf]
  %v153 = vld [vmem:[%s1 + $0x130] sm:$0xf]
  %v154 = vld [vmem:[%s1 + $0x134] sm:$0xf]
  %v155 = vld [vmem:[%s1 + $0x138] sm:$0xf]
  %v156 = vld [vmem:[%s1 + $0x13c] sm:$0xf]
  %v157 = vld [vmem:[%s1 + $0x140] sm:$0xf]
  %v158 = vld [vmem:[%s1 + $0x144] sm:$0xf]
  %v159 = vld [vmem:[%s1 + $0x148] sm:$0xf]
  %v160 = vld [vmem:[%s1 + $0x14c] sm:$0xf]
  %v161 = vld [vmem:[%s1 + $0x150] sm:$0xf]
  %v162 = vld [vmem:[%s1 + $0x154] sm:$0xf]
  %v163 = vld [vmem:[%s1 + $0x158] sm:$0xf]
  %v164 = vld [vmem:[%s1 + $0x15c] sm:$0xf]
  %v165 = vld [vmem:[%s1 + $0x160] sm:$0xf]
  %v166 = vld [vmem:[%s1 + $0x164] sm:$0xf]
  %v167 = vld [vmem:[%s1 + $0x168] sm:$0xf]
  %v168 = vld [vmem:[%s1 + $0x16c] sm:$0xf]
  %v169 = vld [vmem:[%s1 + $0x170] sm:$0xf]
  %v170 = vld [vmem:[%s1 + $0x174] sm:$0xf]
  %v171 = vld [vmem:[%s1 + $0x178] sm:$0xf]
  %v172 = vld [vmem:[%s1 + $0x17c] sm:$0xf]
  %v173 = vld [vmem:[%s1 + $0x180] sm:$0xf]
  %v174 = vld [vmem:[%s1 + $0x184] sm:$0xf]
  %v175 = vld [vmem:[%s1 + $0x188] sm:$0xf]
  %v176 = vld [vmem:[%s1 + $0x18c] sm:$0xf]
  %v233 = vunpack.c.l.b16 %v21
  %v234 = vunpack.c.h.b16 %v21
  %v235 = vunpack.c.l.b16 %v22
  %v236 = vunpack.c.h.b16 %v22
  %v237 = vunpack.c.l.b16 %v23
  %v238 = vunpack.c.h.b16 %v23
  %v239 = vunpack.c.l.b16 %v24
  %v240 = vunpack.c.l.b16 %v25
  %v241 = vunpack.c.h.b16 %v25
  %v242 = vunpack.c.l.b16 %v26
  %v243 = vunpack.c.h.b16 %v26
  %v244 = vunpack.c.l.b16 %v27
  %v245 = vunpack.c.h.b16 %v27
  %v246 = vunpack.c.l.b16 %v28
  %v247 = vunpack.c.l.b16 %v29
  %v248 = vunpack.c.h.b16 %v29
  %v249 = vunpack.c.l.b16 %v30
  %v250 = vunpack.c.h.b16 %v30
  %v251 = vunpack.c.l.b16 %v31
  %v252 = vunpack.c.h.b16 %v31
  %v253 = vunpack.c.l.b16 %v32
  %v254 = vunpack.c.l.b16 %v33
  %v255 = vunpack.c.h.b16 %v33
  %v256 = vunpack.c.l.b16 %v34
  %v257 = vunpack.c.h.b16 %v34
  %v258 = vunpack.c.l.b16 %v35
  %v259 = vunpack.c.h.b16 %v35
  %v260 = vunpack.c.l.b16 %v36
  %v261 = vunpack.c.l.b16 %v37
  %v262 = vunpack.c.h.b16 %v37
  %v263 = vunpack.c.l.b16 %v38
  %v264 = vunpack.c.h.b16 %v38
  %v265 = vunpack.c.l.b16 %v39
  %v266 = vunpack.c.h.b16 %v39
  %v267 = vunpack.c.l.b16 %v40
  %v268 = vunpack.c.l.b16 %v41
  %v269 = vunpack.c.h.b16 %v41
  %v270 = vunpack.c.l.b16 %v42
  %v271 = vunpack.c.h.b16 %v42
  %v272 = vunpack.c.l.b16 %v43
  %v273 = vunpack.c.h.b16 %v43
  %v274 = vunpack.c.l.b16 %v44
  %v275 = vunpack.c.l.b16 %v45
  %v276 = vunpack.c.h.b16 %v45
  %v277 = vunpack.c.l.b16 %v46
  %v278 = vunpack.c.h.b16 %v46
  %v279 = vunpack.c.l.b16 %v47
  %v280 = vunpack.c.h.b16 %v47
  %v281 = vunpack.c.l.b16 %v48
  %v282 = vunpack.c.l.b16 %v49
  %v283 = vunpack.c.h.b16 %v49
  %v284 = vunpack.c.l.b16 %v50
  %v285 = vunpack.c.h.b16 %v50
  %v286 = vunpack.c.l.b16 %v51
  %v287 = vunpack.c.h.b16 %v51
  %v288 = vunpack.c.l.b16 %v52
  %v289 = vunpack.c.l.b16 %v53
  %v290 = vunpack.c.h.b16 %v53
  %v291 = vunpack.c.l.b16 %v54
  %v292 = vunpack.c.h.b16 %v54
  %v293 = vunpack.c.l.b16 %v55
  %v294 = vunpack.c.h.b16 %v55
  %v295 = vunpack.c.l.b16 %v56
  %v296 = vunpack.c.l.b16 %v57
  %v297 = vunpack.c.h.b16 %v57
  %v298 = vunpack.c.l.b16 %v58
  %v299 = vunpack.c.h.b16 %v58
  %v300 = vunpack.c.l.b16 %v59
  %v301 = vunpack.c.h.b16 %v59
  %v302 = vunpack.c.l.b16 %v60
  %v303 = vunpack.c.l.b16 %v61
  %v304 = vunpack.c.h.b16 %v61
  %v305 = vunpack.c.l.b16 %v62
  %v306 = vunpack.c.h.b16 %v62
  %v307 = vunpack.c.l.b16 %v63
  %v308 = vunpack.c.h.b16 %v63
  %v309 = vunpack.c.l.b16 %v64
  %v310 = vunpack.c.l.b16 %v65
  %v311 = vunpack.c.h.b16 %v65
  %v312 = vunpack.c.l.b16 %v66
  %v313 = vunpack.c.h.b16 %v66
  %v314 = vunpack.c.l.b16 %v67
  %v315 = vunpack.c.h.b16 %v67
  %v316 = vunpack.c.l.b16 %v68
  %v317 = vunpack.c.l.b16 %v69
  %v318 = vunpack.c.h.b16 %v69
  %v319 = vunpack.c.l.b16 %v70
  %v320 = vunpack.c.h.b16 %v70
  %v321 = vunpack.c.l.b16 %v71
  %v322 = vunpack.c.h.b16 %v71
  %v323 = vunpack.c.l.b16 %v72
  %v324 = vunpack.c.l.b16 %v73
  %v325 = vunpack.c.h.b16 %v73
  %v326 = vunpack.c.l.b16 %v74
  %v327 = vunpack.c.h.b16 %v74
  %v328 = vunpack.c.l.b16 %v75
  %v329 = vunpack.c.h.b16 %v75
  %v330 = vunpack.c.l.b16 %v76
  %v331 = vpack.c.b16 %v240, %v233
  %v332 = vpack.c.b16 %v241, %v234
  %v333 = vpack.c.b16 %v242, %v235
  %v334 = vpack.c.b16 %v243, %v236
  %v335 = vpack.c.b16 %v244, %v237
  %v336 = vpack.c.b16 %v245, %v238
  %v337 = vpack.c.b16 %v246, %v239
  %v338 = vpack.c.b16 %v254, %v247
  %v339 = vpack.c.b16 %v255, %v248
  %v340 = vpack.c.b16 %v256, %v249
  %v341 = vpack.c.b16 %v257, %v250
  %v342 = vpack.c.b16 %v258, %v251
  %v343 = vpack.c.b16 %v259, %v252
  %v344 = vpack.c.b16 %v260, %v253
  %v345 = vpack.c.b16 %v268, %v261
  %v346 = vpack.c.b16 %v269, %v262
  %v347 = vpack.c.b16 %v270, %v263
  %v348 = vpack.c.b16 %v271, %v264
  %v349 = vpack.c.b16 %v272, %v265
  %v350 = vpack.c.b16 %v273, %v266
  %v351 = vpack.c.b16 %v274, %v267
  %v352 = vpack.c.b16 %v282, %v275
  %v353 = vpack.c.b16 %v283, %v276
  %v354 = vpack.c.b16 %v284, %v277
  %v355 = vpack.c.b16 %v285, %v278
  %v356 = vpack.c.b16 %v286, %v279
  %v357 = vpack.c.b16 %v287, %v280
  %v358 = vpack.c.b16 %v288, %v281
  %v359 = vpack.c.b16 %v296, %v289
  %v360 = vpack.c.b16 %v297, %v290
  %v361 = vpack.c.b16 %v298, %v291
  %v362 = vpack.c.b16 %v299, %v292
  %v363 = vpack.c.b16 %v300, %v293
  %v364 = vpack.c.b16 %v301, %v294
  %v365 = vpack.c.b16 %v302, %v295
  %v366 = vpack.c.b16 %v310, %v303
  %v367 = vpack.c.b16 %v311, %v304
  %v368 = vpack.c.b16 %v312, %v305
  %v369 = vpack.c.b16 %v313, %v306
  %v370 = vpack.c.b16 %v314, %v307
  %v371 = vpack.c.b16 %v315, %v308
  %v372 = vpack.c.b16 %v316, %v309
  %v373 = vpack.c.b16 %v324, %v317
  %v374 = vpack.c.b16 %v325, %v318
  %v375 = vpack.c.b16 %v326, %v319
  %v376 = vpack.c.b16 %v327, %v320
  %v377 = vpack.c.b16 %v328, %v321
  %v378 = vpack.c.b16 %v329, %v322
  %v379 = vpack.c.b16 %v330, %v323
  %v522 = vunpack.c.l.b16 %v77
  %v523 = vunpack.c.l.b16 %v78
  %v524 = vunpack.c.l.b16 %v79
  %v525 = vunpack.c.l.b16 %v80
  %v526 = vunpack.c.l.b16 %v81
  %v527 = vunpack.c.l.b16 %v82
  %v528 = vunpack.c.l.b16 %v83
  %v529 = vunpack.c.l.b16 %v84
  %v530 = vunpack.c.l.b16 %v85
  %v531 = vunpack.c.l.b16 %v86
  %v532 = vunpack.c.l.b16 %v87
  %v533 = vunpack.c.l.b16 %v88
  %v534 = vunpack.c.l.b16 %v89
  %v535 = vunpack.c.l.b16 %v90
  %v536 = vunpack.c.l.b16 %v91
  %v537 = vunpack.c.l.b16 %v92
  %v538 = vunpack.c.l.b16 %v93
  %v539 = vunpack.c.l.b16 %v94
  %v540 = vunpack.c.l.b16 %v95
  %v541 = vunpack.c.l.b16 %v96
  %v542 = vunpack.c.l.b16 %v97
  %v543 = vunpack.c.l.b16 %v98
  %v544 = vunpack.c.l.b16 %v99
  %v545 = vunpack.c.l.b16 %v100
  %v546 = vunpack.c.l.b16 %v101
  %v547 = vunpack.c.l.b16 %v102
  %v548 = vunpack.c.l.b16 %v103
  %v549 = vunpack.c.l.b16 %v104
  %v550 = vunpack.c.l.b16 %v105
  %v551 = vunpack.c.l.b16 %v106
  %v552 = vunpack.c.l.b16 %v107
  %v553 = vunpack.c.l.b16 %v108
  %v554 = vunpack.c.l.b16 %v109
  %v555 = vunpack.c.l.b16 %v110
  %v556 = vunpack.c.l.b16 %v111
  %v557 = vunpack.c.l.b16 %v112
  %v558 = vunpack.c.l.b16 %v113
  %v559 = vunpack.c.l.b16 %v114
  %v560 = vunpack.c.l.b16 %v115
  %v561 = vunpack.c.l.b16 %v116
  %v562 = vunpack.c.l.b16 %v117
  %v563 = vunpack.c.l.b16 %v118
  %v564 = vunpack.c.l.b16 %v119
  %v565 = vunpack.c.l.b16 %v120
  %v566 = vunpack.c.l.b16 %v121
  %v567 = vunpack.c.l.b16 %v122
  %v568 = vunpack.c.l.b16 %v123
  %v569 = vunpack.c.l.b16 %v124
  %v570 = vunpack.c.l.b16 %v125
  %v571 = vunpack.c.l.b16 %v126
  %v572 = vunpack.c.l.b16 %v127
  %v573 = vunpack.c.l.b16 %v128
  %v574 = vunpack.c.l.b16 %v129
  %v575 = vunpack.c.l.b16 %v130
  %v576 = vunpack.c.l.b16 %v131
  %v577 = vunpack.c.l.b16 %v132
  %v578 = vunpack.c.l.b16 %v133
  %v579 = vunpack.c.l.b16 %v134
  %v580 = vunpack.c.l.b16 %v135
  %v581 = vunpack.c.l.b16 %v136
  %v582 = vunpack.c.l.b16 %v137
  %v583 = vunpack.c.l.b16 %v138
  %v584 = vunpack.c.l.b16 %v139
  %v585 = vunpack.c.l.b16 %v140
  %v586 = vunpack.c.l.b16 %v141
  %v587 = vunpack.c.l.b16 %v142
  %v588 = vunpack.c.l.b16 %v143
  %v589 = vunpack.c.l.b16 %v144
  %v590 = vunpack.c.l.b16 %v145
  %v591 = vunpack.c.l.b16 %v146
  %v592 = vunpack.c.l.b16 %v147
  %v593 = vunpack.c.l.b16 %v148
  %v594 = vunpack.c.l.b16 %v149
  %v595 = vunpack.c.l.b16 %v150
  %v596 = vunpack.c.l.b16 %v151
  %v597 = vunpack.c.l.b16 %v152
  %v598 = vunpack.c.l.b16 %v153
  %v599 = vunpack.c.l.b16 %v154
  %v600 = vunpack.c.l.b16 %v155
  %v601 = vunpack.c.l.b16 %v156
  %v602 = vunpack.c.l.b16 %v157
  %v603 = vunpack.c.l.b16 %v158
  %v604 = vunpack.c.l.b16 %v159
  %v605 = vunpack.c.l.b16 %v160
  %v606 = vunpack.c.l.b16 %v161
  %v607 = vunpack.c.l.b16 %v162
  %v608 = vunpack.c.l.b16 %v163
  %v609 = vunpack.c.l.b16 %v164
  %v610 = vunpack.c.l.b16 %v165
  %v611 = vunpack.c.l.b16 %v166
  %v612 = vunpack.c.l.b16 %v167
  %v613 = vunpack.c.l.b16 %v168
  %v614 = vunpack.c.l.b16 %v169
  %v615 = vunpack.c.l.b16 %v170
  %v616 = vunpack.c.l.b16 %v171
  %v617 = vunpack.c.l.b16 %v172
  %v618 = vunpack.c.l.b16 %v173
  %v619 = vunpack.c.l.b16 %v174
  %v620 = vunpack.c.l.b16 %v175
  %v621 = vunpack.c.l.b16 %v176
  %v622 = vpack.c.b16 %v523, %v522
  %v623 = vpack.c.b16 %v525, %v524
  %v624 = vpack.c.b16 %v527, %v526
  %v625 = vpack.c.b16 %v529, %v528
  %v626 = vpack.c.b16 %v531, %v530
  %v627 = vpack.c.b16 %v533, %v532
  %v628 = vpack.c.b16 %v535, %v534
  %v629 = vpack.c.b16 %v537, %v536
  %v630 = vpack.c.b16 %v539, %v538
  %v631 = vpack.c.b16 %v541, %v540
  %v632 = vpack.c.b16 %v543, %v542
  %v633 = vpack.c.b16 %v545, %v544
  %v634 = vpack.c.b16 %v547, %v546
  %v635 = vpack.c.b16 %v549, %v548
  %v636 = vpack.c.b16 %v551, %v550
  %v637 = vpack.c.b16 %v553, %v552
  %v638 = vpack.c.b16 %v555, %v554
  %v639 = vpack.c.b16 %v557, %v556
  %v640 = vpack.c.b16 %v559, %v558
  %v641 = vpack.c.b16 %v561, %v560
  %v642 = vpack.c.b16 %v563, %v562
  %v643 = vpack.c.b16 %v565, %v564
  %v644 = vpack.c.b16 %v567, %v566
  %v645 = vpack.c.b16 %v569, %v568
  %v646 = vpack.c.b16 %v571, %v570
  %v647 = vpack.c.b16 %v573, %v572
  %v648 = vpack.c.b16 %v575, %v574
  %v649 = vpack.c.b16 %v577, %v576
  %v650 = vpack.c.b16 %v579, %v578
  %v651 = vpack.c.b16 %v581, %v580
  %v652 = vpack.c.b16 %v583, %v582
  %v653 = vpack.c.b16 %v585, %v584
  %v654 = vpack.c.b16 %v587, %v586
  %v655 = vpack.c.b16 %v589, %v588
  %v656 = vpack.c.b16 %v591, %v590
  %v657 = vpack.c.b16 %v593, %v592
  %v658 = vpack.c.b16 %v595, %v594
  %v659 = vpack.c.b16 %v597, %v596
  %v660 = vpack.c.b16 %v599, %v598
  %v661 = vpack.c.b16 %v601, %v600
  %v662 = vpack.c.b16 %v603, %v602
  %v663 = vpack.c.b16 %v605, %v604
  %v664 = vpack.c.b16 %v607, %v606
  %v665 = vpack.c.b16 %v609, %v608
  %v666 = vpack.c.b16 %v611, %v610
  %v667 = vpack.c.b16 %v613, %v612
  %v668 = vpack.c.b16 %v615, %v614
  %v669 = vpack.c.b16 %v617, %v616
  %v670 = vpack.c.b16 %v619, %v618
  %v671 = vpack.c.b16 %v621, %v620
  %vm722 = vcmask 261120
  %v724 = vsel %vm722, %v337, 0
  %v727 = vsel %vm722, %v344, 0
  %v730 = vsel %vm722, %v351, 0
  %v733 = vsel %vm722, %v358, 0
  %v736 = vsel %vm722, %v365, 0
  %v739 = vsel %vm722, %v372, 0
  %v742 = vsel %vm722, %v379, 0
  %744 = vmatpush.bf16.msra.mxu0 %v629
  %745 = vmatpush.bf16.msra.mxu0 %v628
  %746 = vmatpush.bf16.msra.mxu0 %v627
  %747 = vmatpush.bf16.msra.mxu0 %v626
  %748 = vmatpush.bf16.msra.mxu0 %v625
  %749 = vmatpush.bf16.msra.mxu0 %v624
  %750 = vmatpush.bf16.msra.mxu0 %v623
  %751 = vmatpush.bf16.msra.mxu0 %v622
  %752 = vmatmul.bf16.gmra.mxu0 %v331
  %v753 = vpop.f32.mrf.mxu0
  %v754 = vadd.f32 0.0, %v753
  %v755 = vpop.f32.mrf.mxu0
  %v756 = vadd.f32 0.0, %v755
  %757 = vmatmul.bf16.gmra.mxu0 %v338
  %v758 = vpop.f32.mrf.mxu0
  %v759 = vadd.f32 0.0, %v758
  %v760 = vpop.f32.mrf.mxu0
  %v761 = vadd.f32 0.0, %v760
  %762 = vmatmul.bf16.gmra.mxu0 %v345
  %v763 = vpop.f32.mrf.mxu0
  %v764 = vadd.f32 0.0, %v763
  %v765 = vpop.f32.mrf.mxu0
  %v766 = vadd.f32 0.0, %v765
  %767 = vmatmul.bf16.gmra.mxu0 %v352
  %v768 = vpop.f32.mrf.mxu0
  %v769 = vadd.f32 0.0, %v768
  %v770 = vpop.f32.mrf.mxu0
  %v771 = vadd.f32 0.0, %v770
  %772 = vmatmul.bf16.gmra.mxu0 %v359
  %v773 = vpop.f32.mrf.mxu0
  %v774 = vadd.f32 0.0, %v773
  %v775 = vpop.f32.mrf.mxu0
  %v776 = vadd.f32 0.0, %v775
  %777 = vmatmul.bf16.gmra.mxu0 %v366
  %v778 = vpop.f32.mrf.mxu0
  %v779 = vadd.f32 0.0, %v778
  %v780 = vpop.f32.mrf.mxu0
  %v781 = vadd.f32 0.0, %v780
  %782 = vmatmul.bf16.gmra.mxu0 %v373
  %v783 = vpop.f32.mrf.mxu0
  %v784 = vadd.f32 0.0, %v783
  %v785 = vpop.f32.mrf.mxu0
  %v786 = vadd.f32 0.0, %v785
  %787 = vdwg.mxu0
  %788 = vmatpush.bf16.msra.mxu0 %v637
  %789 = vmatpush.bf16.msra.mxu0 %v636
  %790 = vmatpush.bf16.msra.mxu0 %v635
  %791 = vmatpush.bf16.msra.mxu0 %v634
  %792 = vmatpush.bf16.msra.mxu0 %v633
  %793 = vmatpush.bf16.msra.mxu0 %v632
  %794 = vmatpush.bf16.msra.mxu0 %v631
  %795 = vmatpush.bf16.msra.mxu0 %v630
  %796 = vmatmul.bf16.gmra.mxu0 %v332
  %v797 = vpop.f32.mrf.mxu0
  %v798 = vadd.f32 %v754, %v797
  %v799 = vpop.f32.mrf.mxu0
  %v800 = vadd.f32 %v756, %v799
  %801 = vmatmul.bf16.gmra.mxu0 %v339
  %v802 = vpop.f32.mrf.mxu0
  %v803 = vadd.f32 %v759, %v802
  %v804 = vpop.f32.mrf.mxu0
  %v805 = vadd.f32 %v761, %v804
  %806 = vmatmul.bf16.gmra.mxu0 %v346
  %v807 = vpop.f32.mrf.mxu0
  %v808 = vadd.f32 %v764, %v807
  %v809 = vpop.f32.mrf.mxu0
  %v810 = vadd.f32 %v766, %v809
  %811 = vmatmul.bf16.gmra.mxu0 %v353
  %v812 = vpop.f32.mrf.mxu0
  %v813 = vadd.f32 %v769, %v812
  %v814 = vpop.f32.mrf.mxu0
  %v815 = vadd.f32 %v771, %v814
  %816 = vmatmul.bf16.gmra.mxu0 %v360
  %v817 = vpop.f32.mrf.mxu0
  %v818 = vadd.f32 %v774, %v817
  %v819 = vpop.f32.mrf.mxu0
  %v820 = vadd.f32 %v776, %v819
  %821 = vmatmul.bf16.gmra.mxu0 %v367
  %v822 = vpop.f32.mrf.mxu0
  %v823 = vadd.f32 %v779, %v822
  %v824 = vpop.f32.mrf.mxu0
  %v825 = vadd.f32 %v781, %v824
  %826 = vmatmul.bf16.gmra.mxu0 %v374
  %v827 = vpop.f32.mrf.mxu0
  %v828 = vadd.f32 %v784, %v827
  %v829 = vpop.f32.mrf.mxu0
  %v830 = vadd.f32 %v786, %v829
  %831 = vdwg.mxu0
  %832 = vmatpush.bf16.msra.mxu0 %v645
  %833 = vmatpush.bf16.msra.mxu0 %v644
  %834 = vmatpush.bf16.msra.mxu0 %v643
  %835 = vmatpush.bf16.msra.mxu0 %v642
  %836 = vmatpush.bf16.msra.mxu0 %v641
  %837 = vmatpush.bf16.msra.mxu0 %v640
  %838 = vmatpush.bf16.msra.mxu0 %v639
  %839 = vmatpush.bf16.msra.mxu0 %v638
  %840 = vmatmul.bf16.gmra.mxu0 %v333
  %v841 = vpop.f32.mrf.mxu0
  %v842 = vadd.f32 %v798, %v841
  %v843 = vpop.f32.mrf.mxu0
  %v844 = vadd.f32 %v800, %v843
  %845 = vmatmul.bf16.gmra.mxu0 %v340
  %v846 = vpop.f32.mrf.mxu0
  %v847 = vadd.f32 %v803, %v846
  %v848 = vpop.f32.mrf.mxu0
  %v849 = vadd.f32 %v805, %v848
  %850 = vmatmul.bf16.gmra.mxu0 %v347
  %v851 = vpop.f32.mrf.mxu0
  %v852 = vadd.f32 %v808, %v851
  %v853 = vpop.f32.mrf.mxu0
  %v854 = vadd.f32 %v810, %v853
  %855 = vmatmul.bf16.gmra.mxu0 %v354
  %v856 = vpop.f32.mrf.mxu0
  %v857 = vadd.f32 %v813, %v856
  %v858 = vpop.f32.mrf.mxu0
  %v859 = vadd.f32 %v815, %v858
  %860 = vmatmul.bf16.gmra.mxu0 %v361
  %v861 = vpop.f32.mrf.mxu0
  %v862 = vadd.f32 %v818, %v861
  %v863 = vpop.f32.mrf.mxu0
  %v864 = vadd.f32 %v820, %v863
  %865 = vmatmul.bf16.gmra.mxu0 %v368
  %v866 = vpop.f32.mrf.mxu0
  %v867 = vadd.f32 %v823, %v866
  %v868 = vpop.f32.mrf.mxu0
  %v869 = vadd.f32 %v825, %v868
  %870 = vmatmul.bf16.gmra.mxu0 %v375
  %v871 = vpop.f32.mrf.mxu0
  %v872 = vadd.f32 %v828, %v871
  %v873 = vpop.f32.mrf.mxu0
  %v874 = vadd.f32 %v830, %v873
  %875 = vdwg.mxu0
  %876 = vmatpush.bf16.msra.mxu0 %v653
  %877 = vmatpush.bf16.msra.mxu0 %v652
  %878 = vmatpush.bf16.msra.mxu0 %v651
  %879 = vmatpush.bf16.msra.mxu0 %v650
  %880 = vmatpush.bf16.msra.mxu0 %v649
  %881 = vmatpush.bf16.msra.mxu0 %v648
  %882 = vmatpush.bf16.msra.mxu0 %v647
  %883 = vmatpush.bf16.msra.mxu0 %v646
  %884 = vmatmul.bf16.gmra.mxu0 %v334
  %v885 = vpop.f32.mrf.mxu0
  %v886 = vadd.f32 %v842, %v885
  %v887 = vpop.f32.mrf.mxu0
  %v888 = vadd.f32 %v844, %v887
  %889 = vmatmul.bf16.gmra.mxu0 %v341
  %v890 = vpop.f32.mrf.mxu0
  %v891 = vadd.f32 %v847, %v890
  %v892 = vpop.f32.mrf.mxu0
  %v893 = vadd.f32 %v849, %v892
  %894 = vmatmul.bf16.gmra.mxu0 %v348
  %v895 = vpop.f32.mrf.mxu0
  %v896 = vadd.f32 %v852, %v895
  %v897 = vpop.f32.mrf.mxu0
  %v898 = vadd.f32 %v854, %v897
  %899 = vmatmul.bf16.gmra.mxu0 %v355
  %v900 = vpop.f32.mrf.mxu0
  %v901 = vadd.f32 %v857, %v900
  %v902 = vpop.f32.mrf.mxu0
  %v903 = vadd.f32 %v859, %v902
  %904 = vmatmul.bf16.gmra.mxu0 %v362
  %v905 = vpop.f32.mrf.mxu0
  %v906 = vadd.f32 %v862, %v905
  %v907 = vpop.f32.mrf.mxu0
  %v908 = vadd.f32 %v864, %v907
  %909 = vmatmul.bf16.gmra.mxu0 %v369
  %v910 = vpop.f32.mrf.mxu0
  %v911 = vadd.f32 %v867, %v910
  %v912 = vpop.f32.mrf.mxu0
  %v913 = vadd.f32 %v869, %v912
  %914 = vmatmul.bf16.gmra.mxu0 %v376
  %v915 = vpop.f32.mrf.mxu0
  %v916 = vadd.f32 %v872, %v915
  %v917 = vpop.f32.mrf.mxu0
  %v918 = vadd.f32 %v874, %v917
  %919 = vdwg.mxu0
  %920 = vmatpush.bf16.msra.mxu0 %v661
  %921 = vmatpush.bf16.msra.mxu0 %v660
  %922 = vmatpush.bf16.msra.mxu0 %v659
  %923 = vmatpush.bf16.msra.mxu0 %v658
  %924 = vmatpush.bf16.msra.mxu0 %v657
  %925 = vmatpush.bf16.msra.mxu0 %v656
  %926 = vmatpush.bf16.msra.mxu0 %v655
  %927 = vmatpush.bf16.msra.mxu0 %v654
  %928 = vmatmul.bf16.gmra.mxu0 %v335
  %v929 = vpop.f32.mrf.mxu0
  %v930 = vadd.f32 %v886, %v929
  %v931 = vpop.f32.mrf.mxu0
  %v932 = vadd.f32 %v888, %v931
  %933 = vmatmul.bf16.gmra.mxu0 %v342
  %v934 = vpop.f32.mrf.mxu0
  %v935 = vadd.f32 %v891, %v934
  %v936 = vpop.f32.mrf.mxu0
  %v937 = vadd.f32 %v893, %v936
  %938 = vmatmul.bf16.gmra.mxu0 %v349
  %v939 = vpop.f32.mrf.mxu0
  %v940 = vadd.f32 %v896, %v939
  %v941 = vpop.f32.mrf.mxu0
  %v942 = vadd.f32 %v898, %v941
  %943 = vmatmul.bf16.gmra.mxu0 %v356
  %v944 = vpop.f32.mrf.mxu0
  %v945 = vadd.f32 %v901, %v944
  %v946 = vpop.f32.mrf.mxu0
  %v947 = vadd.f32 %v903, %v946
  %948 = vmatmul.bf16.gmra.mxu0 %v363
  %v949 = vpop.f32.mrf.mxu0
  %v950 = vadd.f32 %v906, %v949
  %v951 = vpop.f32.mrf.mxu0
  %v952 = vadd.f32 %v908, %v951
  %953 = vmatmul.bf16.gmra.mxu0 %v370
  %v954 = vpop.f32.mrf.mxu0
  %v955 = vadd.f32 %v911, %v954
  %v956 = vpop.f32.mrf.mxu0
  %v957 = vadd.f32 %v913, %v956
  %958 = vmatmul.bf16.gmra.mxu0 %v377
  %v959 = vpop.f32.mrf.mxu0
  %v960 = vadd.f32 %v916, %v959
  %v961 = vpop.f32.mrf.mxu0
  %v962 = vadd.f32 %v918, %v961
  %963 = vdwg.mxu0
  %964 = vmatpush.bf16.msra.mxu0 %v669
  %965 = vmatpush.bf16.msra.mxu0 %v668
  %966 = vmatpush.bf16.msra.mxu0 %v667
  %967 = vmatpush.bf16.msra.mxu0 %v666
  %968 = vmatpush.bf16.msra.mxu0 %v665
  %969 = vmatpush.bf16.msra.mxu0 %v664
  %970 = vmatpush.bf16.msra.mxu0 %v663
  %971 = vmatpush.bf16.msra.mxu0 %v662
  %972 = vmatmul.bf16.gmra.mxu0 %v336
  %v973 = vpop.f32.mrf.mxu0
  %v974 = vadd.f32 %v930, %v973
  %v975 = vpop.f32.mrf.mxu0
  %v976 = vadd.f32 %v932, %v975
  %977 = vmatmul.bf16.gmra.mxu0 %v343
  %v978 = vpop.f32.mrf.mxu0
  %v979 = vadd.f32 %v935, %v978
  %v980 = vpop.f32.mrf.mxu0
  %v981 = vadd.f32 %v937, %v980
  %982 = vmatmul.bf16.gmra.mxu0 %v350
  %v983 = vpop.f32.mrf.mxu0
  %v984 = vadd.f32 %v940, %v983
  %v985 = vpop.f32.mrf.mxu0
  %v986 = vadd.f32 %v942, %v985
  %987 = vmatmul.bf16.gmra.mxu0 %v357
  %v988 = vpop.f32.mrf.mxu0
  %v989 = vadd.f32 %v945, %v988
  %v990 = vpop.f32.mrf.mxu0
  %v991 = vadd.f32 %v947, %v990
  %992 = vmatmul.bf16.gmra.mxu0 %v364
  %v993 = vpop.f32.mrf.mxu0
  %v994 = vadd.f32 %v950, %v993
  %v995 = vpop.f32.mrf.mxu0
  %v996 = vadd.f32 %v952, %v995
  %997 = vmatmul.bf16.gmra.mxu0 %v371
  %v998 = vpop.f32.mrf.mxu0
  %v999 = vadd.f32 %v955, %v998
  %v1000 = vpop.f32.mrf.mxu0
  %v1001 = vadd.f32 %v957, %v1000
  %1002 = vmatmul.bf16.gmra.mxu0 %v378
  %v1003 = vpop.f32.mrf.mxu0
  %v1004 = vadd.f32 %v960, %v1003
  %v1005 = vpop.f32.mrf.mxu0
  %v1006 = vadd.f32 %v962, %v1005
  %1007 = vdwg.mxu0
  %1008 = vmatpush.bf16.msra.mxu0 0
  %1009 = vmatpush.bf16.msra.mxu0 0
  %1010 = vmatpush.bf16.msra.mxu0 0
  %1011 = vmatpush.bf16.msra.mxu0 0
  %1012 = vmatpush.bf16.msra.mxu0 0
  %1013 = vmatpush.bf16.msra.mxu0 0
  %1014 = vmatpush.bf16.msra.mxu0 %v671
  %1015 = vmatpush.bf16.msra.mxu0 %v670
  %1016 = vmatmul.bf16.gmra.mxu0 %v724
  %v1017 = vpop.f32.mrf.mxu0
  %v1018 = vadd.f32 %v974, %v1017
  %v1019 = vpop.f32.mrf.mxu0
  %v1020 = vadd.f32 %v976, %v1019
  %1021 = vmatmul.bf16.gmra.mxu0 %v727
  %v1022 = vpop.f32.mrf.mxu0
  %v1023 = vadd.f32 %v979, %v1022
  %v1024 = vpop.f32.mrf.mxu0
  %v1025 = vadd.f32 %v981, %v1024
  %1026 = vmatmul.bf16.gmra.mxu0 %v730
  %v1027 = vpop.f32.mrf.mxu0
  %v1028 = vadd.f32 %v984, %v1027
  %v1029 = vpop.f32.mrf.mxu0
  %v1030 = vadd.f32 %v986, %v1029
  %1031 = vmatmul.bf16.gmra.mxu0 %v733
  %v1032 = vpop.f32.mrf.mxu0
  %v1033 = vadd.f32 %v989, %v1032
  %v1034 = vpop.f32.mrf.mxu0
  %v1035 = vadd.f32 %v991, %v1034
  %1036 = vmatmul.bf16.gmra.mxu0 %v736
  %v1037 = vpop.f32.mrf.mxu0
  %v1038 = vadd.f32 %v994, %v1037
  %v1039 = vpop.f32.mrf.mxu0
  %v1040 = vadd.f32 %v996, %v1039
  %1041 = vmatmul.bf16.gmra.mxu0 %v739
  %v1042 = vpop.f32.mrf.mxu0
  %v1043 = vadd.f32 %v999, %v1042
  %v1044 = vpop.f32.mrf.mxu0
  %v1045 = vadd.f32 %v1001, %v1044
  %1046 = vmatmul.bf16.gmra.mxu0 %v742
  %v1047 = vpop.f32.mrf.mxu0
  %v1048 = vadd.f32 %v1004, %v1047
  %v1049 = vpop.f32.mrf.mxu0
  %v1050 = vadd.f32 %v1006, %v1049
  %1051 = vdwg.mxu0
  %1052 = vst [vmem:[%s2] sm:$0xff] %v1018
  %1053 = vst [vmem:[%s2 + $0x8] sm:$0xff] %v1020
  %1054 = vst [vmem:[%s2 + $0x10] sm:$0xff] %v1023
  %1055 = vst [vmem:[%s2 + $0x18] sm:$0xff] %v1025
  %1056 = vst [vmem:[%s2 + $0x20] sm:$0xff] %v1028
  %1057 = vst [vmem:[%s2 + $0x28] sm:$0xff] %v1030
  %1058 = vst [vmem:[%s2 + $0x30] sm:$0xff] %v1033
  %1059 = vst [vmem:[%s2 + $0x38] sm:$0xff] %v1035
  %1060 = vst [vmem:[%s2 + $0x40] sm:$0xff] %v1038
  %1061 = vst [vmem:[%s2 + $0x48] sm:$0xff] %v1040
  %1062 = vst [vmem:[%s2 + $0x50] sm:$0xff] %v1043
  %1063 = vst [vmem:[%s2 + $0x58] sm:$0xff] %v1045
  %1064 = vst [vmem:[%s2 + $0x60] sm:$0xff] %v1048
  %1065 = vst [vmem:[%s2 + $0x68] sm:$0xff] %v1050
  %v1066 = vld [vmem:[%s3] sm:$0x1]
  %v1067 = vadd.f32 %v1018, %v1020
  %v1068 = vadd.f32 %v1067, %v1023
  %v1069 = vadd.f32 %v1068, %v1025
  %v1070 = vadd.f32 %v1069, %v1028
  %v1071 = vadd.f32 %v1070, %v1030
  %v1072 = vadd.f32 %v1071, %v1033
  %v1073 = vadd.f32 %v1072, %v1035
  %v1074 = vadd.f32 %v1073, %v1038
  %v1075 = vadd.f32 %v1074, %v1040
  %v1076 = vadd.f32 %v1075, %v1043
  %v1077 = vadd.f32 %v1076, %v1045
  %v1078 = vadd.f32 %v1077, %v1048
  %v1079 = vadd.f32 %v1078, %v1050
  %v1080 = vrot.slane %v1079, 4
  %v1081 = vadd.f32 %v1079, %v1080
  %v1082 = vrot.slane %v1081, 2
  %v1083 = vadd.f32 %v1081, %v1082
  %v1084 = vrot.slane %v1083, 1
  %v1085 = vadd.f32 %v1083, %v1084
  %v1086 = vadd.f32 %v1066, %v1085
  %1087 = vst [vmem:[%s3] sm:$0x1] %v1086
  %v1088 = vld [vmem:[%s4] sm:$0x1]
  %v1089 = vmul.f32 %v1018, %v1018
  %v1090 = vmul.f32 %v1020, %v1020
  %v1091 = vmul.f32 %v1023, %v1023
  %v1092 = vmul.f32 %v1025, %v1025
  %v1093 = vmul.f32 %v1028, %v1028
  %v1094 = vmul.f32 %v1030, %v1030
  %v1095 = vmul.f32 %v1033, %v1033
  %v1096 = vmul.f32 %v1035, %v1035
  %v1097 = vmul.f32 %v1038, %v1038
  %v1098 = vmul.f32 %v1040, %v1040
  %v1099 = vmul.f32 %v1043, %v1043
  %v1100 = vmul.f32 %v1045, %v1045
  %v1101 = vmul.f32 %v1048, %v1048
  %v1102 = vmul.f32 %v1050, %v1050
  %v1103 = vadd.f32 %v1089, %v1090
  %v1104 = vadd.f32 %v1103, %v1091
  %v1105 = vadd.f32 %v1104, %v1092
  %v1106 = vadd.f32 %v1105, %v1093
  %v1107 = vadd.f32 %v1106, %v1094
  %v1108 = vadd.f32 %v1107, %v1095
  %v1109 = vadd.f32 %v1108, %v1096
  %v1110 = vadd.f32 %v1109, %v1097
  %v1111 = vadd.f32 %v1110, %v1098
  %v1112 = vadd.f32 %v1111, %v1099
  %v1113 = vadd.f32 %v1112, %v1100
  %v1114 = vadd.f32 %v1113, %v1101
  %v1115 = vadd.f32 %v1114, %v1102
  %v1116 = vrot.slane %v1115, 4
  %v1117 = vadd.f32 %v1115, %v1116
  %v1118 = vrot.slane %v1117, 2
  %v1119 = vadd.f32 %v1117, %v1118
  %v1120 = vrot.slane %v1119, 1
  %v1121 = vadd.f32 %v1119, %v1120
  %v1122 = vadd.f32 %v1088, %v1121
  %1123 = vst [vmem:[%s4] sm:$0x1] %v1122
  // Predicated region
  $region14: #{discriminator_forward.11} parent=0 // pred_check
    _
  $region15: #{discriminator_forward.11} parent=0 // pred_check_branch
    %1125 = sbr.rel (0) target = $region17
  $region16: #{discriminator_forward.11} parent=0 // pred_region
    _
  $region17: #{discriminator_forward.11} parent=0 // pred_fallthru
    _
  // Predicated region
  $region18: #{discriminator_forward.11} parent=0 // pred_check
    _
  $region19: #{discriminator_forward.11} parent=0 // pred_check_branch
    %1127 = sbr.rel (0) target = $region21
  $region20: #{discriminator_forward.11} parent=0 // pred_region
    _
  $region21: #{discriminator_forward.11} parent=0 // pred_fallthru
    _
  // Predicated region
  $region22: #{discriminator_forward.11} parent=0 // pred_check
    _
  $region23: #{discriminator_forward.11} parent=0 // pred_check_branch
    %1129 = sbr.rel (0) target = $region25
  $region24: #{discriminator_forward.11} parent=0 // pred_region
    _
  $region25: #{discriminator_forward.11} parent=0 // pred_fallthru
    _
  // Predicated region
  $region26: #{discriminator_forward.11} parent=0 // pred_check
    _
  $region27: #{discriminator_forward.11} parent=0 // pred_check_branch
    %1131 = sbr.rel (0) target = $region29
  $region28: #{discriminator_forward.11} parent=0 // pred_region
    _
  $region29: #{discriminator_forward.11} parent=0 // pred_fallthru
    _
  // Predicated region
  $region30: #{discriminator_forward.11} parent=0 // pred_check
    _
  $region31: #{discriminator_forward.11} parent=0 // pred_check_branch
    %1133 = sbr.rel (0) target = $region33
  $region32: #{discriminator_forward.11} parent=0 // pred_region
    _
  $region33: #{discriminator_forward.11} parent=0 // pred_fallthru
    _
  // Predicated region
  $region34: #{discriminator_forward.11} parent=0 // pred_check
    _
  $region35: #{discriminator_forward.11} parent=0 // pred_check_branch
    %1135 = sbr.rel (0) target = $region37
  $region36: #{discriminator_forward.11} parent=0 // pred_region
    _
  $region37: #{discriminator_forward.11} parent=0 // pred_fallthru
    _

// kernel: discriminator_forward.14
$region0: #{discriminator_forward.14}
  #allocation0 [shape = 'u32[]', space=smem, size = 0x4, offset = 0x4, fixed_abs, tag = 'smem constant byte address 0x4 - core index']
  #allocation1 [shape = 'u32[72,128]{1,0:T(1,128)}', space=vmem, size = 0x9000, scoped, tag = 'internal scratch']
  %s0 = inlined_call_operand.vmem [shape: f32[32,128], index: 0, kind: input, shape index: {}]
  %s1 = inlined_call_operand.vmem [shape: f32[1,128], index: 1, kind: input, shape index: {}]
  %s2 = inlined_call_operand.vmem [shape: f32[1,128], index: 2, kind: input, shape index: {}]
  %s3 = inlined_call_operand.vmem [shape: bf16[32,128], index: 3, kind: output, shape index: {}]
  %s4 = sld [smem:[#allocation0]]
  $region22: #{discriminator_forward.14} parent=0
    _
  %s6 = ssub.s32 1, %s4
  %s7 = scalar_select 0, %s6, %s4
  // Predicated region
  $region2: #{discriminator_forward.14} parent=0 // pred_check
    _
  $region3: #{discriminator_forward.14} parent=0 // pred_check_branch
    %9 = sbr.rel (0) target = $region5
  $region4: #{discriminator_forward.14} parent=0 // pred_region
    _
  $region5: #{discriminator_forward.14} parent=0 // pred_fallthru
    _
  // Predicated region
  $region6: #{discriminator_forward.14} parent=0 // pred_check
    _
  $region7: #{discriminator_forward.14} parent=0 // pred_check_branch
    %11 = sbr.rel (0) target = $region9
  $region8: #{discriminator_forward.14} parent=0 // pred_region
    _
  $region9: #{discriminator_forward.14} parent=0 // pred_fallthru
    _
  // Predicated region
  $region10: #{discriminator_forward.14} parent=0 // pred_check
    _
  $region11: #{discriminator_forward.14} parent=0 // pred_check_branch
    %13 = sbr.rel (0) target = $region13
  $region12: #{discriminator_forward.14} parent=0 // pred_region
    _
  $region13: #{discriminator_forward.14} parent=0 // pred_fallthru
    _
  %v14 = vld [vmem:[%s0] sm:$0xff]
  %v15 = vld [vmem:[%s0 + $0x8] sm:$0xff]
  %v16 = vld [vmem:[%s0 + $0x10] sm:$0xff]
  %v17 = vld [vmem:[%s0 + $0x18] sm:$0xff]
  %v18 = vld [vmem:[%s1] sm:$0x1]
  %v20 = vperm.slane %v18, 0
  %v22 = vmul.f32 %v14, %v20
  %v23 = vmul.f32 %v15, %v20
  %v24 = vmul.f32 %v16, %v20
  %v25 = vmul.f32 %v17, %v20
  %v26 = vld [vmem:[%s2] sm:$0x1]
  %v28 = vperm.slane %v26, 0
  %v30 = vadd.f32 %v22, %v28
  %v31 = vadd.f32 %v23, %v28
  %v32 = vadd.f32 %v24, %v28
  %v33 = vadd.f32 %v25, %v28
  %vm34 = vcmp.ge.f32.partialorder %v30, 0.0
  %vm35 = vcmp.ge.f32.partialorder %v31, 0.0
  %vm36 = vcmp.ge.f32.partialorder %v32, 0.0
  %vm37 = vcmp.ge.f32.partialorder %v33, 0.0
  %v38 = vmul.f32 %v30, 0.2
  %v39 = vmul.f32 %v31, 0.2
  %v40 = vmul.f32 %v32, 0.2
  %v41 = vmul.f32 %v33, 0.2
  %v42 = vsel %vm34, %v30, %v38
  %v43 = vsel %vm35, %v31, %v39
  %v44 = vsel %vm36, %v32, %v40
  %v45 = vsel %vm37, %v33, %v41
  %v46 = vpack.c.bf16 %v42, %v42
  %v47 = vpack.c.bf16 %v43, %v43
  %v48 = vpack.c.bf16 %v44, %v44
  %v49 = vpack.c.bf16 %v45, %v45
  %50 = vst [vmem:[%s3] sm:$0xf] %v46
  %51 = vst [vmem:[%s3 + $0x4] sm:$0xf] %v47
  %52 = vst [vmem:[%s3 + $0x8] sm:$0xf] %v48
  %53 = vst [vmem:[%s3 + $0xc] sm:$0xf] %v49
  // Predicated region
  $region14: #{discriminator_forward.14} parent=0 // pred_check
    _
  $region15: #{discriminator_forward.14} parent=0 // pred_check_branch
    %55 = sbr.rel (0) target = $region17
  $region16: #{discriminator_forward.14} parent=0 // pred_region
    _
  $region17: #{discriminator_forward.14} parent=0 // pred_fallthru
    _
  // Predicated region
  $region18: #{discriminator_forward.14} parent=0 // pred_check
    _
  $region19: #{discriminator_forward.14} parent=0 // pred_check_branch
    %57 = sbr.rel (0) target = $region21
  $region20: #{discriminator_forward.14} parent=0 // pred_region
    _
  $region21: #{discriminator_forward.14} parent=0 // pred_fallthru
    _

// kernel: discriminator_forward.13
$region0: #{discriminator_forward.13}
  #allocation0 [shape = 'u32[]', space=smem, size = 0x4, offset = 0x4, fixed_abs, tag = 'smem constant byte address 0x4 - core index']
  #allocation1 [shape = 'u32[72,128]{1,0:T(1,128)}', space=vmem, size = 0x9000, scoped, tag = 'internal scratch']
  %s0 = inlined_call_operand.vmem [shape: bf16[32,1600], index: 0, kind: input, shape index: {}]
  %s1 = inlined_call_operand.vmem [shape: bf16[1600,128], index: 1, kind: input, shape index: {}]
  %s2 = inlined_call_operand.vmem [shape: f32[32,128], index: 2, kind: output, shape index: {0}]
  %s3 = inlined_call_operand.vmem [shape: f32[1,128], index: 3, kind: output, shape index: {1}]
  %s4 = inlined_call_operand.vmem [shape: f32[1,128], index: 4, kind: output, shape index: {2}]
  %5 = xla_tuple %s2, %s3, %s4
  %s6 = sld [smem:[#allocation0]]
  $region38: #{discriminator_forward.13} parent=0
    _
  %s8 = ssub.s32 1, %s6
  %s9 = scalar_select 0, %s8, %s6
  // Predicated region
  $region2: #{discriminator_forward.13} parent=0 // pred_check
    _
  $region3: #{discriminator_forward.13} parent=0 // pred_check_branch
    %11 = sbr.rel (0) target = $region5
  $region4: #{discriminator_forward.13} parent=0 // pred_region
    _
  $region5: #{discriminator_forward.13} parent=0 // pred_fallthru
    _
  // Predicated region
  $region6: #{discriminator_forward.13} parent=0 // pred_check
    _
  $region7: #{discriminator_forward.13} parent=0 // pred_check_branch
    %13 = sbr.rel (0) target = $region9
  $region8: #{discriminator_forward.13} parent=0 // pred_region
    _
  $region9: #{discriminator_forward.13} parent=0 // pred_fallthru
    _
  %p15 = scmp.eq.s32.totalorder 0, 0
  // Predicated region
  $region10: #{discriminator_forward.13} parent=0 // pred_check
    %p16 = pneg %p15
  $region11: #{discriminator_forward.13} parent=0 // pred_check_branch
    %18 = sbr.rel (%p16) target = $region13
  $region12: #{discriminator_forward.13} parent=0 // pred_region
    %19 = vst [vmem:[%s3] sm:$0x1] 0.0
    %20 = vst [vmem:[%s4] sm:$0x1] 0.0
  $region13: #{discriminator_forward.13} parent=0 // pred_fallthru
    _
  %v21 = vld [vmem:[%s0] sm:$0xff]
  %v22 = vld [vmem:[%s0 + $0x8] sm:$0xff]
  %v23 = vld [vmem:[%s0 + $0x10] sm:$0xff]
  %v24 = vld [vmem:[%s0 + $0x18] sm:$0xff]
  %v25 = vld [vmem:[%s0 + $0x20] sm:$0xff]
  %v26 = vld [vmem:[%s0 + $0x28] sm:$0xff]
  %v27 = vld [vmem:[%s0 + $0x30] sm:$0xf]
  %v28 = vld [vmem:[%s0 + $0x34] sm:$0xff]
  %v29 = vld [vmem:[%s0 + $0x3c] sm:$0xff]
  %v30 = vld [vmem:[%s0 + $0x44] sm:$0xff]
  %v31 = vld [vmem:[%s0 + $0x4c] sm:$0xff]
  %v32 = vld [vmem:[%s0 + $0x54] sm:$0xff]
  %v33 = vld [vmem:[%s0 + $0x5c] sm:$0xff]
  %v34 = vld [vmem:[%s0 + $0x64] sm:$0xf]
  %v35 = vld [vmem:[%s0 + $0x68] sm:$0xff]
  %v36 = vld [vmem:[%s0 + $0x70] sm:$0xff]
  %v37 = vld [vmem:[%s0 + $0x78] sm:$0xff]
  %v38 = vld [vmem:[%s0 + $0x80] sm:$0xff]
  %v39 = vld [vmem:[%s0 + $0x88] sm:$0xff]
  %v40 = vld [vmem:[%s0 + $0x90] sm:$0xff]
  %v41 = vld [vmem:[%s0 + $0x98] sm:$0xf]
  %v42 = vld [vmem:[%s0 + $0x9c] sm:$0xff]
  %v43 = vld [vmem:[%s0 + $0xa4] sm:$0xff]
  %v44 = vld [vmem:[%s0 + $0xac] sm:$0xff]
  %v45 = vld [vmem:[%s0 + $0xb4] sm:$0xff]
  %v46 = vld [vmem:[%s0 + $0xbc] sm:$0xff]
  %v47 = vld [vmem:[%s0 + $0xc4] sm:$0xff]
  %v48 = vld [vmem:[%s0 + $0xcc] sm:$0xf]
  %v49 = vld [vmem:[%s1] sm:$0xf]
  %v50 = vld [vmem:[%s1 + $0x4] sm:$0xf]
  %v51 = vld [vmem:[%s1 + $0x8] sm:$0xf]
  %v52 = vld [vmem:[%s1 + $0xc] sm:$0xf]
  %v53 = vld [vmem:[%s1 + $0x10] sm:$0xf]
  %v54 = vld [vmem:[%s1 + $0x14] sm:$0xf]
  %v55 = vld [vmem:[%s1 + $0x18] sm:$0xf]
  %v56 = vld [vmem:[%s1 + $0x1c] sm:$0xf]
  %v57 = vld [vmem:[%s1 + $0x20] sm:$0xf]
  %v58 = vld [vmem:[%s1 + $0x24] sm:$0xf]
  %v59 = vld [vmem:[%s1 + $0x28] sm:$0xf]
  %v60 = vld [vmem:[%s1 + $0x2c] sm:$0xf]
  %v61 = vld [vmem:[%s1 + $0x30] sm:$0xf]
  %v62 = vld [vmem:[%s1 + $0x34] sm:$0xf]
  %v63 = vld [vmem:[%s1 + $0x38] sm:$0xf]
  %v64 = vld [vmem:[%s1 + $0x3c] sm:$0xf]
  %v65 = vld [vmem:[%s1 + $0x40] sm:$0xf]
  %v66 = vld [vmem:[%s1 + $0x44] sm:$0xf]
  %v67 = vld [vmem:[%s1 + $0x48] sm:$0xf]
  %v68 = vld [vmem:[%s1 + $0x4c] sm:$0xf]
  %v69 = vld [vmem:[%s1 + $0x50] sm:$0xf]
  %v70 = vld [vmem:[%s1 + $0x54] sm:$0xf]
  %v71 = vld [vmem:[%s1 + $0x58] sm:$0xf]
  %v72 = vld [vmem:[%s1 + $0x5c] sm:$0xf]
  %v73 = vld [vmem:[%s1 + $0x60] sm:$0xf]
  %v74 = vld [vmem:[%s1 + $0x64] sm:$0xf]
  %v75 = vld [vmem:[%s1 + $0x68] sm:$0xf]
  %v76 = vld [vmem:[%s1 + $0x6c] sm:$0xf]
  %v77 = vld [vmem:[%s1 + $0x70] sm:$0xf]
  %v78 = vld [vmem:[%s1 + $0x74] sm:$0xf]
  %v79 = vld [vmem:[%s1 + $0x78] sm:$0xf]
  %v80 = vld [vmem:[%s1 + $0x7c] sm:$0xf]
  %v81 = vld [vmem:[%s1 + $0x80] sm:$0xf]
  %v82 = vld [vmem:[%s1 + $0x84] sm:$0xf]
  %v83 = vld [vmem:[%s1 + $0x88] sm:$0xf]
  %v84 = vld [vmem:[%s1 + $0x8c] sm:$0xf]
  %v85 = vld [vmem:[%s1 + $0x90] sm:$0xf]
  %v86 = vld [vmem:[%s1 + $0x94] sm:$0xf]
  %v87 = vld [vmem:[%s1 + $0x98] sm:$0xf]
  %v88 = vld [vmem:[%s1 + $0x9c] sm:$0xf]
  %v89 = vld [vmem:[%s1 + $0xa0] sm:$0xf]
  %v90 = vld [vmem:[%s1 + $0xa4] sm:$0xf]
  %v91 = vld [vmem:[%s1 + $0xa8] sm:$0xf]
  %v92 = vld [vmem:[%s1 + $0xac] sm:$0xf]
  %v93 = vld [vmem:[%s1 + $0xb0] sm:$0xf]
  %v94 = vld [vmem:[%s1 + $0xb4] sm:$0xf]
  %v95 = vld [vmem:[%s1 + $0xb8] sm:$0xf]
  %v96 = vld [vmem:[%s1 + $0xbc] sm:$0xf]
  %v97 = vld [vmem:[%s1 + $0xc0] sm:$0xf]
  %v98 = vld [vmem:[%s1 + $0xc4] sm:$0xf]
  %v99 = vld [vmem:[%s1 + $0xc8] sm:$0xf]
  %v100 = vld [vmem:[%s1 + $0xcc] sm:$0xf]
  %v101 = vld [vmem:[%s1 + $0xd0] sm:$0xf]
  %v102 = vld [vmem:[%s1 + $0xd4] sm:$0xf]
  %v103 = vld [vmem:[%s1 + $0xd8] sm:$0xf]
  %v104 = vld [vmem:[%s1 + $0xdc] sm:$0xf]
  %v105 = vld [vmem:[%s1 + $0xe0] sm:$0xf]
  %v106 = vld [vmem:[%s1 + $0xe4] sm:$0xf]
  %v107 = vld [vmem:[%s1 + $0xe8] sm:$0xf]
  %v108 = vld [vmem:[%s1 + $0xec] sm:$0xf]
  %v109 = vld [vmem:[%s1 + $0xf0] sm:$0xf]
  %v110 = vld [vmem:[%s1 + $0xf4] sm:$0xf]
  %v111 = vld [vmem:[%s1 + $0xf8] sm:$0xf]
  %v112 = vld [vmem:[%s1 + $0xfc] sm:$0xf]
  %v113 = vld [vmem:[%s1 + $0x100] sm:$0xf]
  %v114 = vld [vmem:[%s1 + $0x104] sm:$0xf]
  %v115 = vld [vmem:[%s1 + $0x108] sm:$0xf]
  %v116 = vld [vmem:[%s1 + $0x10c] sm:$0xf]
  %v117 = vld [vmem:[%s1 + $0x110] sm:$0xf]
  %v118 = vld [vmem:[%s1 + $0x114] sm:$0xf]
  %v119 = vld [vmem:[%s1 + $0x118] sm:$0xf]
  %v120 = vld [vmem:[%s1 + $0x11c] sm:$0xf]
  %v121 = vld [vmem:[%s1 + $0x120] sm:$0xf]
  %v122 = vld [vmem:[%s1 + $0x124] sm:$0xf]
  %v123 = vld [vmem:[%s1 + $0x128] sm:$0xf]
  %v124 = vld [vmem:[%s1 + $0x12c] sm:$0xf]
  %v125 = vld [vmem:[%s1 + $0x130] sm:$0xf]
  %v126 = vld [vmem:[%s1 + $0x134] sm:$0xf]
  %v127 = vld [vmem:[%s1 + $0x138] sm:$0xf]
  %v128 = vld [vmem:[%s1 + $0x13c] sm:$0xf]
  %v129 = vld [vmem:[%s1 + $0x140] sm:$0xf]
  %v130 = vld [vmem:[%s1 + $0x144] sm:$0xf]
  %v131 = vld [vmem:[%s1 + $0x148] sm:$0xf]
  %v132 = vld [vmem:[%s1 + $0x14c] sm:$0xf]
  %v133 = vld [vmem:[%s1 + $0x150] sm:$0xf]
  %v134 = vld [vmem:[%s1 + $0x154] sm:$0xf]
  %v135 = vld [vmem:[%s1 + $0x158] sm:$0xf]
  %v136 = vld [vmem:[%s1 + $0x15c] sm:$0xf]
  %v137 = vld [vmem:[%s1 + $0x160] sm:$0xf]
  %v138 = vld [vmem:[%s1 + $0x164] sm:$0xf]
  %v139 = vld [vmem:[%s1 + $0x168] sm:$0xf]
  %v140 = vld [vmem:[%s1 + $0x16c] sm:$0xf]
  %v141 = vld [vmem:[%s1 + $0x170] sm:$0xf]
  %v142 = vld [vmem:[%s1 + $0x174] sm:$0xf]
  %v143 = vld [vmem:[%s1 + $0x178] sm:$0xf]
  %v144 = vld [vmem:[%s1 + $0x17c] sm:$0xf]
  %v145 = vld [vmem:[%s1 + $0x180] sm:$0xf]
  %v146 = vld [vmem:[%s1 + $0x184] sm:$0xf]
  %v147 = vld [vmem:[%s1 + $0x188] sm:$0xf]
  %v148 = vld [vmem:[%s1 + $0x18c] sm:$0xf]
  %v149 = vld [vmem:[%s1 + $0x190] sm:$0xf]
  %v150 = vld [vmem:[%s1 + $0x194] sm:$0xf]
  %v151 = vld [vmem:[%s1 + $0x198] sm:$0xf]
  %v152 = vld [vmem:[%s1 + $0x19c] sm:$0xf]
  %v153 = vld [vmem:[%s1 + $0x1a0] sm:$0xf]
  %v154 = vld [vmem:[%s1 + $0x1a4] sm:$0xf]
  %v155 = vld [vmem:[%s1 + $0x1a8] sm:$0xf]
  %v156 = vld [vmem:[%s1 + $0x1ac] sm:$0xf]
  %v157 = vld [vmem:[%s1 + $0x1b0] sm:$0xf]
  %v158 = vld [vmem:[%s1 + $0x1b4] sm:$0xf]
  %v159 = vld [vmem:[%s1 + $0x1b8] sm:$0xf]
  %v160 = vld [vmem:[%s1 + $0x1bc] sm:$0xf]
  %v161 = vld [vmem:[%s1 + $0x1c0] sm:$0xf]
  %v162 = vld [vmem:[%s1 + $0x1c4] sm:$0xf]
  %v163 = vld [vmem:[%s1 + $0x1c8] sm:$0xf]
  %v164 = vld [vmem:[%s1 + $0x1cc] sm:$0xf]
  %v165 = vld [vmem:[%s1 + $0x1d0] sm:$0xf]
  %v166 = vld [vmem:[%s1 + $0x1d4] sm:$0xf]
  %v167 = vld [vmem:[%s1 + $0x1d8] sm:$0xf]
  %v168 = vld [vmem:[%s1 + $0x1dc] sm:$0xf]
  %v169 = vld [vmem:[%s1 + $0x1e0] sm:$0xf]
  %v170 = vld [vmem:[%s1 + $0x1e4] sm:$0xf]
  %v171 = vld [vmem:[%s1 + $0x1e8] sm:$0xf]
  %v172 = vld [vmem:[%s1 + $0x1ec] sm:$0xf]
  %v173 = vld [vmem:[%s1 + $0x1f0] sm:$0xf]
  %v174 = vld [vmem:[%s1 + $0x1f4] sm:$0xf]
  %v175 = vld [vmem:[%s1 + $0x1f8] sm:$0xf]
  %v176 = vld [vmem:[%s1 + $0x1fc] sm:$0xf]
  %v177 = vld [vmem:[%s1 + $0x200] sm:$0xf]
  %v178 = vld [vmem:[%s1 + $0x204] sm:$0xf]
  %v179 = vld [vmem:[%s1 + $0x208] sm:$0xf]
  %v180 = vld [vmem:[%s1 + $0x20c] sm:$0xf]
  %v181 = vld [vmem:[%s1 + $0x210] sm:$0xf]
  %v182 = vld [vmem:[%s1 + $0x214] sm:$0xf]
  %v183 = vld [vmem:[%s1 + $0x218] sm:$0xf]
  %v184 = vld [vmem:[%s1 + $0x21c] sm:$0xf]
  %v185 = vld [vmem:[%s1 + $0x220] sm:$0xf]
  %v186 = vld [vmem:[%s1 + $0x224] sm:$0xf]
  %v187 = vld [vmem:[%s1 + $0x228] sm:$0xf]
  %v188 = vld [vmem:[%s1 + $0x22c] sm:$0xf]
  %v189 = vld [vmem:[%s1 + $0x230] sm:$0xf]
  %v190 = vld [vmem:[%s1 + $0x234] sm:$0xf]
  %v191 = vld [vmem:[%s1 + $0x238] sm:$0xf]
  %v192 = vld [vmem:[%s1 + $0x23c] sm:$0xf]
  %v193 = vld [vmem:[%s1 + $0x240] sm:$0xf]
  %v194 = vld [vmem:[%s1 + $0x244] sm:$0xf]
  %v195 = vld [vmem:[%s1 + $0x248] sm:$0xf]
  %v196 = vld [vmem:[%s1 + $0x24c] sm:$0xf]
  %v197 = vld [vmem:[%s1 + $0x250] sm:$0xf]
  %v198 = vld [vmem:[%s1 + $0x254] sm:$0xf]
  %v199 = vld [vmem:[%s1 + $0x258] sm:$0xf]
  %v200 = vld [vmem:[%s1 + $0x25c] sm:$0xf]
  %v201 = vld [vmem:[%s1 + $0x260] sm:$0xf]
  %v202 = vld [vmem:[%s1 + $0x264] sm:$0xf]
  %v203 = vld [vmem:[%s1 + $0x268] sm:$0xf]
  %v204 = vld [vmem:[%s1 + $0x26c] sm:$0xf]
  %v205 = vld [vmem:[%s1 + $0x270] sm:$0xf]
  %v206 = vld [vmem:[%s1 + $0x274] sm:$0xf]
  %v207 = vld [vmem:[%s1 + $0x278] sm:$0xf]
  %v208 = vld [vmem:[%s1 + $0x27c] sm:$0xf]
  %v209 = vld [vmem:[%s1 + $0x280] sm:$0xf]
  %v210 = vld [vmem:[%s1 + $0x284] sm:$0xf]
  %v211 = vld [vmem:[%s1 + $0x288] sm:$0xf]
  %v212 = vld [vmem:[%s1 + $0x28c] sm:$0xf]
  %v213 = vld [vmem:[%s1 + $0x290] sm:$0xf]
  %v214 = vld [vmem:[%s1 + $0x294] sm:$0xf]
  %v215 = vld [vmem:[%s1 + $0x298] sm:$0xf]
  %v216 = vld [vmem:[%s1 + $0x29c] sm:$0xf]
  %v217 = vld [vmem:[%s1 + $0x2a0] sm:$0xf]
  %v218 = vld [vmem:[%s1 + $0x2a4] sm:$0xf]
  %v219 = vld [vmem:[%s1 + $0x2a8] sm:$0xf]
  %v220 = vld [vmem:[%s1 + $0x2ac] sm:$0xf]
  %v221 = vld [vmem:[%s1 + $0x2b0] sm:$0xf]
  %v222 = vld [vmem:[%s1 + $0x2b4] sm:$0xf]
  %v223 = vld [vmem:[%s1 + $0x2b8] sm:$0xf]
  %v224 = vld [vmem:[%s1 + $0x2bc] sm:$0xf]
  %v225 = vld [vmem:[%s1 + $0x2c0] sm:$0xf]
  %v226 = vld [vmem:[%s1 + $0x2c4] sm:$0xf]
  %v227 = vld [vmem:[%s1 + $0x2c8] sm:$0xf]
  %v228 = vld [vmem:[%s1 + $0x2cc] sm:$0xf]
  %v229 = vld [vmem:[%s1 + $0x2d0] sm:$0xf]
  %v230 = vld [vmem:[%s1 + $0x2d4] sm:$0xf]
  %v231 = vld [vmem:[%s1 + $0x2d8] sm:$0xf]
  %v232 = vld [vmem:[%s1 + $0x2dc] sm:$0xf]
  %v233 = vld [vmem:[%s1 + $0x2e0] sm:$0xf]
  %v234 = vld [vmem:[%s1 + $0x2e4] sm:$0xf]
  %v235 = vld [vmem:[%s1 + $0x2e8] sm:$0xf]
  %v236 = vld [vmem:[%s1 + $0x2ec] sm:$0xf]
  %v237 = vld [vmem:[%s1 + $0x2f0] sm:$0xf]
  %v238 = vld [vmem:[%s1 + $0x2f4] sm:$0xf]
  %v239 = vld [vmem:[%s1 + $0x2f8] sm:$0xf]
  %v240 = vld [vmem:[%s1 + $0x2fc] sm:$0xf]
  %v241 = vld [vmem:[%s1 + $0x300] sm:$0xf]
  %v242 = vld [vmem:[%s1 + $0x304] sm:$0xf]
  %v243 = vld [vmem:[%s1 + $0x308] sm:$0xf]
  %v244 = vld [vmem:[%s1 + $0x30c] sm:$0xf]
  %v245 = vld [vmem:[%s1 + $0x310] sm:$0xf]
  %v246 = vld [vmem:[%s1 + $0x314] sm:$0xf]
  %v247 = vld [vmem:[%s1 + $0x318] sm:$0xf]
  %v248 = vld [vmem:[%s1 + $0x31c] sm:$0xf]
  %v277 = vunpack.c.l.b16 %v21
  %v278 = vunpack.c.h.b16 %v21
  %v279 = vunpack.c.l.b16 %v22
  %v280 = vunpack.c.h.b16 %v22
  %v281 = vunpack.c.l.b16 %v23
  %v282 = vunpack.c.h.b16 %v23
  %v283 = vunpack.c.l.b16 %v24
  %v284 = vunpack.c.h.b16 %v24
  %v285 = vunpack.c.l.b16 %v25
  %v286 = vunpack.c.h.b16 %v25
  %v287 = vunpack.c.l.b16 %v26
  %v288 = vunpack.c.h.b16 %v26
  %v289 = vunpack.c.l.b16 %v27
  %v290 = vunpack.c.l.b16 %v28
  %v291 = vunpack.c.h.b16 %v28
  %v292 = vunpack.c.l.b16 %v29
  %v293 = vunpack.c.h.b16 %v29
  %v294 = vunpack.c.l.b16 %v30
  %v295 = vunpack.c.h.b16 %v30
  %v296 = vunpack.c.l.b16 %v31
  %v297 = vunpack.c.h.b16 %v31
  %v298 = vunpack.c.l.b16 %v32
  %v299 = vunpack.c.h.b16 %v32
  %v300 = vunpack.c.l.b16 %v33
  %v301 = vunpack.c.h.b16 %v33
  %v302 = vunpack.c.l.b16 %v34
  %v303 = vunpack.c.l.b16 %v35
  %v304 = vunpack.c.h.b16 %v35
  %v305 = vunpack.c.l.b16 %v36
  %v306 = vunpack.c.h.b16 %v36
  %v307 = vunpack.c.l.b16 %v37
  %v308 = vunpack.c.h.b16 %v37
  %v309 = vunpack.c.l.b16 %v38
  %v310 = vunpack.c.h.b16 %v38
  %v311 = vunpack.c.l.b16 %v39
  %v312 = vunpack.c.h.b16 %v39
  %v313 = vunpack.c.l.b16 %v40
  %v314 = vunpack.c.h.b16 %v40
  %v315 = vunpack.c.l.b16 %v41
  %v316 = vunpack.c.l.b16 %v42
  %v317 = vunpack.c.h.b16 %v42
  %v318 = vunpack.c.l.b16 %v43
  %v319 = vunpack.c.h.b16 %v43
  %v320 = vunpack.c.l.b16 %v44
  %v321 = vunpack.c.h.b16 %v44
  %v322 = vunpack.c.l.b16 %v45
  %v323 = vunpack.c.h.b16 %v45
  %v324 = vunpack.c.l.b16 %v46
  %v325 = vunpack.c.h.b16 %v46
  %v326 = vunpack.c.l.b16 %v47
  %v327 = vunpack.c.h.b16 %v47
  %v328 = vunpack.c.l.b16 %v48
  %v329 = vpack.c.b16 %v290, %v277
  %v330 = vpack.c.b16 %v291, %v278
  %v331 = vpack.c.b16 %v292, %v279
  %v332 = vpack.c.b16 %v293, %v280
  %v333 = vpack.c.b16 %v294, %v281
  %v334 = vpack.c.b16 %v295, %v282
  %v335 = vpack.c.b16 %v296, %v283
  %v336 = vpack.c.b16 %v297, %v284
  %v337 = vpack.c.b16 %v298, %v285
  %v338 = vpack.c.b16 %v299, %v286
  %v339 = vpack.c.b16 %v300, %v287
  %v340 = vpack.c.b16 %v301, %v288
  %v341 = vpack.c.b16 %v302, %v289
  %v342 = vpack.c.b16 %v316, %v303
  %v343 = vpack.c.b16 %v317, %v304
  %v344 = vpack.c.b16 %v318, %v305
  %v345 = vpack.c.b16 %v319, %v306
  %v346 = vpack.c.b16 %v320, %v307
  %v347 = vpack.c.b16 %v321, %v308
  %v348 = vpack.c.b16 %v322, %v309
  %v349 = vpack.c.b16 %v323, %v310
  %v350 = vpack.c.b16 %v324, %v311
  %v351 = vpack.c.b16 %v325, %v312
  %v352 = vpack.c.b16 %v326, %v313
  %v353 = vpack.c.b16 %v327, %v314
  %v354 = vpack.c.b16 %v328, %v315
  %v579 = vunpack.c.l.b16 %v49
  %v580 = vunpack.c.l.b16 %v50
  %v581 = vunpack.c.l.b16 %v51
  %v582 = vunpack.c.l.b16 %v52
  %v583 = vunpack.c.l.b16 %v53
  %v584 = vunpack.c.l.b16 %v54
  %v585 = vunpack.c.l.b16 %v55
  %v586 = vunpack.c.l.b16 %v56
  %v587 = vunpack.c.l.b16 %v57
  %v588 = vunpack.c.l.b16 %v58
  %v589 = vunpack.c.l.b16 %v59
  %v590 = vunpack.c.l.b16 %v60
  %v591 = vunpack.c.l.b16 %v61
  %v592 = vunpack.c.l.b16 %v62
  %v593 = vunpack.c.l.b16 %v63
  %v594 = vunpack.c.l.b16 %v64
  %v595 = vunpack.c.l.b16 %v65
  %v596 = vunpack.c.l.b16 %v66
  %v597 = vunpack.c.l.b16 %v67
  %v598 = vunpack.c.l.b16 %v68
  %v599 = vunpack.c.l.b16 %v69
  %v600 = vunpack.c.l.b16 %v70
  %v601 = vunpack.c.l.b16 %v71
  %v602 = vunpack.c.l.b16 %v72
  %v603 = vunpack.c.l.b16 %v73
  %v604 = vunpack.c.l.b16 %v74
  %v605 = vunpack.c.l.b16 %v75
  %v606 = vunpack.c.l.b16 %v76
  %v607 = vunpack.c.l.b16 %v77
  %v608 = vunpack.c.l.b16 %v78
  %v609 = vunpack.c.l.b16 %v79
  %v610 = vunpack.c.l.b16 %v80
  %v611 = vunpack.c.l.b16 %v81
  %v612 = vunpack.c.l.b16 %v82
  %v613 = vunpack.c.l.b16 %v83
  %v614 = vunpack.c.l.b16 %v84
  %v615 = vunpack.c.l.b16 %v85
  %v616 = vunpack.c.l.b16 %v86
  %v617 = vunpack.c.l.b16 %v87
  %v618 = vunpack.c.l.b16 %v88
  %v619 = vunpack.c.l.b16 %v89
  %v620 = vunpack.c.l.b16 %v90
  %v621 = vunpack.c.l.b16 %v91
  %v622 = vunpack.c.l.b16 %v92
  %v623 = vunpack.c.l.b16 %v93
  %v624 = vunpack.c.l.b16 %v94
  %v625 = vunpack.c.l.b16 %v95
  %v626 = vunpack.c.l.b16 %v96
  %v627 = vunpack.c.l.b16 %v97
  %v628 = vunpack.c.l.b16 %v98
  %v629 = vunpack.c.l.b16 %v99
  %v630 = vunpack.c.l.b16 %v100
  %v631 = vunpack.c.l.b16 %v101
  %v632 = vunpack.c.l.b16 %v102
  %v633 = vunpack.c.l.b16 %v103
  %v634 = vunpack.c.l.b16 %v104
  %v635 = vunpack.c.l.b16 %v105
  %v636 = vunpack.c.l.b16 %v106
  %v637 = vunpack.c.l.b16 %v107
  %v638 = vunpack.c.l.b16 %v108
  %v639 = vunpack.c.l.b16 %v109
  %v640 = vunpack.c.l.b16 %v110
  %v641 = vunpack.c.l.b16 %v111
  %v642 = vunpack.c.l.b16 %v112
  %v643 = vunpack.c.l.b16 %v113
  %v644 = vunpack.c.l.b16 %v114
  %v645 = vunpack.c.l.b16 %v115
  %v646 = vunpack.c.l.b16 %v116
  %v647 = vunpack.c.l.b16 %v117
  %v648 = vunpack.c.l.b16 %v118
  %v649 = vunpack.c.l.b16 %v119
  %v650 = vunpack.c.l.b16 %v120
  %v651 = vunpack.c.l.b16 %v121
  %v652 = vunpack.c.l.b16 %v122
  %v653 = vunpack.c.l.b16 %v123
  %v654 = vunpack.c.l.b16 %v124
  %v655 = vunpack.c.l.b16 %v125
  %v656 = vunpack.c.l.b16 %v126
  %v657 = vunpack.c.l.b16 %v127
  %v658 = vunpack.c.l.b16 %v128
  %v659 = vunpack.c.l.b16 %v129
  %v660 = vunpack.c.l.b16 %v130
  %v661 = vunpack.c.l.b16 %v131
  %v662 = vunpack.c.l.b16 %v132
  %v663 = vunpack.c.l.b16 %v133
  %v664 = vunpack.c.l.b16 %v134
  %v665 = vunpack.c.l.b16 %v135
  %v666 = vunpack.c.l.b16 %v136
  %v667 = vunpack.c.l.b16 %v137
  %v668 = vunpack.c.l.b16 %v138
  %v669 = vunpack.c.l.b16 %v139
  %v670 = vunpack.c.l.b16 %v140
  %v671 = vunpack.c.l.b16 %v141
  %v672 = vunpack.c.l.b16 %v142
  %v673 = vunpack.c.l.b16 %v143
  %v674 = vunpack.c.l.b16 %v144
  %v675 = vunpack.c.l.b16 %v145
  %v676 = vunpack.c.l.b16 %v146
  %v677 = vunpack.c.l.b16 %v147
  %v678 = vunpack.c.l.b16 %v148
  %v679 = vunpack.c.l.b16 %v149
  %v680 = vunpack.c.l.b16 %v150
  %v681 = vunpack.c.l.b16 %v151
  %v682 = vunpack.c.l.b16 %v152
  %v683 = vunpack.c.l.b16 %v153
  %v684 = vunpack.c.l.b16 %v154
  %v685 = vunpack.c.l.b16 %v155
  %v686 = vunpack.c.l.b16 %v156
  %v687 = vunpack.c.l.b16 %v157
  %v688 = vunpack.c.l.b16 %v158
  %v689 = vunpack.c.l.b16 %v159
  %v690 = vunpack.c.l.b16 %v160
  %v691 = vunpack.c.l.b16 %v161
  %v692 = vunpack.c.l.b16 %v162
  %v693 = vunpack.c.l.b16 %v163
  %v694 = vunpack.c.l.b16 %v164
  %v695 = vunpack.c.l.b16 %v165
  %v696 = vunpack.c.l.b16 %v166
  %v697 = vunpack.c.l.b16 %v167
  %v698 = vunpack.c.l.b16 %v168
  %v699 = vunpack.c.l.b16 %v169
  %v700 = vunpack.c.l.b16 %v170
  %v701 = vunpack.c.l.b16 %v171
  %v702 = vunpack.c.l.b16 %v172
  %v703 = vunpack.c.l.b16 %v173
  %v704 = vunpack.c.l.b16 %v174
  %v705 = vunpack.c.l.b16 %v175
  %v706 = vunpack.c.l.b16 %v176
  %v707 = vunpack.c.l.b16 %v177
  %v708 = vunpack.c.l.b16 %v178
  %v709 = vunpack.c.l.b16 %v179
  %v710 = vunpack.c.l.b16 %v180
  %v711 = vunpack.c.l.b16 %v181
  %v712 = vunpack.c.l.b16 %v182
  %v713 = vunpack.c.l.b16 %v183
  %v714 = vunpack.c.l.b16 %v184
  %v715 = vunpack.c.l.b16 %v185
  %v716 = vunpack.c.l.b16 %v186
  %v717 = vunpack.c.l.b16 %v187
  %v718 = vunpack.c.l.b16 %v188
  %v719 = vunpack.c.l.b16 %v189
  %v720 = vunpack.c.l.b16 %v190
  %v721 = vunpack.c.l.b16 %v191
  %v722 = vunpack.c.l.b16 %v192
  %v723 = vunpack.c.l.b16 %v193
  %v724 = vunpack.c.l.b16 %v194
  %v725 = vunpack.c.l.b16 %v195
  %v726 = vunpack.c.l.b16 %v196
  %v727 = vunpack.c.l.b16 %v197
  %v728 = vunpack.c.l.b16 %v198
  %v729 = vunpack.c.l.b16 %v199
  %v730 = vunpack.c.l.b16 %v200
  %v731 = vunpack.c.l.b16 %v201
  %v732 = vunpack.c.l.b16 %v202
  %v733 = vunpack.c.l.b16 %v203
  %v734 = vunpack.c.l.b16 %v204
  %v735 = vunpack.c.l.b16 %v205
  %v736 = vunpack.c.l.b16 %v206
  %v737 = vunpack.c.l.b16 %v207
  %v738 = vunpack.c.l.b16 %v208
  %v739 = vunpack.c.l.b16 %v209
  %v740 = vunpack.c.l.b16 %v210
  %v741 = vunpack.c.l.b16 %v211
  %v742 = vunpack.c.l.b16 %v212
  %v743 = vunpack.c.l.b16 %v213
  %v744 = vunpack.c.l.b16 %v214
  %v745 = vunpack.c.l.b16 %v215
  %v746 = vunpack.c.l.b16 %v216
  %v747 = vunpack.c.l.b16 %v217
  %v748 = vunpack.c.l.b16 %v218
  %v749 = vunpack.c.l.b16 %v219
  %v750 = vunpack.c.l.b16 %v220
  %v751 = vunpack.c.l.b16 %v221
  %v752 = vunpack.c.l.b16 %v222
  %v753 = vunpack.c.l.b16 %v223
  %v754 = vunpack.c.l.b16 %v224
  %v755 = vunpack.c.l.b16 %v225
  %v756 = vunpack.c.l.b16 %v226
  %v757 = vunpack.c.l.b16 %v227
  %v758 = vunpack.c.l.b16 %v228
  %v759 = vunpack.c.l.b16 %v229
  %v760 = vunpack.c.l.b16 %v230
  %v761 = vunpack.c.l.b16 %v231
  %v762 = vunpack.c.l.b16 %v232
  %v763 = vunpack.c.l.b16 %v233
  %v764 = vunpack.c.l.b16 %v234
  %v765 = vunpack.c.l.b16 %v235
  %v766 = vunpack.c.l.b16 %v236
  %v767 = vunpack.c.l.b16 %v237
  %v768 = vunpack.c.l.b16 %v238
  %v769 = vunpack.c.l.b16 %v239
  %v770 = vunpack.c.l.b16 %v240
  %v771 = vunpack.c.l.b16 %v241
  %v772 = vunpack.c.l.b16 %v242
  %v773 = vunpack.c.l.b16 %v243
  %v774 = vunpack.c.l.b16 %v244
  %v775 = vunpack.c.l.b16 %v245
  %v776 = vunpack.c.l.b16 %v246
  %v777 = vunpack.c.l.b16 %v247
  %v778 = vunpack.c.l.b16 %v248
  %v779 = vpack.c.b16 %v580, %v579
  %v780 = vpack.c.b16 %v582, %v581
  %v781 = vpack.c.b16 %v584, %v583
  %v782 = vpack.c.b16 %v586, %v585
  %v783 = vpack.c.b16 %v588, %v587
  %v784 = vpack.c.b16 %v590, %v589
  %v785 = vpack.c.b16 %v592, %v591
  %v786 = vpack.c.b16 %v594, %v593
  %v787 = vpack.c.b16 %v596, %v595
  %v788 = vpack.c.b16 %v598, %v597
  %v789 = vpack.c.b16 %v600, %v599
  %v790 = vpack.c.b16 %v602, %v601
  %v791 = vpack.c.b16 %v604, %v603
  %v792 = vpack.c.b16 %v606, %v605
  %v793 = vpack.c.b16 %v608, %v607
  %v794 = vpack.c.b16 %v610, %v609
  %v795 = vpack.c.b16 %v612, %v611
  %v796 = vpack.c.b16 %v614, %v613
  %v797 = vpack.c.b16 %v616, %v615
  %v798 = vpack.c.b16 %v618, %v617
  %v799 = vpack.c.b16 %v620, %v619
  %v800 = vpack.c.b16 %v622, %v621
  %v801 = vpack.c.b16 %v624, %v623
  %v802 = vpack.c.b16 %v626, %v625
  %v803 = vpack.c.b16 %v628, %v627
  %v804 = vpack.c.b16 %v630, %v629
  %v805 = vpack.c.b16 %v632, %v631
  %v806 = vpack.c.b16 %v634, %v633
  %v807 = vpack.c.b16 %v636, %v635
  %v808 = vpack.c.b16 %v638, %v637
  %v809 = vpack.c.b16 %v640, %v639
  %v810 = vpack.c.b16 %v642, %v641
  %v811 = vpack.c.b16 %v644, %v643
  %v812 = vpack.c.b16 %v646, %v645
  %v813 = vpack.c.b16 %v648, %v647
  %v814 = vpack.c.b16 %v650, %v649
  %v815 = vpack.c.b16 %v652, %v651
  %v816 = vpack.c.b16 %v654, %v653
  %v817 = vpack.c.b16 %v656, %v655
  %v818 = vpack.c.b16 %v658, %v657
  %v819 = vpack.c.b16 %v660, %v659
  %v820 = vpack.c.b16 %v662, %v661
  %v821 = vpack.c.b16 %v664, %v663
  %v822 = vpack.c.b16 %v666, %v665
  %v823 = vpack.c.b16 %v668, %v667
  %v824 = vpack.c.b16 %v670, %v669
  %v825 = vpack.c.b16 %v672, %v671
  %v826 = vpack.c.b16 %v674, %v673
  %v827 = vpack.c.b16 %v676, %v675
  %v828 = vpack.c.b16 %v678, %v677
  %v829 = vpack.c.b16 %v680, %v679
  %v830 = vpack.c.b16 %v682, %v681
  %v831 = vpack.c.b16 %v684, %v683
  %v832 = vpack.c.b16 %v686, %v685
  %v833 = vpack.c.b16 %v688, %v687
  %v834 = vpack.c.b16 %v690, %v689
  %v835 = vpack.c.b16 %v692, %v691
  %v836 = vpack.c.b16 %v694, %v693
  %v837 = vpack.c.b16 %v696, %v695
  %v838 = vpack.c.b16 %v698, %v697
  %v839 = vpack.c.b16 %v700, %v699
  %v840 = vpack.c.b16 %v702, %v701
  %v841 = vpack.c.b16 %v704, %v703
  %v842 = vpack.c.b16 %v706, %v705
  %v843 = vpack.c.b16 %v708, %v707
  %v844 = vpack.c.b16 %v710, %v709
  %v845 = vpack.c.b16 %v712, %v711
  %v846 = vpack.c.b16 %v714, %v713
  %v847 = vpack.c.b16 %v716, %v715
  %v848 = vpack.c.b16 %v718, %v717
  %v849 = vpack.c.b16 %v720, %v719
  %v850 = vpack.c.b16 %v722, %v721
  %v851 = vpack.c.b16 %v724, %v723
  %v852 = vpack.c.b16 %v726, %v725
  %v853 = vpack.c.b16 %v728, %v727
  %v854 = vpack.c.b16 %v730, %v729
  %v855 = vpack.c.b16 %v732, %v731
  %v856 = vpack.c.b16 %v734, %v733
  %v857 = vpack.c.b16 %v736, %v735
  %v858 = vpack.c.b16 %v738, %v737
  %v859 = vpack.c.b16 %v740, %v739
  %v860 = vpack.c.b16 %v742, %v741
  %v861 = vpack.c.b16 %v744, %v743
  %v862 = vpack.c.b16 %v746, %v745
  %v863 = vpack.c.b16 %v748, %v747
  %v864 = vpack.c.b16 %v750, %v749
  %v865 = vpack.c.b16 %v752, %v751
  %v866 = vpack.c.b16 %v754, %v753
  %v867 = vpack.c.b16 %v756, %v755
  %v868 = vpack.c.b16 %v758, %v757
  %v869 = vpack.c.b16 %v760, %v759
  %v870 = vpack.c.b16 %v762, %v761
  %v871 = vpack.c.b16 %v764, %v763
  %v872 = vpack.c.b16 %v766, %v765
  %v873 = vpack.c.b16 %v768, %v767
  %v874 = vpack.c.b16 %v770, %v769
  %v875 = vpack.c.b16 %v772, %v771
  %v876 = vpack.c.b16 %v774, %v773
  %v877 = vpack.c.b16 %v776, %v775
  %v878 = vpack.c.b16 %v778, %v777
  %vm979 = vcmask 523264
  %v981 = vsel %vm979, %v341, 0
  %v984 = vsel %vm979, %v354, 0
  %986 = vmatpush.bf16.msra.mxu0 %v786
  %987 = vmatpush.bf16.msra.mxu0 %v785
  %988 = vmatpush.bf16.msra.mxu0 %v784
  %989 = vmatpush.bf16.msra.mxu0 %v783
  %990 = vmatpush.bf16.msra.mxu0 %v782
  %991 = vmatpush.bf16.msra.mxu0 %v781
  %992 = vmatpush.bf16.msra.mxu0 %v780
  %993 = vmatpush.bf16.msra.mxu0 %v779
  %994 = vmatmul.bf16.gmra.mxu0 %v329
  %v995 = vpop.f32.mrf.mxu0
  %v996 = vadd.f32 0.0, %v995
  %v997 = vpop.f32.mrf.mxu0
  %v998 = vadd.f32 0.0, %v997
  %999 = vmatmul.bf16.gmra.mxu0 %v342
  %v1000 = vpop.f32.mrf.mxu0
  %v1001 = vadd.f32 0.0, %v1000
  %v1002 = vpop.f32.mrf.mxu0
  %v1003 = vadd.f32 0.0, %v1002
  %1004 = vdwg.mxu0
  %1005 = vmatpush.bf16.msra.mxu0 %v794
  %1006 = vmatpush.bf16.msra.mxu0 %v793
  %1007 = vmatpush.bf16.msra.mxu0 %v792
  %1008 = vmatpush.bf16.msra.mxu0 %v791
  %1009 = vmatpush.bf16.msra.mxu0 %v790
  %1010 = vmatpush.bf16.msra.mxu0 %v789
  %1011 = vmatpush.bf16.msra.mxu0 %v788
  %1012 = vmatpush.bf16.msra.mxu0 %v787
  %1013 = vmatmul.bf16.gmra.mxu0 %v330
  %v1014 = vpop.f32.mrf.mxu0
  %v1015 = vadd.f32 %v996, %v1014
  %v1016 = vpop.f32.mrf.mxu0
  %v1017 = vadd.f32 %v998, %v1016
  %1018 = vmatmul.bf16.gmra.mxu0 %v343
  %v1019 = vpop.f32.mrf.mxu0
  %v1020 = vadd.f32 %v1001, %v1019
  %v1021 = vpop.f32.mrf.mxu0
  %v1022 = vadd.f32 %v1003, %v1021
  %1023 = vdwg.mxu0
  %1024 = vmatpush.bf16.msra.mxu0 %v802
  %1025 = vmatpush.bf16.msra.mxu0 %v801
  %1026 = vmatpush.bf16.msra.mxu0 %v800
  %1027 = vmatpush.bf16.msra.mxu0 %v799
  %1028 = vmatpush.bf16.msra.mxu0 %v798
  %1029 = vmatpush.bf16.msra.mxu0 %v797
  %1030 = vmatpush.bf16.msra.mxu0 %v796
  %1031 = vmatpush.bf16.msra.mxu0 %v795
  %1032 = vmatmul.bf16.gmra.mxu0 %v331
  %v1033 = vpop.f32.mrf.mxu0
  %v1034 = vadd.f32 %v1015, %v1033
  %v1035 = vpop.f32.mrf.mxu0
  %v1036 = vadd.f32 %v1017, %v1035
  %1037 = vmatmul.bf16.gmra.mxu0 %v344
  %v1038 = vpop.f32.mrf.mxu0
  %v1039 = vadd.f32 %v1020, %v1038
  %v1040 = vpop.f32.mrf.mxu0
  %v1041 = vadd.f32 %v1022, %v1040
  %1042 = vdwg.mxu0
  %1043 = vmatpush.bf16.msra.mxu0 %v810
  %1044 = vmatpush.bf16.msra.mxu0 %v809
  %1045 = vmatpush.bf16.msra.mxu0 %v808
  %1046 = vmatpush.bf16.msra.mxu0 %v807
  %1047 = vmatpush.bf16.msra.mxu0 %v806
  %1048 = vmatpush.bf16.msra.mxu0 %v805
  %1049 = vmatpush.bf16.msra.mxu0 %v804
  %1050 = vmatpush.bf16.msra.mxu0 %v803
  %1051 = vmatmul.bf16.gmra.mxu0 %v332
  %v1052 = vpop.f32.mrf.mxu0
  %v1053 = vadd.f32 %v1034, %v1052
  %v1054 = vpop.f32.mrf.mxu0
  %v1055 = vadd.f32 %v1036, %v1054
  %1056 = vmatmul.bf16.gmra.mxu0 %v345
  %v1057 = vpop.f32.mrf.mxu0
  %v1058 = vadd.f32 %v1039, %v1057
  %v1059 = vpop.f32.mrf.mxu0
  %v1060 = vadd.f32 %v1041, %v1059
  %1061 = vdwg.mxu0
  %1062 = vmatpush.bf16.msra.mxu0 %v818
  %1063 = vmatpush.bf16.msra.mxu0 %v817
  %1064 = vmatpush.bf16.msra.mxu0 %v816
  %1065 = vmatpush.bf16.msra.mxu0 %v815
  %1066 = vmatpush.bf16.msra.mxu0 %v814
  %1067 = vmatpush.bf16.msra.mxu0 %v813
  %1068 = vmatpush.bf16.msra.mxu0 %v812
  %1069 = vmatpush.bf16.msra.mxu0 %v811
  %1070 = vmatmul.bf16.gmra.mxu0 %v333
  %v1071 = vpop.f32.mrf.mxu0
  %v1072 = vadd.f32 %v1053, %v1071
  %v1073 = vpop.f32.mrf.mxu0
  %v1074 = vadd.f32 %v1055, %v1073
  %1075 = vmatmul.bf16.gmra.mxu0 %v346
  %v1076 = vpop.f32.mrf.mxu0
  %v1077 = vadd.f32 %v1058, %v1076
  %v1078 = vpop.f32.mrf.mxu0
  %v1079 = vadd.f32 %v1060, %v1078
  %1080 = vdwg.mxu0
  %1081 = vmatpush.bf16.msra.mxu0 %v826
  %1082 = vmatpush.bf16.msra.mxu0 %v825
  %1083 = vmatpush.bf16.msra.mxu0 %v824
  %1084 = vmatpush.bf16.msra.mxu0 %v823
  %1085 = vmatpush.bf16.msra.mxu0 %v822
  %1086 = vmatpush.bf16.msra.mxu0 %v821
  %1087 = vmatpush.bf16.msra.mxu0 %v820
  %1088 = vmatpush.bf16.msra.mxu0 %v819
  %1089 = vmatmul.bf16.gmra.mxu0 %v334
  %v1090 = vpop.f32.mrf.mxu0
  %v1091 = vadd.f32 %v1072, %v1090
  %v1092 = vpop.f32.mrf.mxu0
  %v1093 = vadd.f32 %v1074, %v1092
  %1094 = vmatmul.bf16.gmra.mxu0 %v347
  %v1095 = vpop.f32.mrf.mxu0
  %v1096 = vadd.f32 %v1077, %v1095
  %v1097 = vpop.f32.mrf.mxu0
  %v1098 = vadd.f32 %v1079, %v1097
  %1099 = vdwg.mxu0
  %1100 = vmatpush.bf16.msra.mxu0 %v834
  %1101 = vmatpush.bf16.msra.mxu0 %v833
  %1102 = vmatpush.bf16.msra.mxu0 %v832
  %1103 = vmatpush.bf16.msra.mxu0 %v831
  %1104 = vmatpush.bf16.msra.mxu0 %v830
  %1105 = vmatpush.bf16.msra.mxu0 %v829
  %1106 = vmatpush.bf16.msra.mxu0 %v828
  %1107 = vmatpush.bf16.msra.mxu0 %v827
  %1108 = vmatmul.bf16.gmra.mxu0 %v335
  %v1109 = vpop.f32.mrf.mxu0
  %v1110 = vadd.f32 %v1091, %v1109
  %v1111 = vpop.f32.mrf.mxu0
  %v1112 = vadd.f32 %v1093, %v1111
  %1113 = vmatmul.bf16.gmra.mxu0 %v348
  %v1114 = vpop.f32.mrf.mxu0
  %v1115 = vadd.f32 %v1096, %v1114
  %v1116 = vpop.f32.mrf.mxu0
  %v1117 = vadd.f32 %v1098, %v1116
  %1118 = vdwg.mxu0
  %1119 = vmatpush.bf16.msra.mxu0 %v842
  %1120 = vmatpush.bf16.msra.mxu0 %v841
  %1121 = vmatpush.bf16.msra.mxu0 %v840
  %1122 = vmatpush.bf16.msra.mxu0 %v839
  %1123 = vmatpush.bf16.msra.mxu0 %v838
  %1124 = vmatpush.bf16.msra.mxu0 %v837
  %1125 = vmatpush.bf16.msra.mxu0 %v836
  %1126 = vmatpush.bf16.msra.mxu0 %v835
  %1127 = vmatmul.bf16.gmra.mxu0 %v336
  %v1128 = vpop.f32.mrf.mxu0
  %v1129 = vadd.f32 %v1110, %v1128
  %v1130 = vpop.f32.mrf.mxu0
  %v1131 = vadd.f32 %v1112, %v1130
  %1132 = vmatmul.bf16.gmra.mxu0 %v349
  %v1133 = vpop.f32.mrf.mxu0
  %v1134 = vadd.f32 %v1115, %v1133
  %v1135 = vpop.f32.mrf.mxu0
  %v1136 = vadd.f32 %v1117, %v1135
  %1137 = vdwg.mxu0
  %1138 = vmatpush.bf16.msra.mxu0 %v850
  %1139 = vmatpush.bf16.msra.mxu0 %v849
  %1140 = vmatpush.bf16.msra.mxu0 %v848
  %1141 = vmatpush.bf16.msra.mxu0 %v847
  %1142 = vmatpush.bf16.msra.mxu0 %v846
  %1143 = vmatpush.bf16.msra.mxu0 %v845
  %1144 = vmatpush.bf16.msra.mxu0 %v844
  %1145 = vmatpush.bf16.msra.mxu0 %v843
  %1146 = vmatmul.bf16.gmra.mxu0 %v337
  %v1147 = vpop.f32.mrf.mxu0
  %v1148 = vadd.f32 %v1129, %v1147
  %v1149 = vpop.f32.mrf.mxu0
  %v1150 = vadd.f32 %v1131, %v1149
  %1151 = vmatmul.bf16.gmra.mxu0 %v350
  %v1152 = vpop.f32.mrf.mxu0
  %v1153 = vadd.f32 %v1134, %v1152
  %v1154 = vpop.f32.mrf.mxu0
  %v1155 = vadd.f32 %v1136, %v1154
  %1156 = vdwg.mxu0
  %1157 = vmatpush.bf16.msra.mxu0 %v858
  %1158 = vmatpush.bf16.msra.mxu0 %v857
  %1159 = vmatpush.bf16.msra.mxu0 %v856
  %1160 = vmatpush.bf16.msra.mxu0 %v855
  %1161 = vmatpush.bf16.msra.mxu0 %v854
  %1162 = vmatpush.bf16.msra.mxu0 %v853
  %1163 = vmatpush.bf16.msra.mxu0 %v852
  %1164 = vmatpush.bf16.msra.mxu0 %v851
  %1165 = vmatmul.bf16.gmra.mxu0 %v338
  %v1166 = vpop.f32.mrf.mxu0
  %v1167 = vadd.f32 %v1148, %v1166
  %v1168 = vpop.f32.mrf.mxu0
  %v1169 = vadd.f32 %v1150, %v1168
  %1170 = vmatmul.bf16.gmra.mxu0 %v351
  %v1171 = vpop.f32.mrf.mxu0
  %v1172 = vadd.f32 %v1153, %v1171
  %v1173 = vpop.f32.mrf.mxu0
  %v1174 = vadd.f32 %v1155, %v1173
  %1175 = vdwg.mxu0
  %1176 = vmatpush.bf16.msra.mxu0 %v866
  %1177 = vmatpush.bf16.msra.mxu0 %v865
  %1178 = vmatpush.bf16.msra.mxu0 %v864
  %1179 = vmatpush.bf16.msra.mxu0 %v863
  %1180 = vmatpush.bf16.msra.mxu0 %v862
  %1181 = vmatpush.bf16.msra.mxu0 %v861
  %1182 = vmatpush.bf16.msra.mxu0 %v860
  %1183 = vmatpush.bf16.msra.mxu0 %v859
  %1184 = vmatmul.bf16.gmra.mxu0 %v339
  %v1185 = vpop.f32.mrf.mxu0
  %v1186 = vadd.f32 %v1167, %v1185
  %v1187 = vpop.f32.mrf.mxu0
  %v1188 = vadd.f32 %v1169, %v1187
  %1189 = vmatmul.bf16.gmra.mxu0 %v352
  %v1190 = vpop.f32.mrf.mxu0
  %v1191 = vadd.f32 %v1172, %v1190
  %v1192 = vpop.f32.mrf.mxu0
  %v1193 = vadd.f32 %v1174, %v1192
  %1194 = vdwg.mxu0
  %1195 = vmatpush.bf16.msra.mxu0 %v874
  %1196 = vmatpush.bf16.msra.mxu0 %v873
  %1197 = vmatpush.bf16.msra.mxu0 %v872
  %1198 = vmatpush.bf16.msra.mxu0 %v871
  %1199 = vmatpush.bf16.msra.mxu0 %v870
  %1200 = vmatpush.bf16.msra.mxu0 %v869
  %1201 = vmatpush.bf16.msra.mxu0 %v868
  %1202 = vmatpush.bf16.msra.mxu0 %v867
  %1203 = vmatmul.bf16.gmra.mxu0 %v340
  %v1204 = vpop.f32.mrf.mxu0
  %v1205 = vadd.f32 %v1186, %v1204
  %v1206 = vpop.f32.mrf.mxu0
  %v1207 = vadd.f32 %v1188, %v1206
  %1208 = vmatmul.bf16.gmra.mxu0 %v353
  %v1209 = vpop.f32.mrf.mxu0
  %v1210 = vadd.f32 %v1191, %v1209
  %v1211 = vpop.f32.mrf.mxu0
  %v1212 = vadd.f32 %v1193, %v1211
  %1213 = vdwg.mxu0
  %1214 = vmatpush.bf16.msra.mxu0 0
  %1215 = vmatpush.bf16.msra.mxu0 0
  %1216 = vmatpush.bf16.msra.mxu0 0
  %1217 = vmatpush.bf16.msra.mxu0 0
  %1218 = vmatpush.bf16.msra.mxu0 %v878
  %1219 = vmatpush.bf16.msra.mxu0 %v877
  %1220 = vmatpush.bf16.msra.mxu0 %v876
  %1221 = vmatpush.bf16.msra.mxu0 %v875
  %1222 = vmatmul.bf16.gmra.mxu0 %v981
  %v1223 = vpop.f32.mrf.mxu0
  %v1224 = vadd.f32 %v1205, %v1223
  %v1225 = vpop.f32.mrf.mxu0
  %v1226 = vadd.f32 %v1207, %v1225
  %1227 = vmatmul.bf16.gmra.mxu0 %v984
  %v1228 = vpop.f32.mrf.mxu0
  %v1229 = vadd.f32 %v1210, %v1228
  %v1230 = vpop.f32.mrf.mxu0
  %v1231 = vadd.f32 %v1212, %v1230
  %1232 = vdwg.mxu0
  %1233 = vst [vmem:[%s2] sm:$0xff] %v1224
  %1234 = vst [vmem:[%s2 + $0x8] sm:$0xff] %v1226
  %1235 = vst [vmem:[%s2 + $0x10] sm:$0xff] %v1229
  %1236 = vst [vmem:[%s2 + $0x18] sm:$0xff] %v1231
  %v1237 = vld [vmem:[%s3] sm:$0x1]
  %v1238 = vadd.f32 %v1224, %v1226
  %v1239 = vadd.f32 %v1238, %v1229
  %v1240 = vadd.f32 %v1239, %v1231
  %v1241 = vrot.slane %v1240, 4
  %v1242 = vadd.f32 %v1240, %v1241
  %v1243 = vrot.slane %v1242, 2
  %v1244 = vadd.f32 %v1242, %v1243
  %v1245 = vrot.slane %v1244, 1
  %v1246 = vadd.f32 %v1244, %v1245
  %v1247 = vadd.f32 %v1237, %v1246
  %1248 = vst [vmem:[%s3] sm:$0x1] %v1247
  %v1249 = vld [vmem:[%s4] sm:$0x1]
  %v1250 = vmul.f32 %v1224, %v1224
  %v1251 = vmul.f32 %v1226, %v1226
  %v1252 = vmul.f32 %v1229, %v1229
  %v1253 = vmul.f32 %v1231, %v1231
  %v1254 = vadd.f32 %v1250, %v1251
  %v1255 = vadd.f32 %v1254, %v1252
  %v1256 = vadd.f32 %v1255, %v1253
  %v1257 = vrot.slane %v1256, 4
  %v1258 = vadd.f32 %v1256, %v1257
  %v1259 = vrot.slane %v1258, 2
  %v1260 = vadd.f32 %v1258, %v1259
  %v1261 = vrot.slane %v1260, 1
  %v1262 = vadd.f32 %v1260, %v1261
  %v1263 = vadd.f32 %v1249, %v1262
  %1264 = vst [vmem:[%s4] sm:$0x1] %v1263
  // Predicated region
  $region14: #{discriminator_forward.13} parent=0 // pred_check
    _
  $region15: #{discriminator_forward.13} parent=0 // pred_check_branch
    %1266 = sbr.rel (0) target = $region17
  $region16: #{discriminator_forward.13} parent=0 // pred_region
    _
  $region17: #{discriminator_forward.13} parent=0 // pred_fallthru
    _
  // Predicated region
  $region18: #{discriminator_forward.13} parent=0 // pred_check
    _
  $region19: #{discriminator_forward.13} parent=0 // pred_check_branch
    %1268 = sbr.rel (0) target = $region21
  $region20: #{discriminator_forward.13} parent=0 // pred_region
    _
  $region21: #{discriminator_forward.13} parent=0 // pred_fallthru
    _
  // Predicated region
  $region22: #{discriminator_forward.13} parent=0 // pred_check
    _
  $region23: #{discriminator_forward.13} parent=0 // pred_check_branch
    %1270 = sbr.rel (0) target = $region25
  $region24: #{discriminator_forward.13} parent=0 // pred_region
    _
  $region25: #{discriminator_forward.13} parent=0 // pred_fallthru
    _
  // Predicated region
  $region26: #{discriminator_forward.13} parent=0 // pred_check
    _
  $region27: #{discriminator_forward.13} parent=0 // pred_check_branch
    %1272 = sbr.rel (0) target = $region29
  $region28: #{discriminator_forward.13} parent=0 // pred_region
    _
  $region29: #{discriminator_forward.13} parent=0 // pred_fallthru
    _
  // Predicated region
  $region30: #{discriminator_forward.13} parent=0 // pred_check
    _
  $region31: #{discriminator_forward.13} parent=0 // pred_check_branch
    %1274 = sbr.rel (0) target = $region33
  $region32: #{discriminator_forward.13} parent=0 // pred_region
    _
  $region33: #{discriminator_forward.13} parent=0 // pred_fallthru
    _
  // Predicated region
  $region34: #{discriminator_forward.13} parent=0 // pred_check
    _
  $region35: #{discriminator_forward.13} parent=0 // pred_check_branch
    %1276 = sbr.rel (0) target = $region37
  $region36: #{discriminator_forward.13} parent=0 // pred_region
    _
  $region37: #{discriminator_forward.13} parent=0 // pred_fallthru
    _

// kernel: discriminator_forward.15
$region0: #{discriminator_forward.15}
  #allocation0 [shape = 'u32[]', space=smem, size = 0x4, offset = 0x4, fixed_abs, tag = 'smem constant byte address 0x4 - core index']
  #allocation1 [shape = 'u32[72,128]{1,0:T(1,128)}', space=vmem, size = 0x9000, scoped, tag = 'internal scratch']
  %s0 = inlined_call_operand.vmem [shape: bf16[16,1152], index: 0, kind: input, shape index: {}]
  %s1 = inlined_call_operand.vmem [shape: bf16[1152,128], index: 1, kind: input, shape index: {}]
  %s2 = inlined_call_operand.vmem [shape: f32[1,128], index: 2, kind: input, shape index: {}]
  %s3 = inlined_call_operand.vmem [shape: f32[16,128], index: 3, kind: output, shape index: {}]
  %s4 = sld [smem:[#allocation0]]
  $region22: #{discriminator_forward.15} parent=0
    _
  %s6 = ssub.s32 1, %s4
  %s7 = scalar_select 0, %s6, %s4
  // Predicated region
  $region2: #{discriminator_forward.15} parent=0 // pred_check
    _
  $region3: #{discriminator_forward.15} parent=0 // pred_check_branch
    %9 = sbr.rel (0) target = $region5
  $region4: #{discriminator_forward.15} parent=0 // pred_region
    _
  $region5: #{discriminator_forward.15} parent=0 // pred_fallthru
    _
  // Predicated region
  $region6: #{discriminator_forward.15} parent=0 // pred_check
    _
  $region7: #{discriminator_forward.15} parent=0 // pred_check_branch
    %11 = sbr.rel (0) target = $region9
  $region8: #{discriminator_forward.15} parent=0 // pred_region
    _
  $region9: #{discriminator_forward.15} parent=0 // pred_fallthru
    _
  // Predicated region
  $region10: #{discriminator_forward.15} parent=0 // pred_check
    _
  $region11: #{discriminator_forward.15} parent=0 // pred_check_branch
    %13 = sbr.rel (0) target = $region13
  $region12: #{discriminator_forward.15} parent=0 // pred_region
    _
  $region13: #{discriminator_forward.15} parent=0 // pred_fallthru
    _
  %v14 = vld [vmem:[%s0] sm:$0xff]
  %v15 = vld [vmem:[%s0 + $0x8] sm:$0xff]
  %v16 = vld [vmem:[%s0 + $0x10] sm:$0xff]
  %v17 = vld [vmem:[%s0 + $0x18] sm:$0xff]
  %v18 = vld [vmem:[%s0 + $0x20] sm:$0xf]
  %v19 = vld [vmem:[%s0 + $0x24] sm:$0xff]
  %v20 = vld [vmem:[%s0 + $0x2c] sm:$0xff]
  %v21 = vld [vmem:[%s0 + $0x34] sm:$0xff]
  %v22 = vld [vmem:[%s0 + $0x3c] sm:$0xff]
  %v23 = vld [vmem:[%s0 + $0x44] sm:$0xf]
  %v24 = vld [vmem:[%s1] sm:$0xf]
  %v25 = vld [vmem:[%s1 + $0x4] sm:$0xf]
  %v26 = vld [vmem:[%s1 + $0x8] sm:$0xf]
  %v27 = vld [vmem:[%s1 + $0xc] sm:$0xf]
  %v28 = vld [vmem:[%s1 + $0x10] sm:$0xf]
  %v29 = vld [vmem:[%s1 + $0x14] sm:$0xf]
  %v30 = vld [vmem:[%s1 + $0x18] sm:$0xf]
  %v31 = vld [vmem:[%s1 + $0x1c] sm:$0xf]
  %v32 = vld [vmem:[%s1 + $0x20] sm:$0xf]
  %v33 = vld [vmem:[%s1 + $0x24] sm:$0xf]
  %v34 = vld [vmem:[%s1 + $0x28] sm:$0xf]
  %v35 = vld [vmem:[%s1 + $0x2c] sm:$0xf]
  %v36 = vld [vmem:[%s1 + $0x30] sm:$0xf]
  %v37 = vld [vmem:[%s1 + $0x34] sm:$0xf]
  %v38 = vld [vmem:[%s1 + $0x38] sm:$0xf]
  %v39 = vld [vmem:[%s1 + $0x3c] sm:$0xf]
  %v40 = vld [vmem:[%s1 + $0x40] sm:$0xf]
  %v41 = vld [vmem:[%s1 + $0x44] sm:$0xf]
  %v42 = vld [vmem:[%s1 + $0x48] sm:$0xf]
  %v43 = vld [vmem:[%s1 + $0x4c] sm:$0xf]
  %v44 = vld [vmem:[%s1 + $0x50] sm:$0xf]
  %v45 = vld [vmem:[%s1 + $0x54] sm:$0xf]
  %v46 = vld [vmem:[%s1 + $0x58] sm:$0xf]
  %v47 = vld [vmem:[%s1 + $0x5c] sm:$0xf]
  %v48 = vld [vmem:[%s1 + $0x60] sm:$0xf]
  %v49 = vld [vmem:[%s1 + $0x64] sm:$0xf]
  %v50 = vld [vmem:[%s1 + $0x68] sm:$0xf]
  %v51 = vld [vmem:[%s1 + $0x6c] sm:$0xf]
  %v52 = vld [vmem:[%s1 + $0x70] sm:$0xf]
  %v53 = vld [vmem:[%s1 + $0x74] sm:$0xf]
  %v54 = vld [vmem:[%s1 + $0x78] sm:$0xf]
  %v55 = vld [vmem:[%s1 + $0x7c] sm:$0xf]
  %v56 = vld [vmem:[%s1 + $0x80] sm:$0xf]
  %v57 = vld [vmem:[%s1 + $0x84] sm:$0xf]
  %v58 = vld [vmem:[%s1 + $0x88] sm:$0xf]
  %v59 = vld [vmem:[%s1 + $0x8c] sm:$0xf]
  %v60 = vld [vmem:[%s1 + $0x90] sm:$0xf]
  %v61 = vld [vmem:[%s1 + $0x94] sm:$0xf]
  %v62 = vld [vmem:[%s1 + $0x98] sm:$0xf]
  %v63 = vld [vmem:[%s1 + $0x9c] sm:$0xf]
  %v64 = vld [vmem:[%s1 + $0xa0] sm:$0xf]
  %v65 = vld [vmem:[%s1 + $0xa4] sm:$0xf]
  %v66 = vld [vmem:[%s1 + $0xa8] sm:$0xf]
  %v67 = vld [vmem:[%s1 + $0xac] sm:$0xf]
  %v68 = vld [vmem:[%s1 + $0xb0] sm:$0xf]
  %v69 = vld [vmem:[%s1 + $0xb4] sm:$0xf]
  %v70 = vld [vmem:[%s1 + $0xb8] sm:$0xf]
  %v71 = vld [vmem:[%s1 + $0xbc] sm:$0xf]
  %v72 = vld [vmem:[%s1 + $0xc0] sm:$0xf]
  %v73 = vld [vmem:[%s1 + $0xc4] sm:$0xf]
  %v74 = vld [vmem:[%s1 + $0xc8] sm:$0xf]
  %v75 = vld [vmem:[%s1 + $0xcc] sm:$0xf]
  %v76 = vld [vmem:[%s1 + $0xd0] sm:$0xf]
  %v77 = vld [vmem:[%s1 + $0xd4] sm:$0xf]
  %v78 = vld [vmem:[%s1 + $0xd8] sm:$0xf]
  %v79 = vld [vmem:[%s1 + $0xdc] sm:$0xf]
  %v80 = vld [vmem:[%s1 + $0xe0] sm:$0xf]
  %v81 = vld [vmem:[%s1 + $0xe4] sm:$0xf]
  %v82 = vld [vmem:[%s1 + $0xe8] sm:$0xf]
  %v83 = vld [vmem:[%s1 + $0xec] sm:$0xf]
  %v84 = vld [vmem:[%s1 + $0xf0] sm:$0xf]
  %v85 = vld [vmem:[%s1 + $0xf4] sm:$0xf]
  %v86 = vld [vmem:[%s1 + $0xf8] sm:$0xf]
  %v87 = vld [vmem:[%s1 + $0xfc] sm:$0xf]
  %v88 = vld [vmem:[%s1 + $0x100] sm:$0xf]
  %v89 = vld [vmem:[%s1 + $0x104] sm:$0xf]
  %v90 = vld [vmem:[%s1 + $0x108] sm:$0xf]
  %v91 = vld [vmem:[%s1 + $0x10c] sm:$0xf]
  %v92 = vld [vmem:[%s1 + $0x110] sm:$0xf]
  %v93 = vld [vmem:[%s1 + $0x114] sm:$0xf]
  %v94 = vld [vmem:[%s1 + $0x118] sm:$0xf]
  %v95 = vld [vmem:[%s1 + $0x11c] sm:$0xf]
  %v96 = vld [vmem:[%s1 + $0x120] sm:$0xf]
  %v97 = vld [vmem:[%s1 + $0x124] sm:$0xf]
  %v98 = vld [vmem:[%s1 + $0x128] sm:$0xf]
  %v99 = vld [vmem:[%s1 + $0x12c] sm:$0xf]
  %v100 = vld [vmem:[%s1 + $0x130] sm:$0xf]
  %v101 = vld [vmem:[%s1 + $0x134] sm:$0xf]
  %v102 = vld [vmem:[%s1 + $0x138] sm:$0xf]
  %v103 = vld [vmem:[%s1 + $0x13c] sm:$0xf]
  %v104 = vld [vmem:[%s1 + $0x140] sm:$0xf]
  %v105 = vld [vmem:[%s1 + $0x144] sm:$0xf]
  %v106 = vld [vmem:[%s1 + $0x148] sm:$0xf]
  %v107 = vld [vmem:[%s1 + $0x14c] sm:$0xf]
  %v108 = vld [vmem:[%s1 + $0x150] sm:$0xf]
  %v109 = vld [vmem:[%s1 + $0x154] sm:$0xf]
  %v110 = vld [vmem:[%s1 + $0x158] sm:$0xf]
  %v111 = vld [vmem:[%s1 + $0x15c] sm:$0xf]
  %v112 = vld [vmem:[%s1 + $0x160] sm:$0xf]
  %v113 = vld [vmem:[%s1 + $0x164] sm:$0xf]
  %v114 = vld [vmem:[%s1 + $0x168] sm:$0xf]
  %v115 = vld [vmem:[%s1 + $0x16c] sm:$0xf]
  %v116 = vld [vmem:[%s1 + $0x170] sm:$0xf]
  %v117 = vld [vmem:[%s1 + $0x174] sm:$0xf]
  %v118 = vld [vmem:[%s1 + $0x178] sm:$0xf]
  %v119 = vld [vmem:[%s1 + $0x17c] sm:$0xf]
  %v120 = vld [vmem:[%s1 + $0x180] sm:$0xf]
  %v121 = vld [vmem:[%s1 + $0x184] sm:$0xf]
  %v122 = vld [vmem:[%s1 + $0x188] sm:$0xf]
  %v123 = vld [vmem:[%s1 + $0x18c] sm:$0xf]
  %v124 = vld [vmem:[%s1 + $0x190] sm:$0xf]
  %v125 = vld [vmem:[%s1 + $0x194] sm:$0xf]
  %v126 = vld [vmem:[%s1 + $0x198] sm:$0xf]
  %v127 = vld [vmem:[%s1 + $0x19c] sm:$0xf]
  %v128 = vld [vmem:[%s1 + $0x1a0] sm:$0xf]
  %v129 = vld [vmem:[%s1 + $0x1a4] sm:$0xf]
  %v130 = vld [vmem:[%s1 + $0x1a8] sm:$0xf]
  %v131 = vld [vmem:[%s1 + $0x1ac] sm:$0xf]
  %v132 = vld [vmem:[%s1 + $0x1b0] sm:$0xf]
  %v133 = vld [vmem:[%s1 + $0x1b4] sm:$0xf]
  %v134 = vld [vmem:[%s1 + $0x1b8] sm:$0xf]
  %v135 = vld [vmem:[%s1 + $0x1bc] sm:$0xf]
  %v136 = vld [vmem:[%s1 + $0x1c0] sm:$0xf]
  %v137 = vld [vmem:[%s1 + $0x1c4] sm:$0xf]
  %v138 = vld [vmem:[%s1 + $0x1c8] sm:$0xf]
  %v139 = vld [vmem:[%s1 + $0x1cc] sm:$0xf]
  %v140 = vld [vmem:[%s1 + $0x1d0] sm:$0xf]
  %v141 = vld [vmem:[%s1 + $0x1d4] sm:$0xf]
  %v142 = vld [vmem:[%s1 + $0x1d8] sm:$0xf]
  %v143 = vld [vmem:[%s1 + $0x1dc] sm:$0xf]
  %v144 = vld [vmem:[%s1 + $0x1e0] sm:$0xf]
  %v145 = vld [vmem:[%s1 + $0x1e4] sm:$0xf]
  %v146 = vld [vmem:[%s1 + $0x1e8] sm:$0xf]
  %v147 = vld [vmem:[%s1 + $0x1ec] sm:$0xf]
  %v148 = vld [vmem:[%s1 + $0x1f0] sm:$0xf]
  %v149 = vld [vmem:[%s1 + $0x1f4] sm:$0xf]
  %v150 = vld [vmem:[%s1 + $0x1f8] sm:$0xf]
  %v151 = vld [vmem:[%s1 + $0x1fc] sm:$0xf]
  %v152 = vld [vmem:[%s1 + $0x200] sm:$0xf]
  %v153 = vld [vmem:[%s1 + $0x204] sm:$0xf]
  %v154 = vld [vmem:[%s1 + $0x208] sm:$0xf]
  %v155 = vld [vmem:[%s1 + $0x20c] sm:$0xf]
  %v156 = vld [vmem:[%s1 + $0x210] sm:$0xf]
  %v157 = vld [vmem:[%s1 + $0x214] sm:$0xf]
  %v158 = vld [vmem:[%s1 + $0x218] sm:$0xf]
  %v159 = vld [vmem:[%s1 + $0x21c] sm:$0xf]
  %v160 = vld [vmem:[%s1 + $0x220] sm:$0xf]
  %v161 = vld [vmem:[%s1 + $0x224] sm:$0xf]
  %v162 = vld [vmem:[%s1 + $0x228] sm:$0xf]
  %v163 = vld [vmem:[%s1 + $0x22c] sm:$0xf]
  %v164 = vld [vmem:[%s1 + $0x230] sm:$0xf]
  %v165 = vld [vmem:[%s1 + $0x234] sm:$0xf]
  %v166 = vld [vmem:[%s1 + $0x238] sm:$0xf]
  %v167 = vld [vmem:[%s1 + $0x23c] sm:$0xf]
  %v168 = vld [vmem:[%s2] sm:$0x1]
  %v170 = vperm.slane %v168, 0
  %v182 = vunpack.c.l.b16 %v14
  %v183 = vunpack.c.h.b16 %v14
  %v184 = vunpack.c.l.b16 %v15
  %v185 = vunpack.c.h.b16 %v15
  %v186 = vunpack.c.l.b16 %v16
  %v187 = vunpack.c.h.b16 %v16
  %v188 = vunpack.c.l.b16 %v17
  %v189 = vunpack.c.h.b16 %v17
  %v190 = vunpack.c.l.b16 %v18
  %v191 = vunpack.c.l.b16 %v19
  %v192 = vunpack.c.h.b16 %v19
  %v193 = vunpack.c.l.b16 %v20
  %v194 = vunpack.c.h.b16 %v20
  %v195 = vunpack.c.l.b16 %v21
  %v196 = vunpack.c.h.b16 %v21
  %v197 = vunpack.c.l.b16 %v22
  %v198 = vunpack.c.h.b16 %v22
  %v199 = vunpack.c.l.b16 %v23
  %v200 = vpack.c.b16 %v191, %v182
  %v201 = vpack.c.b16 %v192, %v183
  %v202 = vpack.c.b16 %v193, %v184
  %v203 = vpack.c.b16 %v194, %v185
  %v204 = vpack.c.b16 %v195, %v186
  %v205 = vpack.c.b16 %v196, %v187
  %v206 = vpack.c.b16 %v197, %v188
  %v207 = vpack.c.b16 %v198, %v189
  %v208 = vpack.c.b16 %v199, %v190
  %v362 = vunpack.c.l.b16 %v24
  %v363 = vunpack.c.l.b16 %v25
  %v364 = vunpack.c.l.b16 %v26
  %v365 = vunpack.c.l.b16 %v27
  %v366 = vunpack.c.l.b16 %v28
  %v367 = vunpack.c.l.b16 %v29
  %v368 = vunpack.c.l.b16 %v30
  %v369 = vunpack.c.l.b16 %v31
  %v370 = vunpack.c.l.b16 %v32
  %v371 = vunpack.c.l.b16 %v33
  %v372 = vunpack.c.l.b16 %v34
  %v373 = vunpack.c.l.b16 %v35
  %v374 = vunpack.c.l.b16 %v36
  %v375 = vunpack.c.l.b16 %v37
  %v376 = vunpack.c.l.b16 %v38
  %v377 = vunpack.c.l.b16 %v39
  %v378 = vunpack.c.l.b16 %v40
  %v379 = vunpack.c.l.b16 %v41
  %v380 = vunpack.c.l.b16 %v42
  %v381 = vunpack.c.l.b16 %v43
  %v382 = vunpack.c.l.b16 %v44
  %v383 = vunpack.c.l.b16 %v45
  %v384 = vunpack.c.l.b16 %v46
  %v385 = vunpack.c.l.b16 %v47
  %v386 = vunpack.c.l.b16 %v48
  %v387 = vunpack.c.l.b16 %v49
  %v388 = vunpack.c.l.b16 %v50
  %v389 = vunpack.c.l.b16 %v51
  %v390 = vunpack.c.l.b16 %v52
  %v391 = vunpack.c.l.b16 %v53
  %v392 = vunpack.c.l.b16 %v54
  %v393 = vunpack.c.l.b16 %v55
  %v394 = vunpack.c.l.b16 %v56
  %v395 = vunpack.c.l.b16 %v57
  %v396 = vunpack.c.l.b16 %v58
  %v397 = vunpack.c.l.b16 %v59
  %v398 = vunpack.c.l.b16 %v60
  %v399 = vunpack.c.l.b16 %v61
  %v400 = vunpack.c.l.b16 %v62
  %v401 = vunpack.c.l.b16 %v63
  %v402 = vunpack.c.l.b16 %v64
  %v403 = vunpack.c.l.b16 %v65
  %v404 = vunpack.c.l.b16 %v66
  %v405 = vunpack.c.l.b16 %v67
  %v406 = vunpack.c.l.b16 %v68
  %v407 = vunpack.c.l.b16 %v69
  %v408 = vunpack.c.l.b16 %v70
  %v409 = vunpack.c.l.b16 %v71
  %v410 = vunpack.c.l.b16 %v72
  %v411 = vunpack.c.l.b16 %v73
  %v412 = vunpack.c.l.b16 %v74
  %v413 = vunpack.c.l.b16 %v75
  %v414 = vunpack.c.l.b16 %v76
  %v415 = vunpack.c.l.b16 %v77
  %v416 = vunpack.c.l.b16 %v78
  %v417 = vunpack.c.l.b16 %v79
  %v418 = vunpack.c.l.b16 %v80
  %v419 = vunpack.c.l.b16 %v81
  %v420 = vunpack.c.l.b16 %v82
  %v421 = vunpack.c.l.b16 %v83
  %v422 = vunpack.c.l.b16 %v84
  %v423 = vunpack.c.l.b16 %v85
  %v424 = vunpack.c.l.b16 %v86
  %v425 = vunpack.c.l.b16 %v87
  %v426 = vunpack.c.l.b16 %v88
  %v427 = vunpack.c.l.b16 %v89
  %v428 = vunpack.c.l.b16 %v90
  %v429 = vunpack.c.l.b16 %v91
  %v430 = vunpack.c.l.b16 %v92
  %v431 = vunpack.c.l.b16 %v93
  %v432 = vunpack.c.l.b16 %v94
  %v433 = vunpack.c.l.b16 %v95
  %v434 = vunpack.c.l.b16 %v96
  %v435 = vunpack.c.l.b16 %v97
  %v436 = vunpack.c.l.b16 %v98
  %v437 = vunpack.c.l.b16 %v99
  %v438 = vunpack.c.l.b16 %v100
  %v439 = vunpack.c.l.b16 %v101
  %v440 = vunpack.c.l.b16 %v102
  %v441 = vunpack.c.l.b16 %v103
  %v442 = vunpack.c.l.b16 %v104
  %v443 = vunpack.c.l.b16 %v105
  %v444 = vunpack.c.l.b16 %v106
  %v445 = vunpack.c.l.b16 %v107
  %v446 = vunpack.c.l.b16 %v108
  %v447 = vunpack.c.l.b16 %v109
  %v448 = vunpack.c.l.b16 %v110
  %v449 = vunpack.c.l.b16 %v111
  %v450 = vunpack.c.l.b16 %v112
  %v451 = vunpack.c.l.b16 %v113
  %v452 = vunpack.c.l.b16 %v114
  %v453 = vunpack.c.l.b16 %v115
  %v454 = vunpack.c.l.b16 %v116
  %v455 = vunpack.c.l.b16 %v117
  %v456 = vunpack.c.l.b16 %v118
  %v457 = vunpack.c.l.b16 %v119
  %v458 = vunpack.c.l.b16 %v120
  %v459 = vunpack.c.l.b16 %v121
  %v460 = vunpack.c.l.b16 %v122
  %v461 = vunpack.c.l.b16 %v123
  %v462 = vunpack.c.l.b16 %v124
  %v463 = vunpack.c.l.b16 %v125
  %v464 = vunpack.c.l.b16 %v126
  %v465 = vunpack.c.l.b16 %v127
  %v466 = vunpack.c.l.b16 %v128
  %v467 = vunpack.c.l.b16 %v129
  %v468 = vunpack.c.l.b16 %v130
  %v469 = vunpack.c.l.b16 %v131
  %v470 = vunpack.c.l.b16 %v132
  %v471 = vunpack.c.l.b16 %v133
  %v472 = vunpack.c.l.b16 %v134
  %v473 = vunpack.c.l.b16 %v135
  %v474 = vunpack.c.l.b16 %v136
  %v475 = vunpack.c.l.b16 %v137
  %v476 = vunpack.c.l.b16 %v138
  %v477 = vunpack.c.l.b16 %v139
  %v478 = vunpack.c.l.b16 %v140
  %v479 = vunpack.c.l.b16 %v141
  %v480 = vunpack.c.l.b16 %v142
  %v481 = vunpack.c.l.b16 %v143
  %v482 = vunpack.c.l.b16 %v144
  %v483 = vunpack.c.l.b16 %v145
  %v484 = vunpack.c.l.b16 %v146
  %v485 = vunpack.c.l.b16 %v147
  %v486 = vunpack.c.l.b16 %v148
  %v487 = vunpack.c.l.b16 %v149
  %v488 = vunpack.c.l.b16 %v150
  %v489 = vunpack.c.l.b16 %v151
  %v490 = vunpack.c.l.b16 %v152
  %v491 = vunpack.c.l.b16 %v153
  %v492 = vunpack.c.l.b16 %v154
  %v493 = vunpack.c.l.b16 %v155
  %v494 = vunpack.c.l.b16 %v156
  %v495 = vunpack.c.l.b16 %v157
  %v496 = vunpack.c.l.b16 %v158
  %v497 = vunpack.c.l.b16 %v159
  %v498 = vunpack.c.l.b16 %v160
  %v499 = vunpack.c.l.b16 %v161
  %v500 = vunpack.c.l.b16 %v162
  %v501 = vunpack.c.l.b16 %v163
  %v502 = vunpack.c.l.b16 %v164
  %v503 = vunpack.c.l.b16 %v165
  %v504 = vunpack.c.l.b16 %v166
  %v505 = vunpack.c.l.b16 %v167
  %v506 = vpack.c.b16 %v363, %v362
  %v507 = vpack.c.b16 %v365, %v364
  %v508 = vpack.c.b16 %v367, %v366
  %v509 = vpack.c.b16 %v369, %v368
  %v510 = vpack.c.b16 %v371, %v370
  %v511 = vpack.c.b16 %v373, %v372
  %v512 = vpack.c.b16 %v375, %v374
  %v513 = vpack.c.b16 %v377, %v376
  %v514 = vpack.c.b16 %v379, %v378
  %v515 = vpack.c.b16 %v381, %v380
  %v516 = vpack.c.b16 %v383, %v382
  %v517 = vpack.c.b16 %v385, %v384
  %v518 = vpack.c.b16 %v387, %v386
  %v519 = vpack.c.b16 %v389, %v388
  %v520 = vpack.c.b16 %v391, %v390
  %v521 = vpack.c.b16 %v393, %v392
  %v522 = vpack.c.b16 %v395, %v394
  %v523 = vpack.c.b16 %v397, %v396
  %v524 = vpack.c.b16 %v399, %v398
  %v525 = vpack.c.b16 %v401, %v400
  %v526 = vpack.c.b16 %v403, %v402
  %v527 = vpack.c.b16 %v405, %v404
  %v528 = vpack.c.b16 %v407, %v406
  %v529 = vpack.c.b16 %v409, %v408
  %v530 = vpack.c.b16 %v411, %v410
  %v531 = vpack.c.b16 %v413, %v412
  %v532 = vpack.c.b16 %v415, %v414
  %v533 = vpack.c.b16 %v417, %v416
  %v534 = vpack.c.b16 %v419, %v418
  %v535 = vpack.c.b16 %v421, %v420
  %v536 = vpack.c.b16 %v423, %v422
  %v537 = vpack.c.b16 %v425, %v424
  %v538 = vpack.c.b16 %v427, %v426
  %v539 = vpack.c.b16 %v429, %v428
  %v540 = vpack.c.b16 %v431, %v430
  %v541 = vpack.c.b16 %v433, %v432
  %v542 = vpack.c.b16 %v435, %v434
  %v543 = vpack.c.b16 %v437, %v436
  %v544 = vpack.c.b16 %v439, %v438
  %v545 = vpack.c.b16 %v441, %v440
  %v546 = vpack.c.b16 %v443, %v442
  %v547 = vpack.c.b16 %v445, %v444
  %v548 = vpack.c.b16 %v447, %v446
  %v549 = vpack.c.b16 %v449, %v448
  %v550 = vpack.c.b16 %v451, %v450
  %v551 = vpack.c.b16 %v453, %v452
  %v552 = vpack.c.b16 %v455, %v454
  %v553 = vpack.c.b16 %v457, %v456
  %v554 = vpack.c.b16 %v459, %v458
  %v555 = vpack.c.b16 %v461, %v460
  %v556 = vpack.c.b16 %v463, %v462
  %v557 = vpack.c.b16 %v465, %v464
  %v558 = vpack.c.b16 %v467, %v466
  %v559 = vpack.c.b16 %v469, %v468
  %v560 = vpack.c.b16 %v471, %v470
  %v561 = vpack.c.b16 %v473, %v472
  %v562 = vpack.c.b16 %v475, %v474
  %v563 = vpack.c.b16 %v477, %v476
  %v564 = vpack.c.b16 %v479, %v478
  %v565 = vpack.c.b16 %v481, %v480
  %v566 = vpack.c.b16 %v483, %v482
  %v567 = vpack.c.b16 %v485, %v484
  %v568 = vpack.c.b16 %v487, %v486
  %v569 = vpack.c.b16 %v489, %v488
  %v570 = vpack.c.b16 %v491, %v490
  %v571 = vpack.c.b16 %v493, %v492
  %v572 = vpack.c.b16 %v495, %v494
  %v573 = vpack.c.b16 %v497, %v496
  %v574 = vpack.c.b16 %v499, %v498
  %v575 = vpack.c.b16 %v501, %v500
  %v576 = vpack.c.b16 %v503, %v502
  %v577 = vpack.c.b16 %v505, %v504
  %650 = vmatpush.bf16.msra.mxu0 %v513
  %651 = vmatpush.bf16.msra.mxu0 %v512
  %652 = vmatpush.bf16.msra.mxu0 %v511
  %653 = vmatpush.bf16.msra.mxu0 %v510
  %654 = vmatpush.bf16.msra.mxu0 %v509
  %655 = vmatpush.bf16.msra.mxu0 %v508
  %656 = vmatpush.bf16.msra.mxu0 %v507
  %657 = vmatpush.bf16.msra.mxu0 %v506
  %658 = vmatmul.bf16.gmra.mxu0 %v200
  %v659 = vpop.f32.mrf.mxu0
  %v660 = vadd.f32 %v170, %v659
  %v661 = vpop.f32.mrf.mxu0
  %v662 = vadd.f32 %v170, %v661
  %663 = vdwg.mxu0
  %664 = vmatpush.bf16.msra.mxu0 %v521
  %665 = vmatpush.bf16.msra.mxu0 %v520
  %666 = vmatpush.bf16.msra.mxu0 %v519
  %667 = vmatpush.bf16.msra.mxu0 %v518
  %668 = vmatpush.bf16.msra.mxu0 %v517
  %669 = vmatpush.bf16.msra.mxu0 %v516
  %670 = vmatpush.bf16.msra.mxu0 %v515
  %671 = vmatpush.bf16.msra.mxu0 %v514
  %672 = vmatmul.bf16.gmra.mxu0 %v201
  %v673 = vpop.f32.mrf.mxu0
  %v674 = vadd.f32 %v660, %v673
  %v675 = vpop.f32.mrf.mxu0
  %v676 = vadd.f32 %v662, %v675
  %677 = vdwg.mxu0
  %678 = vmatpush.bf16.msra.mxu0 %v529
  %679 = vmatpush.bf16.msra.mxu0 %v528
  %680 = vmatpush.bf16.msra.mxu0 %v527
  %681 = vmatpush.bf16.msra.mxu0 %v526
  %682 = vmatpush.bf16.msra.mxu0 %v525
  %683 = vmatpush.bf16.msra.mxu0 %v524
  %684 = vmatpush.bf16.msra.mxu0 %v523
  %685 = vmatpush.bf16.msra.mxu0 %v522
  %686 = vmatmul.bf16.gmra.mxu0 %v202
  %v687 = vpop.f32.mrf.mxu0
  %v688 = vadd.f32 %v674, %v687
  %v689 = vpop.f32.mrf.mxu0
  %v690 = vadd.f32 %v676, %v689
  %691 = vdwg.mxu0
  %692 = vmatpush.bf16.msra.mxu0 %v537
  %693 = vmatpush.bf16.msra.mxu0 %v536
  %694 = vmatpush.bf16.msra.mxu0 %v535
  %695 = vmatpush.bf16.msra.mxu0 %v534
  %696 = vmatpush.bf16.msra.mxu0 %v533
  %697 = vmatpush.bf16.msra.mxu0 %v532
  %698 = vmatpush.bf16.msra.mxu0 %v531
  %699 = vmatpush.bf16.msra.mxu0 %v530
  %700 = vmatmul.bf16.gmra.mxu0 %v203
  %v701 = vpop.f32.mrf.mxu0
  %v702 = vadd.f32 %v688, %v701
  %v703 = vpop.f32.mrf.mxu0
  %v704 = vadd.f32 %v690, %v703
  %705 = vdwg.mxu0
  %706 = vmatpush.bf16.msra.mxu0 %v545
  %707 = vmatpush.bf16.msra.mxu0 %v544
  %708 = vmatpush.bf16.msra.mxu0 %v543
  %709 = vmatpush.bf16.msra.mxu0 %v542
  %710 = vmatpush.bf16.msra.mxu0 %v541
  %711 = vmatpush.bf16.msra.mxu0 %v540
  %712 = vmatpush.bf16.msra.mxu0 %v539
  %713 = vmatpush.bf16.msra.mxu0 %v538
  %714 = vmatmul.bf16.gmra.mxu0 %v204
  %v715 = vpop.f32.mrf.mxu0
  %v716 = vadd.f32 %v702, %v715
  %v717 = vpop.f32.mrf.mxu0
  %v718 = vadd.f32 %v704, %v717
  %719 = vdwg.mxu0
  %720 = vmatpush.bf16.msra.mxu0 %v553
  %721 = vmatpush.bf16.msra.mxu0 %v552
  %722 = vmatpush.bf16.msra.mxu0 %v551
  %723 = vmatpush.bf16.msra.mxu0 %v550
  %724 = vmatpush.bf16.msra.mxu0 %v549
  %725 = vmatpush.bf16.msra.mxu0 %v548
  %726 = vmatpush.bf16.msra.mxu0 %v547
  %727 = vmatpush.bf16.msra.mxu0 %v546
  %728 = vmatmul.bf16.gmra.mxu0 %v205
  %v729 = vpop.f32.mrf.mxu0
  %v730 = vadd.f32 %v716, %v729
  %v731 = vpop.f32.mrf.mxu0
  %v732 = vadd.f32 %v718, %v731
  %733 = vdwg.mxu0
  %734 = vmatpush.bf16.msra.mxu0 %v561
  %735 = vmatpush.bf16.msra.mxu0 %v560
  %736 = vmatpush.bf16.msra.mxu0 %v559
  %737 = vmatpush.bf16.msra.mxu0 %v558
  %738 = vmatpush.bf16.msra.mxu0 %v557
  %739 = vmatpush.bf16.msra.mxu0 %v556
  %740 = vmatpush.bf16.msra.mxu0 %v555
  %741 = vmatpush.bf16.msra.mxu0 %v554
  %742 = vmatmul.bf16.gmra.mxu0 %v206
  %v743 = vpop.f32.mrf.mxu0
  %v744 = vadd.f32 %v730, %v743
  %v745 = vpop.f32.mrf.mxu0
  %v746 = vadd.f32 %v732, %v745
  %747 = vdwg.mxu0
  %748 = vmatpush.bf16.msra.mxu0 %v569
  %749 = vmatpush.bf16.msra.mxu0 %v568
  %750 = vmatpush.bf16.msra.mxu0 %v567
  %751 = vmatpush.bf16.msra.mxu0 %v566
  %752 = vmatpush.bf16.msra.mxu0 %v565
  %753 = vmatpush.bf16.msra.mxu0 %v564
  %754 = vmatpush.bf16.msra.mxu0 %v563
  %755 = vmatpush.bf16.msra.mxu0 %v562
  %756 = vmatmul.bf16.gmra.mxu0 %v207
  %v757 = vpop.f32.mrf.mxu0
  %v758 = vadd.f32 %v744, %v757
  %v759 = vpop.f32.mrf.mxu0
  %v760 = vadd.f32 %v746, %v759
  %761 = vdwg.mxu0
  %762 = vmatpush.bf16.msra.mxu0 %v577
  %763 = vmatpush.bf16.msra.mxu0 %v576
  %764 = vmatpush.bf16.msra.mxu0 %v575
  %765 = vmatpush.bf16.msra.mxu0 %v574
  %766 = vmatpush.bf16.msra.mxu0 %v573
  %767 = vmatpush.bf16.msra.mxu0 %v572
  %768 = vmatpush.bf16.msra.mxu0 %v571
  %769 = vmatpush.bf16.msra.mxu0 %v570
  %770 = vmatmul.bf16.gmra.mxu0 %v208
  %v771 = vpop.f32.mrf.mxu0
  %v772 = vadd.f32 %v758, %v771
  %v773 = vpop.f32.mrf.mxu0
  %v774 = vadd.f32 %v760, %v773
  %775 = vdwg.mxu0
  %v776 = vsub.f32 0.0, %v772
  %v777 = vsub.f32 0.0, %v774
  %v778 = vmul.f32 %v776, 1.442695
  %v779 = vpow.pop %v778
  %v780 = vmul.f32 %v777, 1.442695
  %v781 = vpow.pop %v780
  %v782 = vadd.f32 %v779, 1.0
  %v783 = vadd.f32 %v781, 1.0
  %v784 = vrcp.pop %v782
  %v785 = vmul.f32 %v782, %v784
  %v786 = vsub.f32 1.0, %v785
  %v787 = vmul.f32 %v784, %v786
  %v788 = vadd.f32 %v784, %v787
  %vm789 = vweird.f32 %v782
  %vm790 = vweird.f32 %v784
  %vm791 = vmor %vm789, %vm790
  %v792 = vsel %vm791, %v784, %v788
  %v793 = vand.u32 2147483647, %v782
  %vm794 = vcmp.eq.f32.partialorder %v793, 8.507059e+37
  %v795 = vand.u32 %v782, 2147483648
  %v796 = vor.u32 1.1754944e-38, %v795
  %v797 = vsel %vm794, %v796, %v792
  %v798 = vmul.f32 1.0, %v797
  %v799 = vrcp.pop %v783
  %v800 = vmul.f32 %v783, %v799
  %v801 = vsub.f32 1.0, %v800
  %v802 = vmul.f32 %v799, %v801
  %v803 = vadd.f32 %v799, %v802
  %vm804 = vweird.f32 %v783
  %vm805 = vweird.f32 %v799
  %vm806 = vmor %vm804, %vm805
  %v807 = vsel %vm806, %v799, %v803
  %v808 = vand.u32 2147483647, %v783
  %vm809 = vcmp.eq.f32.partialorder %v808, 8.507059e+37
  %v810 = vand.u32 %v783, 2147483648
  %v811 = vor.u32 1.1754944e-38, %v810
  %v812 = vsel %vm809, %v811, %v807
  %v813 = vmul.f32 1.0, %v812
  %814 = vst [vmem:[%s3] sm:$0xff] %v798
  %815 = vst [vmem:[%s3 + $0x8] sm:$0xff] %v813
  // Predicated region
  $region14: #{discriminator_forward.15} parent=0 // pred_check
    _
  $region15: #{discriminator_forward.15} parent=0 // pred_check_branch
    %817 = sbr.rel (0) target = $region17
  $region16: #{discriminator_forward.15} parent=0 // pred_region
    _
  $region17: #{discriminator_forward.15} parent=0 // pred_fallthru
    _
  // Predicated region
  $region18: #{discriminator_forward.15} parent=0 // pred_check
    _
  $region19: #{discriminator_forward.15} parent=0 // pred_check_branch
    %819 = sbr.rel (0) target = $region21
  $region20: #{discriminator_forward.15} parent=0 // pred_region
    _
  $region21: #{discriminator_forward.15} parent=0 // pred_fallthru
    _

</llo_original>
